<compile_context>
chip_gen: v7x
topology: tpu7x:2x2x1
jax: 0.10.0
libtpu: 0.0.40
codegen_flags: <defaults>
</compile_context>

<pallas_src>
import math
from functools import partial

import jax
import jax.numpy as jnp
from jax import lax
from jax.experimental import pallas as pl
from jax.experimental.pallas import tpu as pltpu

# ----------------------------------------------------------------------------
# Synthetic stand-in for TRADING_BERT_CONFIG (small shapes)
# ----------------------------------------------------------------------------
CONFIG = dict(
    factor_num=16,
    asset_embeds_map_nlayers=2,
    slope=0.1,
    dropout=0.1,          # inference: dropout == identity
    max_len=64,
    d_model=32,
    nhead=4,
    nlayers=2,
    activation="relu",
)

LN_EPS = 1e-5


def _layernorm(x, g, b):
    mean = jnp.mean(x, axis=-1, keepdims=True)
    var = jnp.mean((x - mean) ** 2, axis=-1, keepdims=True)
    return (x - mean) * lax.rsqrt(var + LN_EPS) * g + b


def _activation(x, name):
    if name == "gelu":
        # TODO(synk): PyTorch F.gelu uses exact erf; tanh-approx used here for robust Mosaic lowering.
        return jax.nn.gelu(x, approximate=True)
    return jnp.maximum(x, 0.0)


# ----------------------------------------------------------------------------
# Fused per-batch-row kernel: Mapping MLP + pos add + full encoder stack.
# One grid step == one batch row; everything for that row stays in VMEM.
# ----------------------------------------------------------------------------
def _fused_kernel(x_ref, pos_ref,
                  mw1_ref, mb1_ref, mw2_ref, mb2_ref,
                  wqkv_ref, bqkv_ref, wo_ref, bo_ref,
                  ln1g_ref, ln1b_ref, w1_ref, b1_ref, w2_ref, b2_ref,
                  ln2g_ref, ln2b_ref,
                  o_ref, *, nlayers, nhead, slope, activation):
    f32 = jnp.float32
    bf16 = jnp.bfloat16
    D = wo_ref.shape[-1]
    hd = D // nhead
    scale = 1.0 / math.sqrt(hd)

    # ---- asset embedding MLP ("Mapping": Linear + LeakyReLU x2) ------------
    h = jnp.dot(x_ref[0].astype(bf16), mw1_ref[...],
                preferred_element_type=f32) + mb1_ref[...]
    h = jnp.where(h >= 0, h, slope * h)                       # LeakyReLU
    h = jnp.dot(h.astype(bf16), mw2_ref[...],
                preferred_element_type=f32) + mb2_ref[...]
    h = jnp.where(h >= 0, h, slope * h)
    h = h + pos_ref[...]                                      # + seg + time, (t,a) order

    # ---- post-LN transformer encoder stack (whole stack in one kernel) -----
    for l in range(nlayers):                                  # static loop (nlayers=2)
        xb = h.astype(bf16)
        # fused QKV projection; single bf16 cast of the whole qkv slab
        qkv = (jnp.dot(xb, wqkv_ref[l], preferred_element_type=f32)
               + bqkv_ref[l]).astype(bf16)                    # (L, 3D)

        # heads stacked along a leading batch axis -> batched MXU matmuls
        q = jnp.stack([qkv[:, hh * hd:(hh + 1) * hd]
                       for hh in range(nhead)], axis=0)       # (H, L, hd)
        k = jnp.stack([qkv[:, D + hh * hd:D + (hh + 1) * hd]
                       for hh in range(nhead)], axis=0)
        v = jnp.stack([qkv[:, 2 * D + hh * hd:2 * D + (hh + 1) * hd]
                       for hh in range(nhead)], axis=0)

        # scores / softmax / context, all heads at once (no mask needed:
        # this grid step only ever sees tokens of its own batch row)
        s = jnp.einsum('hqd,hkd->hqk', q, k,
                       preferred_element_type=f32) * scale    # (H, L, L) f32
        s = s - jnp.max(s, axis=-1, keepdims=True)
        p = jnp.exp(s)
        p = p * pl.reciprocal(jnp.sum(p, axis=-1, keepdims=True), approx=True)
        oh = jnp.einsum('hqk,hkd->hqd', p.astype(bf16), v,
                        preferred_element_type=f32)           # (H, L, hd)

        # concat(heads) -> single (L, D) @ Wo matmul (no per-head accumulation)
        cat = jnp.concatenate([oh[hh] for hh in range(nhead)],
                              axis=-1).astype(bf16)           # (L, D)
        attn = jnp.dot(cat, wo_ref[l],
                       preferred_element_type=f32) + bo_ref[l]
        h = _layernorm(h + attn, ln1g_ref[l], ln1b_ref[l])    # post-LN #1

        ff = jnp.dot(h.astype(bf16), w1_ref[l],
                     preferred_element_type=f32) + b1_ref[l]
        ff = _activation(ff, activation)
        ff = jnp.dot(ff.astype(bf16), w2_ref[l],
                     preferred_element_type=f32) + b2_ref[l]
        h = _layernorm(h + ff, ln2g_ref[l], ln2b_ref[l])      # post-LN #2

    # TODO(synk): D=32 (<128 lanes) makes this a masked store; if this path
    # becomes hot, present the output as a lane-dense (L*D//128, 128) slab
    # and reshape in the wrapper.
    o_ref[0] = h


# ----------------------------------------------------------------------------
# Parameter init (deterministic; mimics _init_weights: N(0, 0.02) weights,
# zero biases, LayerNorm gamma=1 / beta=0).  Matmul weights stored bf16,
# per-layer weights stacked along a leading nlayers axis.
# ----------------------------------------------------------------------------
def init_params(key, config):
    D = config["d_model"]
    F = config["factor_num"]
    ML = config["max_len"]
    nl = config["nlayers"]
    cnt = [0]

    def nrm(shape, dtype=jnp.float32):
        cnt[0] += 1
        w = 0.02 * jax.random.normal(jax.random.fold_in(key, cnt[0]), shape,
                                     jnp.float32)
        return w.astype(dtype)

    zeros = lambda shape: jnp.zeros(shape, jnp.float32)
    ones = lambda shape: jnp.ones(shape, jnp.float32)
    bf = jnp.bfloat16

    return dict(
        time_encoding=nrm((ML, D)),
        seg_encoding=nrm((ML, D)),
        # Mapping MLP
        map_w1=nrm((F, D), bf), map_b1=zeros((1, D)),
        map_w2=nrm((D, D), bf), map_b2=zeros((1, D)),
        # encoder layers (stacked along leading nlayers axis)
        wqkv=nrm((nl, D, 3 * D), bf), bqkv=zeros((nl, 1, 3 * D)),
        wo=nrm((nl, D, D), bf), bo=zeros((nl, 1, D)),
        ln1_g=ones((nl, 1, D)), ln1_b=zeros((nl, 1, D)),
        w1=nrm((nl, D, D), bf), b1=zeros((nl, 1, D)),      # dim_feedforward = d_model
        w2=nrm((nl, D, D), bf), b2=zeros((nl, 1, D)),
        ln2_g=ones((nl, 1, D)), ln2_b=zeros((nl, 1, D)),
    )


# ----------------------------------------------------------------------------
# Forward: one pallas_call, grid over batch (parallel).
# ----------------------------------------------------------------------------
def trading_bert_forward(params, assets_in, config):
    B, A, S, F = assets_in.shape
    D = config["d_model"]
    L = A * S

    # (b, a, s, f) -> (b, t, a, f) -> (B, L, F): token reorder done at factor
    # width in the wrapper (free in XLA); replaces the old in-kernel (N,N)
    # one-hot permutation matmul.  Mapping is pointwise per token, so applying
    # it after the reorder is exact.
    x = jnp.transpose(assets_in, (0, 2, 1, 3)).reshape(B, L, F).astype(jnp.float32)

    # positional encodings built directly in (t, a) row order; single (L, D)
    # slab shared by every grid step (no B-times replication).
    time_emb = params["time_encoding"][:S].astype(jnp.float32)   # (S, D)
    seg_emb = params["seg_encoding"][:A].astype(jnp.float32)     # (A, D)
    pos = (time_emb[:, None, :] + seg_emb[None, :, :]).reshape(L, D)

    weights = (params["map_w1"], params["map_b1"],
               params["map_w2"], params["map_b2"],
               params["wqkv"], params["bqkv"], params["wo"], params["bo"],
               params["ln1_g"], params["ln1_b"],
               params["w1"], params["b1"], params["w2"], params["b2"],
               params["ln2_g"], params["ln2_b"])

    # constant index_map -> block stays resident in VMEM across grid steps
    def resident(arr):
        nd = arr.ndim
        return pl.BlockSpec(arr.shape, lambda b, nd=nd: (0,) * nd)

    out = pl.pallas_call(
        partial(_fused_kernel,
                nlayers=config["nlayers"], nhead=config["nhead"],
                slope=config["slope"], activation=config["activation"]),
        out_shape=jax.ShapeDtypeStruct((B, L, D), jnp.float32),
        grid=(B,),
        in_specs=[pl.BlockSpec((1, L, F), lambda b: (b, 0, 0)),
                  resident(pos)] + [resident(w) for w in weights],
        out_specs=pl.BlockSpec((1, L, D), lambda b: (b, 0, 0)),
        compiler_params=pltpu.CompilerParams(
            dimension_semantics=("parallel",)),   # batch axis -> 2nd TC on v7x
    )(x, pos, *weights)

    return out                                    # (B, A*S, D), time-major tokens


if __name__ == "__main__":
    key = jax.random.PRNGKey(0)
    pkey, xkey = jax.random.split(key)
    params = init_params(pkey, CONFIG)

    B, A, S, F = 2, 4, 8, CONFIG["factor_num"]
    assets_in = jax.random.normal(xkey, (B, A, S, F), jnp.float32)

    fwd = jax.jit(partial(trading_bert_forward, config=CONFIG))
    out = jax.block_until_ready(fwd(params, assets_in))

    assert out.shape == (B, A * S, CONFIG["d_model"]), out.shape
    assert bool(jnp.all(jnp.isfinite(out)))
    print("KERNEL_OK")
</pallas_src>

<mosaic_0001>
module attributes {stable_mosaic.version = 11 : i64} {
  func.func @_fused_kernel(%arg0: i32, %arg1: memref<1x32x16xf32, #tpu.memory_space<vmem>>, %arg2: memref<32x32xf32, #tpu.memory_space<vmem>>, %arg3: memref<16x32xbf16, #tpu.memory_space<vmem>>, %arg4: memref<1x32xf32, #tpu.memory_space<vmem>>, %arg5: memref<32x32xbf16, #tpu.memory_space<vmem>>, %arg6: memref<1x32xf32, #tpu.memory_space<vmem>>, %arg7: memref<2x32x96xbf16, #tpu.memory_space<vmem>>, %arg8: memref<2x1x96xf32, #tpu.memory_space<vmem>>, %arg9: memref<2x32x32xbf16, #tpu.memory_space<vmem>>, %arg10: memref<2x1x32xf32, #tpu.memory_space<vmem>>, %arg11: memref<2x1x32xf32, #tpu.memory_space<vmem>>, %arg12: memref<2x1x32xf32, #tpu.memory_space<vmem>>, %arg13: memref<2x32x32xbf16, #tpu.memory_space<vmem>>, %arg14: memref<2x1x32xf32, #tpu.memory_space<vmem>>, %arg15: memref<2x32x32xbf16, #tpu.memory_space<vmem>>, %arg16: memref<2x1x32xf32, #tpu.memory_space<vmem>>, %arg17: memref<2x1x32xf32, #tpu.memory_space<vmem>>, %arg18: memref<2x1x32xf32, #tpu.memory_space<vmem>>, %arg19: memref<1x32x32xf32, #tpu.memory_space<vmem>>) attributes {dimension_semantics = [#tpu.dimension_semantics<parallel>], iteration_bounds = array<i64: 2>, scalar_prefetch = 0 : i64, scratch_operands = 0 : i64, tpu.core_type = #tpu.core_type<tc>, window_params = [{transform_indices = @transform_0, window_bounds = array<i64: 1, 32, 16>}, {pipeline_mode = #tpu.pipeline_mode<synchronous>, transform_indices = @transform_1, window_bounds = array<i64: 32, 32>}, {pipeline_mode = #tpu.pipeline_mode<synchronous>, transform_indices = @transform_2, window_bounds = array<i64: 16, 32>}, {pipeline_mode = #tpu.pipeline_mode<synchronous>, transform_indices = @transform_3, window_bounds = array<i64: 1, 32>}, {pipeline_mode = #tpu.pipeline_mode<synchronous>, transform_indices = @transform_4, window_bounds = array<i64: 32, 32>}, {pipeline_mode = #tpu.pipeline_mode<synchronous>, transform_indices = @transform_5, window_bounds = array<i64: 1, 32>}, {pipeline_mode = #tpu.pipeline_mode<synchronous>, transform_indices = @transform_6, window_bounds = array<i64: 2, 32, 96>}, {pipeline_mode = #tpu.pipeline_mode<synchronous>, transform_indices = @transform_7, window_bounds = array<i64: 2, 1, 96>}, {pipeline_mode = #tpu.pipeline_mode<synchronous>, transform_indices = @transform_8, window_bounds = array<i64: 2, 32, 32>}, {pipeline_mode = #tpu.pipeline_mode<synchronous>, transform_indices = @transform_9, window_bounds = array<i64: 2, 1, 32>}, {pipeline_mode = #tpu.pipeline_mode<synchronous>, transform_indices = @transform_10, window_bounds = array<i64: 2, 1, 32>}, {pipeline_mode = #tpu.pipeline_mode<synchronous>, transform_indices = @transform_11, window_bounds = array<i64: 2, 1, 32>}, {pipeline_mode = #tpu.pipeline_mode<synchronous>, transform_indices = @transform_12, window_bounds = array<i64: 2, 32, 32>}, {pipeline_mode = #tpu.pipeline_mode<synchronous>, transform_indices = @transform_13, window_bounds = array<i64: 2, 1, 32>}, {pipeline_mode = #tpu.pipeline_mode<synchronous>, transform_indices = @transform_14, window_bounds = array<i64: 2, 32, 32>}, {pipeline_mode = #tpu.pipeline_mode<synchronous>, transform_indices = @transform_15, window_bounds = array<i64: 2, 1, 32>}, {pipeline_mode = #tpu.pipeline_mode<synchronous>, transform_indices = @transform_16, window_bounds = array<i64: 2, 1, 32>}, {pipeline_mode = #tpu.pipeline_mode<synchronous>, transform_indices = @transform_17, window_bounds = array<i64: 2, 1, 32>}, {transform_indices = @transform_18, window_bounds = array<i64: 1, 32, 32>}]} {
    %c0 = arith.constant 0 : index
    %c0_0 = arith.constant 0 : index
    %c0_1 = arith.constant 0 : index
    %0 = vector.load %arg1[%c0, %c0_0, %c0_1] : memref<1x32x16xf32, #tpu.memory_space<vmem>>, vector<1x32x16xf32>
    %1 = vector.shape_cast %0 : vector<1x32x16xf32> to vector<32x16xf32>
    %2 = arith.truncf %1 : vector<32x16xf32> to vector<32x16xbf16>
    %c0_2 = arith.constant 0 : index
    %c0_3 = arith.constant 0 : index
    %3 = vector.load %arg3[%c0_2, %c0_3] : memref<16x32xbf16, #tpu.memory_space<vmem>>, vector<16x32xbf16>
    %cst = arith.constant dense<0.000000e+00> : vector<32x32xf32>
    %4 = tpu.matmul %2, %3, %cst {dimension_numbers = #tpu.dot_dimension_numbers<[1], [0], [0], [1], [0, 0, 1, 1], [], []>} : vector<32x16xbf16>, vector<16x32xbf16>, vector<32x32xf32> -> vector<32x32xf32>
    %c0_4 = arith.constant 0 : index
    %c0_5 = arith.constant 0 : index
    %5 = vector.load %arg4[%c0_4, %c0_5] : memref<1x32xf32, #tpu.memory_space<vmem>>, vector<1x32xf32>
    %6 = vector.broadcast %5 : vector<1x32xf32> to vector<32x32xf32>
    %7 = arith.addf %4, %6 : vector<32x32xf32>
    %cst_6 = arith.constant 0.000000e+00 : f32
    %8 = vector.broadcast %cst_6 : f32 to vector<32x32xf32>
    %9 = arith.cmpf oge, %7, %8 : vector<32x32xf32>
    %cst_7 = arith.constant 1.000000e-01 : f32
    %10 = vector.broadcast %cst_7 : f32 to vector<32x32xf32>
    %11 = arith.mulf %10, %7 : vector<32x32xf32>
    %12 = arith.select %9, %7, %11 : vector<32x32xi1>, vector<32x32xf32>
    %13 = arith.truncf %12 : vector<32x32xf32> to vector<32x32xbf16>
    %c0_8 = arith.constant 0 : index
    %c0_9 = arith.constant 0 : index
    %14 = vector.load %arg5[%c0_8, %c0_9] : memref<32x32xbf16, #tpu.memory_space<vmem>>, vector<32x32xbf16>
    %cst_10 = arith.constant dense<0.000000e+00> : vector<32x32xf32>
    %15 = tpu.matmul %13, %14, %cst_10 {dimension_numbers = #tpu.dot_dimension_numbers<[1], [0], [0], [1], [0, 0, 1, 1], [], []>} : vector<32x32xbf16>, vector<32x32xbf16>, vector<32x32xf32> -> vector<32x32xf32>
    %c0_11 = arith.constant 0 : index
    %c0_12 = arith.constant 0 : index
    %16 = vector.load %arg6[%c0_11, %c0_12] : memref<1x32xf32, #tpu.memory_space<vmem>>, vector<1x32xf32>
    %17 = vector.broadcast %16 : vector<1x32xf32> to vector<32x32xf32>
    %18 = arith.addf %15, %17 : vector<32x32xf32>
    %cst_13 = arith.constant 0.000000e+00 : f32
    %19 = vector.broadcast %cst_13 : f32 to vector<32x32xf32>
    %20 = arith.cmpf oge, %18, %19 : vector<32x32xf32>
    %cst_14 = arith.constant 1.000000e-01 : f32
    %21 = vector.broadcast %cst_14 : f32 to vector<32x32xf32>
    %22 = arith.mulf %21, %18 : vector<32x32xf32>
    %23 = arith.select %20, %18, %22 : vector<32x32xi1>, vector<32x32xf32>
    %c0_15 = arith.constant 0 : index
    %c0_16 = arith.constant 0 : index
    %24 = vector.load %arg2[%c0_15, %c0_16] : memref<32x32xf32, #tpu.memory_space<vmem>>, vector<32x32xf32>
    %25 = arith.addf %23, %24 : vector<32x32xf32>
    %26 = arith.truncf %25 : vector<32x32xf32> to vector<32x32xbf16>
    %c0_17 = arith.constant 0 : index
    %c0_18 = arith.constant 0 : index
    %c0_19 = arith.constant 0 : index
    %27 = vector.load %arg7[%c0_17, %c0_18, %c0_19] : memref<2x32x96xbf16, #tpu.memory_space<vmem>>, vector<1x32x96xbf16>
    %28 = vector.shape_cast %27 : vector<1x32x96xbf16> to vector<32x96xbf16>
    %cst_20 = arith.constant dense<0.000000e+00> : vector<32x96xf32>
    %29 = tpu.matmul %26, %28, %cst_20 {dimension_numbers = #tpu.dot_dimension_numbers<[1], [0], [0], [1], [0, 0, 1, 1], [], []>} : vector<32x32xbf16>, vector<32x96xbf16>, vector<32x96xf32> -> vector<32x96xf32>
    %c0_21 = arith.constant 0 : index
    %c0_22 = arith.constant 0 : index
    %c0_23 = arith.constant 0 : index
    %30 = vector.load %arg8[%c0_21, %c0_22, %c0_23] : memref<2x1x96xf32, #tpu.memory_space<vmem>>, vector<1x1x96xf32>
    %31 = vector.shape_cast %30 : vector<1x1x96xf32> to vector<1x96xf32>
    %32 = vector.broadcast %31 : vector<1x96xf32> to vector<32x96xf32>
    %33 = arith.addf %29, %32 : vector<32x96xf32>
    %34 = arith.truncf %33 : vector<32x96xf32> to vector<32x96xbf16>
    %35 = vector.extract_strided_slice %34 {offsets = [0, 0], sizes = [32, 8], strides = [1, 1]} : vector<32x96xbf16> to vector<32x8xbf16>
    %36 = vector.extract_strided_slice %34 {offsets = [0, 8], sizes = [32, 8], strides = [1, 1]} : vector<32x96xbf16> to vector<32x8xbf16>
    %37 = vector.extract_strided_slice %34 {offsets = [0, 16], sizes = [32, 8], strides = [1, 1]} : vector<32x96xbf16> to vector<32x8xbf16>
    %38 = vector.extract_strided_slice %34 {offsets = [0, 24], sizes = [32, 8], strides = [1, 1]} : vector<32x96xbf16> to vector<32x8xbf16>
    %39 = vector.shape_cast %35 : vector<32x8xbf16> to vector<1x32x8xbf16>
    %40 = vector.shape_cast %36 : vector<32x8xbf16> to vector<1x32x8xbf16>
    %41 = vector.shape_cast %37 : vector<32x8xbf16> to vector<1x32x8xbf16>
    %42 = vector.shape_cast %38 : vector<32x8xbf16> to vector<1x32x8xbf16>
    %43 = tpu.concatenate %39, %40, %41, %42 in 0 : vector<1x32x8xbf16>, vector<1x32x8xbf16>, vector<1x32x8xbf16>, vector<1x32x8xbf16> -> vector<4x32x8xbf16>
    %44 = vector.extract_strided_slice %34 {offsets = [0, 32], sizes = [32, 8], strides = [1, 1]} : vector<32x96xbf16> to vector<32x8xbf16>
    %45 = vector.extract_strided_slice %34 {offsets = [0, 40], sizes = [32, 8], strides = [1, 1]} : vector<32x96xbf16> to vector<32x8xbf16>
    %46 = vector.extract_strided_slice %34 {offsets = [0, 48], sizes = [32, 8], strides = [1, 1]} : vector<32x96xbf16> to vector<32x8xbf16>
    %47 = vector.extract_strided_slice %34 {offsets = [0, 56], sizes = [32, 8], strides = [1, 1]} : vector<32x96xbf16> to vector<32x8xbf16>
    %48 = vector.shape_cast %44 : vector<32x8xbf16> to vector<1x32x8xbf16>
    %49 = vector.shape_cast %45 : vector<32x8xbf16> to vector<1x32x8xbf16>
    %50 = vector.shape_cast %46 : vector<32x8xbf16> to vector<1x32x8xbf16>
    %51 = vector.shape_cast %47 : vector<32x8xbf16> to vector<1x32x8xbf16>
    %52 = tpu.concatenate %48, %49, %50, %51 in 0 : vector<1x32x8xbf16>, vector<1x32x8xbf16>, vector<1x32x8xbf16>, vector<1x32x8xbf16> -> vector<4x32x8xbf16>
    %53 = vector.extract_strided_slice %34 {offsets = [0, 64], sizes = [32, 8], strides = [1, 1]} : vector<32x96xbf16> to vector<32x8xbf16>
    %54 = vector.extract_strided_slice %34 {offsets = [0, 72], sizes = [32, 8], strides = [1, 1]} : vector<32x96xbf16> to vector<32x8xbf16>
    %55 = vector.extract_strided_slice %34 {offsets = [0, 80], sizes = [32, 8], strides = [1, 1]} : vector<32x96xbf16> to vector<32x8xbf16>
    %56 = vector.extract_strided_slice %34 {offsets = [0, 88], sizes = [32, 8], strides = [1, 1]} : vector<32x96xbf16> to vector<32x8xbf16>
    %57 = vector.shape_cast %53 : vector<32x8xbf16> to vector<1x32x8xbf16>
    %58 = vector.shape_cast %54 : vector<32x8xbf16> to vector<1x32x8xbf16>
    %59 = vector.shape_cast %55 : vector<32x8xbf16> to vector<1x32x8xbf16>
    %60 = vector.shape_cast %56 : vector<32x8xbf16> to vector<1x32x8xbf16>
    %61 = tpu.concatenate %57, %58, %59, %60 in 0 : vector<1x32x8xbf16>, vector<1x32x8xbf16>, vector<1x32x8xbf16>, vector<1x32x8xbf16> -> vector<4x32x8xbf16>
    "tpu.trace_start"() <{level = 10 : i32, message = "hqd,hkd->hqk"}> : () -> ()
    %cst_24 = arith.constant dense<0.000000e+00> : vector<4x32x32xf32>
    %62 = tpu.matmul %43, %52, %cst_24 {dimension_numbers = #tpu.dot_dimension_numbers<[2], [2], [1], [1], [0, 0, 0, 1, 1, 1], [0], [0]>} : vector<4x32x8xbf16>, vector<4x32x8xbf16>, vector<4x32x32xf32> -> vector<4x32x32xf32>
    "tpu.trace_stop"() : () -> ()
    %cst_25 = arith.constant 0.353553385 : f32
    %63 = vector.broadcast %cst_25 : f32 to vector<4x32x32xf32>
    %64 = arith.mulf %62, %63 : vector<4x32x32xf32>
    %cst_26 = arith.constant dense<0xFF800000> : vector<4x32xf32>
    %65 = vector.multi_reduction <maximumf>, %64, %cst_26 [2] : vector<4x32x32xf32> to vector<4x32xf32>
    %66 = vector.shape_cast %65 : vector<4x32xf32> to vector<4x32x1xf32>
    %67 = vector.broadcast %66 : vector<4x32x1xf32> to vector<4x32x32xf32>
    %68 = arith.subf %64, %67 : vector<4x32x32xf32>
    %69 = math.exp %68 : vector<4x32x32xf32>
    %cst_27 = arith.constant dense<0.000000e+00> : vector<4x32xf32>
    %70 = vector.multi_reduction <add>, %69, %cst_27 [2] : vector<4x32x32xf32> to vector<4x32xf32>
    %71 = vector.shape_cast %70 : vector<4x32xf32> to vector<4x32x1xf32>
    %72 = tpu.reciprocal %71 {approx = true} : vector<4x32x1xf32> -> vector<4x32x1xf32>
    %73 = vector.broadcast %72 : vector<4x32x1xf32> to vector<4x32x32xf32>
    %74 = arith.mulf %69, %73 : vector<4x32x32xf32>
    %75 = arith.truncf %74 : vector<4x32x32xf32> to vector<4x32x32xbf16>
    "tpu.trace_start"() <{level = 10 : i32, message = "hqk,hkd->hqd"}> : () -> ()
    %cst_28 = arith.constant dense<0.000000e+00> : vector<4x32x8xf32>
    %76 = tpu.matmul %75, %61, %cst_28 {dimension_numbers = #tpu.dot_dimension_numbers<[2], [1], [1], [2], [0, 0, 0, 1, 1, 2], [0], [0]>} : vector<4x32x32xbf16>, vector<4x32x8xbf16>, vector<4x32x8xf32> -> vector<4x32x8xf32>
    "tpu.trace_stop"() : () -> ()
    %77 = vector.extract_strided_slice %76 {offsets = [0, 0, 0], sizes = [1, 32, 8], strides = [1, 1, 1]} : vector<4x32x8xf32> to vector<1x32x8xf32>
    %78 = vector.shape_cast %77 : vector<1x32x8xf32> to vector<32x8xf32>
    %79 = vector.extract_strided_slice %76 {offsets = [1, 0, 0], sizes = [1, 32, 8], strides = [1, 1, 1]} : vector<4x32x8xf32> to vector<1x32x8xf32>
    %80 = vector.shape_cast %79 : vector<1x32x8xf32> to vector<32x8xf32>
    %81 = vector.extract_strided_slice %76 {offsets = [2, 0, 0], sizes = [1, 32, 8], strides = [1, 1, 1]} : vector<4x32x8xf32> to vector<1x32x8xf32>
    %82 = vector.shape_cast %81 : vector<1x32x8xf32> to vector<32x8xf32>
    %83 = vector.extract_strided_slice %76 {offsets = [3, 0, 0], sizes = [1, 32, 8], strides = [1, 1, 1]} : vector<4x32x8xf32> to vector<1x32x8xf32>
    %84 = vector.shape_cast %83 : vector<1x32x8xf32> to vector<32x8xf32>
    %85 = tpu.concatenate %78, %80, %82, %84 in 1 : vector<32x8xf32>, vector<32x8xf32>, vector<32x8xf32>, vector<32x8xf32> -> vector<32x32xf32>
    %86 = arith.truncf %85 : vector<32x32xf32> to vector<32x32xbf16>
    %c0_29 = arith.constant 0 : index
    %c0_30 = arith.constant 0 : index
    %c0_31 = arith.constant 0 : index
    %87 = vector.load %arg9[%c0_29, %c0_30, %c0_31] : memref<2x32x32xbf16, #tpu.memory_space<vmem>>, vector<1x32x32xbf16>
    %88 = vector.shape_cast %87 : vector<1x32x32xbf16> to vector<32x32xbf16>
    %cst_32 = arith.constant dense<0.000000e+00> : vector<32x32xf32>
    %89 = tpu.matmul %86, %88, %cst_32 {dimension_numbers = #tpu.dot_dimension_numbers<[1], [0], [0], [1], [0, 0, 1, 1], [], []>} : vector<32x32xbf16>, vector<32x32xbf16>, vector<32x32xf32> -> vector<32x32xf32>
    %c0_33 = arith.constant 0 : index
    %c0_34 = arith.constant 0 : index
    %c0_35 = arith.constant 0 : index
    %90 = vector.load %arg10[%c0_33, %c0_34, %c0_35] : memref<2x1x32xf32, #tpu.memory_space<vmem>>, vector<1x1x32xf32>
    %91 = vector.shape_cast %90 : vector<1x1x32xf32> to vector<1x32xf32>
    %92 = vector.broadcast %91 : vector<1x32xf32> to vector<32x32xf32>
    %93 = arith.addf %89, %92 : vector<32x32xf32>
    %94 = arith.addf %25, %93 : vector<32x32xf32>
    %c0_36 = arith.constant 0 : index
    %c0_37 = arith.constant 0 : index
    %c0_38 = arith.constant 0 : index
    %95 = vector.load %arg11[%c0_36, %c0_37, %c0_38] : memref<2x1x32xf32, #tpu.memory_space<vmem>>, vector<1x1x32xf32>
    %96 = vector.shape_cast %95 : vector<1x1x32xf32> to vector<1x32xf32>
    %c0_39 = arith.constant 0 : index
    %c0_40 = arith.constant 0 : index
    %c0_41 = arith.constant 0 : index
    %97 = vector.load %arg12[%c0_39, %c0_40, %c0_41] : memref<2x1x32xf32, #tpu.memory_space<vmem>>, vector<1x1x32xf32>
    %98 = vector.shape_cast %97 : vector<1x1x32xf32> to vector<1x32xf32>
    %cst_42 = arith.constant dense<0.000000e+00> : vector<32xf32>
    %99 = vector.multi_reduction <add>, %94, %cst_42 [1] : vector<32x32xf32> to vector<32xf32>
    %100 = vector.shape_cast %99 : vector<32xf32> to vector<32x1xf32>
    %cst_43 = arith.constant 3.200000e+01 : f32
    %101 = vector.broadcast %cst_43 : f32 to vector<32x1xf32>
    %102 = arith.divf %100, %101 : vector<32x1xf32>
    %103 = vector.broadcast %102 : vector<32x1xf32> to vector<32x32xf32>
    %104 = arith.subf %94, %103 : vector<32x32xf32>
    %105 = arith.mulf %104, %104 : vector<32x32xf32>
    %cst_44 = arith.constant dense<0.000000e+00> : vector<32xf32>
    %106 = vector.multi_reduction <add>, %105, %cst_44 [1] : vector<32x32xf32> to vector<32xf32>
    %107 = vector.shape_cast %106 : vector<32xf32> to vector<32x1xf32>
    %cst_45 = arith.constant 3.200000e+01 : f32
    %108 = vector.broadcast %cst_45 : f32 to vector<32x1xf32>
    %109 = arith.divf %107, %108 : vector<32x1xf32>
    %110 = vector.broadcast %102 : vector<32x1xf32> to vector<32x32xf32>
    %111 = arith.subf %94, %110 : vector<32x32xf32>
    %cst_46 = arith.constant 9.99999974E-6 : f32
    %112 = vector.broadcast %cst_46 : f32 to vector<32x1xf32>
    %113 = arith.addf %109, %112 : vector<32x1xf32>
    %114 = math.rsqrt %113 : vector<32x1xf32>
    %115 = vector.broadcast %114 : vector<32x1xf32> to vector<32x32xf32>
    %116 = arith.mulf %111, %115 : vector<32x32xf32>
    %117 = vector.broadcast %96 : vector<1x32xf32> to vector<32x32xf32>
    %118 = arith.mulf %116, %117 : vector<32x32xf32>
    %119 = vector.broadcast %98 : vector<1x32xf32> to vector<32x32xf32>
    %120 = arith.addf %118, %119 : vector<32x32xf32>
    %121 = arith.truncf %120 : vector<32x32xf32> to vector<32x32xbf16>
    %c0_47 = arith.constant 0 : index
    %c0_48 = arith.constant 0 : index
    %c0_49 = arith.constant 0 : index
    %122 = vector.load %arg13[%c0_47, %c0_48, %c0_49] : memref<2x32x32xbf16, #tpu.memory_space<vmem>>, vector<1x32x32xbf16>
    %123 = vector.shape_cast %122 : vector<1x32x32xbf16> to vector<32x32xbf16>
    %cst_50 = arith.constant dense<0.000000e+00> : vector<32x32xf32>
    %124 = tpu.matmul %121, %123, %cst_50 {dimension_numbers = #tpu.dot_dimension_numbers<[1], [0], [0], [1], [0, 0, 1, 1], [], []>} : vector<32x32xbf16>, vector<32x32xbf16>, vector<32x32xf32> -> vector<32x32xf32>
    %c0_51 = arith.constant 0 : index
    %c0_52 = arith.constant 0 : index
    %c0_53 = arith.constant 0 : index
    %125 = vector.load %arg14[%c0_51, %c0_52, %c0_53] : memref<2x1x32xf32, #tpu.memory_space<vmem>>, vector<1x1x32xf32>
    %126 = vector.shape_cast %125 : vector<1x1x32xf32> to vector<1x32xf32>
    %127 = vector.broadcast %126 : vector<1x32xf32> to vector<32x32xf32>
    %128 = arith.addf %124, %127 : vector<32x32xf32>
    %cst_54 = arith.constant 0.000000e+00 : f32
    %129 = vector.broadcast %cst_54 : f32 to vector<32x32xf32>
    %130 = arith.maximumf %128, %129 : vector<32x32xf32>
    %131 = arith.truncf %130 : vector<32x32xf32> to vector<32x32xbf16>
    %c0_55 = arith.constant 0 : index
    %c0_56 = arith.constant 0 : index
    %c0_57 = arith.constant 0 : index
    %132 = vector.load %arg15[%c0_55, %c0_56, %c0_57] : memref<2x32x32xbf16, #tpu.memory_space<vmem>>, vector<1x32x32xbf16>
    %133 = vector.shape_cast %132 : vector<1x32x32xbf16> to vector<32x32xbf16>
    %cst_58 = arith.constant dense<0.000000e+00> : vector<32x32xf32>
    %134 = tpu.matmul %131, %133, %cst_58 {dimension_numbers = #tpu.dot_dimension_numbers<[1], [0], [0], [1], [0, 0, 1, 1], [], []>} : vector<32x32xbf16>, vector<32x32xbf16>, vector<32x32xf32> -> vector<32x32xf32>
    %c0_59 = arith.constant 0 : index
    %c0_60 = arith.constant 0 : index
    %c0_61 = arith.constant 0 : index
    %135 = vector.load %arg16[%c0_59, %c0_60, %c0_61] : memref<2x1x32xf32, #tpu.memory_space<vmem>>, vector<1x1x32xf32>
    %136 = vector.shape_cast %135 : vector<1x1x32xf32> to vector<1x32xf32>
    %137 = vector.broadcast %136 : vector<1x32xf32> to vector<32x32xf32>
    %138 = arith.addf %134, %137 : vector<32x32xf32>
    %139 = arith.addf %120, %138 : vector<32x32xf32>
    %c0_62 = arith.constant 0 : index
    %c0_63 = arith.constant 0 : index
    %c0_64 = arith.constant 0 : index
    %140 = vector.load %arg17[%c0_62, %c0_63, %c0_64] : memref<2x1x32xf32, #tpu.memory_space<vmem>>, vector<1x1x32xf32>
    %141 = vector.shape_cast %140 : vector<1x1x32xf32> to vector<1x32xf32>
    %c0_65 = arith.constant 0 : index
    %c0_66 = arith.constant 0 : index
    %c0_67 = arith.constant 0 : index
    %142 = vector.load %arg18[%c0_65, %c0_66, %c0_67] : memref<2x1x32xf32, #tpu.memory_space<vmem>>, vector<1x1x32xf32>
    %143 = vector.shape_cast %142 : vector<1x1x32xf32> to vector<1x32xf32>
    %cst_68 = arith.constant dense<0.000000e+00> : vector<32xf32>
    %144 = vector.multi_reduction <add>, %139, %cst_68 [1] : vector<32x32xf32> to vector<32xf32>
    %145 = vector.shape_cast %144 : vector<32xf32> to vector<32x1xf32>
    %cst_69 = arith.constant 3.200000e+01 : f32
    %146 = vector.broadcast %cst_69 : f32 to vector<32x1xf32>
    %147 = arith.divf %145, %146 : vector<32x1xf32>
    %148 = vector.broadcast %147 : vector<32x1xf32> to vector<32x32xf32>
    %149 = arith.subf %139, %148 : vector<32x32xf32>
    %150 = arith.mulf %149, %149 : vector<32x32xf32>
    %cst_70 = arith.constant dense<0.000000e+00> : vector<32xf32>
    %151 = vector.multi_reduction <add>, %150, %cst_70 [1] : vector<32x32xf32> to vector<32xf32>
    %152 = vector.shape_cast %151 : vector<32xf32> to vector<32x1xf32>
    %cst_71 = arith.constant 3.200000e+01 : f32
    %153 = vector.broadcast %cst_71 : f32 to vector<32x1xf32>
    %154 = arith.divf %152, %153 : vector<32x1xf32>
    %155 = vector.broadcast %147 : vector<32x1xf32> to vector<32x32xf32>
    %156 = arith.subf %139, %155 : vector<32x32xf32>
    %cst_72 = arith.constant 9.99999974E-6 : f32
    %157 = vector.broadcast %cst_72 : f32 to vector<32x1xf32>
    %158 = arith.addf %154, %157 : vector<32x1xf32>
    %159 = math.rsqrt %158 : vector<32x1xf32>
    %160 = vector.broadcast %159 : vector<32x1xf32> to vector<32x32xf32>
    %161 = arith.mulf %156, %160 : vector<32x32xf32>
    %162 = vector.broadcast %141 : vector<1x32xf32> to vector<32x32xf32>
    %163 = arith.mulf %161, %162 : vector<32x32xf32>
    %164 = vector.broadcast %143 : vector<1x32xf32> to vector<32x32xf32>
    %165 = arith.addf %163, %164 : vector<32x32xf32>
    %166 = arith.truncf %165 : vector<32x32xf32> to vector<32x32xbf16>
    %c1 = arith.constant 1 : index
    %c0_73 = arith.constant 0 : index
    %c0_74 = arith.constant 0 : index
    %167 = vector.load %arg7[%c1, %c0_73, %c0_74] : memref<2x32x96xbf16, #tpu.memory_space<vmem>>, vector<1x32x96xbf16>
    %168 = vector.shape_cast %167 : vector<1x32x96xbf16> to vector<32x96xbf16>
    %cst_75 = arith.constant dense<0.000000e+00> : vector<32x96xf32>
    %169 = tpu.matmul %166, %168, %cst_75 {dimension_numbers = #tpu.dot_dimension_numbers<[1], [0], [0], [1], [0, 0, 1, 1], [], []>} : vector<32x32xbf16>, vector<32x96xbf16>, vector<32x96xf32> -> vector<32x96xf32>
    %c1_76 = arith.constant 1 : index
    %c0_77 = arith.constant 0 : index
    %c0_78 = arith.constant 0 : index
    %170 = vector.load %arg8[%c1_76, %c0_77, %c0_78] : memref<2x1x96xf32, #tpu.memory_space<vmem>>, vector<1x1x96xf32>
    %171 = vector.shape_cast %170 : vector<1x1x96xf32> to vector<1x96xf32>
    %172 = vector.broadcast %171 : vector<1x96xf32> to vector<32x96xf32>
    %173 = arith.addf %169, %172 : vector<32x96xf32>
    %174 = arith.truncf %173 : vector<32x96xf32> to vector<32x96xbf16>
    %175 = vector.extract_strided_slice %174 {offsets = [0, 0], sizes = [32, 8], strides = [1, 1]} : vector<32x96xbf16> to vector<32x8xbf16>
    %176 = vector.extract_strided_slice %174 {offsets = [0, 8], sizes = [32, 8], strides = [1, 1]} : vector<32x96xbf16> to vector<32x8xbf16>
    %177 = vector.extract_strided_slice %174 {offsets = [0, 16], sizes = [32, 8], strides = [1, 1]} : vector<32x96xbf16> to vector<32x8xbf16>
    %178 = vector.extract_strided_slice %174 {offsets = [0, 24], sizes = [32, 8], strides = [1, 1]} : vector<32x96xbf16> to vector<32x8xbf16>
    %179 = vector.shape_cast %175 : vector<32x8xbf16> to vector<1x32x8xbf16>
    %180 = vector.shape_cast %176 : vector<32x8xbf16> to vector<1x32x8xbf16>
    %181 = vector.shape_cast %177 : vector<32x8xbf16> to vector<1x32x8xbf16>
    %182 = vector.shape_cast %178 : vector<32x8xbf16> to vector<1x32x8xbf16>
    %183 = tpu.concatenate %179, %180, %181, %182 in 0 : vector<1x32x8xbf16>, vector<1x32x8xbf16>, vector<1x32x8xbf16>, vector<1x32x8xbf16> -> vector<4x32x8xbf16>
    %184 = vector.extract_strided_slice %174 {offsets = [0, 32], sizes = [32, 8], strides = [1, 1]} : vector<32x96xbf16> to vector<32x8xbf16>
    %185 = vector.extract_strided_slice %174 {offsets = [0, 40], sizes = [32, 8], strides = [1, 1]} : vector<32x96xbf16> to vector<32x8xbf16>
    %186 = vector.extract_strided_slice %174 {offsets = [0, 48], sizes = [32, 8], strides = [1, 1]} : vector<32x96xbf16> to vector<32x8xbf16>
    %187 = vector.extract_strided_slice %174 {offsets = [0, 56], sizes = [32, 8], strides = [1, 1]} : vector<32x96xbf16> to vector<32x8xbf16>
    %188 = vector.shape_cast %184 : vector<32x8xbf16> to vector<1x32x8xbf16>
    %189 = vector.shape_cast %185 : vector<32x8xbf16> to vector<1x32x8xbf16>
    %190 = vector.shape_cast %186 : vector<32x8xbf16> to vector<1x32x8xbf16>
    %191 = vector.shape_cast %187 : vector<32x8xbf16> to vector<1x32x8xbf16>
    %192 = tpu.concatenate %188, %189, %190, %191 in 0 : vector<1x32x8xbf16>, vector<1x32x8xbf16>, vector<1x32x8xbf16>, vector<1x32x8xbf16> -> vector<4x32x8xbf16>
    %193 = vector.extract_strided_slice %174 {offsets = [0, 64], sizes = [32, 8], strides = [1, 1]} : vector<32x96xbf16> to vector<32x8xbf16>
    %194 = vector.extract_strided_slice %174 {offsets = [0, 72], sizes = [32, 8], strides = [1, 1]} : vector<32x96xbf16> to vector<32x8xbf16>
    %195 = vector.extract_strided_slice %174 {offsets = [0, 80], sizes = [32, 8], strides = [1, 1]} : vector<32x96xbf16> to vector<32x8xbf16>
    %196 = vector.extract_strided_slice %174 {offsets = [0, 88], sizes = [32, 8], strides = [1, 1]} : vector<32x96xbf16> to vector<32x8xbf16>
    %197 = vector.shape_cast %193 : vector<32x8xbf16> to vector<1x32x8xbf16>
    %198 = vector.shape_cast %194 : vector<32x8xbf16> to vector<1x32x8xbf16>
    %199 = vector.shape_cast %195 : vector<32x8xbf16> to vector<1x32x8xbf16>
    %200 = vector.shape_cast %196 : vector<32x8xbf16> to vector<1x32x8xbf16>
    %201 = tpu.concatenate %197, %198, %199, %200 in 0 : vector<1x32x8xbf16>, vector<1x32x8xbf16>, vector<1x32x8xbf16>, vector<1x32x8xbf16> -> vector<4x32x8xbf16>
    "tpu.trace_start"() <{level = 10 : i32, message = "hqd,hkd->hqk"}> : () -> ()
    %cst_79 = arith.constant dense<0.000000e+00> : vector<4x32x32xf32>
    %202 = tpu.matmul %183, %192, %cst_79 {dimension_numbers = #tpu.dot_dimension_numbers<[2], [2], [1], [1], [0, 0, 0, 1, 1, 1], [0], [0]>} : vector<4x32x8xbf16>, vector<4x32x8xbf16>, vector<4x32x32xf32> -> vector<4x32x32xf32>
    "tpu.trace_stop"() : () -> ()
    %cst_80 = arith.constant 0.353553385 : f32
    %203 = vector.broadcast %cst_80 : f32 to vector<4x32x32xf32>
    %204 = arith.mulf %202, %203 : vector<4x32x32xf32>
    %cst_81 = arith.constant dense<0xFF800000> : vector<4x32xf32>
    %205 = vector.multi_reduction <maximumf>, %204, %cst_81 [2] : vector<4x32x32xf32> to vector<4x32xf32>
    %206 = vector.shape_cast %205 : vector<4x32xf32> to vector<4x32x1xf32>
    %207 = vector.broadcast %206 : vector<4x32x1xf32> to vector<4x32x32xf32>
    %208 = arith.subf %204, %207 : vector<4x32x32xf32>
    %209 = math.exp %208 : vector<4x32x32xf32>
    %cst_82 = arith.constant dense<0.000000e+00> : vector<4x32xf32>
    %210 = vector.multi_reduction <add>, %209, %cst_82 [2] : vector<4x32x32xf32> to vector<4x32xf32>
    %211 = vector.shape_cast %210 : vector<4x32xf32> to vector<4x32x1xf32>
    %212 = tpu.reciprocal %211 {approx = true} : vector<4x32x1xf32> -> vector<4x32x1xf32>
    %213 = vector.broadcast %212 : vector<4x32x1xf32> to vector<4x32x32xf32>
    %214 = arith.mulf %209, %213 : vector<4x32x32xf32>
    %215 = arith.truncf %214 : vector<4x32x32xf32> to vector<4x32x32xbf16>
    "tpu.trace_start"() <{level = 10 : i32, message = "hqk,hkd->hqd"}> : () -> ()
    %cst_83 = arith.constant dense<0.000000e+00> : vector<4x32x8xf32>
    %216 = tpu.matmul %215, %201, %cst_83 {dimension_numbers = #tpu.dot_dimension_numbers<[2], [1], [1], [2], [0, 0, 0, 1, 1, 2], [0], [0]>} : vector<4x32x32xbf16>, vector<4x32x8xbf16>, vector<4x32x8xf32> -> vector<4x32x8xf32>
    "tpu.trace_stop"() : () -> ()
    %217 = vector.extract_strided_slice %216 {offsets = [0, 0, 0], sizes = [1, 32, 8], strides = [1, 1, 1]} : vector<4x32x8xf32> to vector<1x32x8xf32>
    %218 = vector.shape_cast %217 : vector<1x32x8xf32> to vector<32x8xf32>
    %219 = vector.extract_strided_slice %216 {offsets = [1, 0, 0], sizes = [1, 32, 8], strides = [1, 1, 1]} : vector<4x32x8xf32> to vector<1x32x8xf32>
    %220 = vector.shape_cast %219 : vector<1x32x8xf32> to vector<32x8xf32>
    %221 = vector.extract_strided_slice %216 {offsets = [2, 0, 0], sizes = [1, 32, 8], strides = [1, 1, 1]} : vector<4x32x8xf32> to vector<1x32x8xf32>
    %222 = vector.shape_cast %221 : vector<1x32x8xf32> to vector<32x8xf32>
    %223 = vector.extract_strided_slice %216 {offsets = [3, 0, 0], sizes = [1, 32, 8], strides = [1, 1, 1]} : vector<4x32x8xf32> to vector<1x32x8xf32>
    %224 = vector.shape_cast %223 : vector<1x32x8xf32> to vector<32x8xf32>
    %225 = tpu.concatenate %218, %220, %222, %224 in 1 : vector<32x8xf32>, vector<32x8xf32>, vector<32x8xf32>, vector<32x8xf32> -> vector<32x32xf32>
    %226 = arith.truncf %225 : vector<32x32xf32> to vector<32x32xbf16>
    %c1_84 = arith.constant 1 : index
    %c0_85 = arith.constant 0 : index
    %c0_86 = arith.constant 0 : index
    %227 = vector.load %arg9[%c1_84, %c0_85, %c0_86] : memref<2x32x32xbf16, #tpu.memory_space<vmem>>, vector<1x32x32xbf16>
    %228 = vector.shape_cast %227 : vector<1x32x32xbf16> to vector<32x32xbf16>
    %cst_87 = arith.constant dense<0.000000e+00> : vector<32x32xf32>
    %229 = tpu.matmul %226, %228, %cst_87 {dimension_numbers = #tpu.dot_dimension_numbers<[1], [0], [0], [1], [0, 0, 1, 1], [], []>} : vector<32x32xbf16>, vector<32x32xbf16>, vector<32x32xf32> -> vector<32x32xf32>
    %c1_88 = arith.constant 1 : index
    %c0_89 = arith.constant 0 : index
    %c0_90 = arith.constant 0 : index
    %230 = vector.load %arg10[%c1_88, %c0_89, %c0_90] : memref<2x1x32xf32, #tpu.memory_space<vmem>>, vector<1x1x32xf32>
    %231 = vector.shape_cast %230 : vector<1x1x32xf32> to vector<1x32xf32>
    %232 = vector.broadcast %231 : vector<1x32xf32> to vector<32x32xf32>
    %233 = arith.addf %229, %232 : vector<32x32xf32>
    %234 = arith.addf %165, %233 : vector<32x32xf32>
    %c1_91 = arith.constant 1 : index
    %c0_92 = arith.constant 0 : index
    %c0_93 = arith.constant 0 : index
    %235 = vector.load %arg11[%c1_91, %c0_92, %c0_93] : memref<2x1x32xf32, #tpu.memory_space<vmem>>, vector<1x1x32xf32>
    %236 = vector.shape_cast %235 : vector<1x1x32xf32> to vector<1x32xf32>
    %c1_94 = arith.constant 1 : index
    %c0_95 = arith.constant 0 : index
    %c0_96 = arith.constant 0 : index
    %237 = vector.load %arg12[%c1_94, %c0_95, %c0_96] : memref<2x1x32xf32, #tpu.memory_space<vmem>>, vector<1x1x32xf32>
    %238 = vector.shape_cast %237 : vector<1x1x32xf32> to vector<1x32xf32>
    %cst_97 = arith.constant dense<0.000000e+00> : vector<32xf32>
    %239 = vector.multi_reduction <add>, %234, %cst_97 [1] : vector<32x32xf32> to vector<32xf32>
    %240 = vector.shape_cast %239 : vector<32xf32> to vector<32x1xf32>
    %cst_98 = arith.constant 3.200000e+01 : f32
    %241 = vector.broadcast %cst_98 : f32 to vector<32x1xf32>
    %242 = arith.divf %240, %241 : vector<32x1xf32>
    %243 = vector.broadcast %242 : vector<32x1xf32> to vector<32x32xf32>
    %244 = arith.subf %234, %243 : vector<32x32xf32>
    %245 = arith.mulf %244, %244 : vector<32x32xf32>
    %cst_99 = arith.constant dense<0.000000e+00> : vector<32xf32>
    %246 = vector.multi_reduction <add>, %245, %cst_99 [1] : vector<32x32xf32> to vector<32xf32>
    %247 = vector.shape_cast %246 : vector<32xf32> to vector<32x1xf32>
    %cst_100 = arith.constant 3.200000e+01 : f32
    %248 = vector.broadcast %cst_100 : f32 to vector<32x1xf32>
    %249 = arith.divf %247, %248 : vector<32x1xf32>
    %250 = vector.broadcast %242 : vector<32x1xf32> to vector<32x32xf32>
    %251 = arith.subf %234, %250 : vector<32x32xf32>
    %cst_101 = arith.constant 9.99999974E-6 : f32
    %252 = vector.broadcast %cst_101 : f32 to vector<32x1xf32>
    %253 = arith.addf %249, %252 : vector<32x1xf32>
    %254 = math.rsqrt %253 : vector<32x1xf32>
    %255 = vector.broadcast %254 : vector<32x1xf32> to vector<32x32xf32>
    %256 = arith.mulf %251, %255 : vector<32x32xf32>
    %257 = vector.broadcast %236 : vector<1x32xf32> to vector<32x32xf32>
    %258 = arith.mulf %256, %257 : vector<32x32xf32>
    %259 = vector.broadcast %238 : vector<1x32xf32> to vector<32x32xf32>
    %260 = arith.addf %258, %259 : vector<32x32xf32>
    %261 = arith.truncf %260 : vector<32x32xf32> to vector<32x32xbf16>
    %c1_102 = arith.constant 1 : index
    %c0_103 = arith.constant 0 : index
    %c0_104 = arith.constant 0 : index
    %262 = vector.load %arg13[%c1_102, %c0_103, %c0_104] : memref<2x32x32xbf16, #tpu.memory_space<vmem>>, vector<1x32x32xbf16>
    %263 = vector.shape_cast %262 : vector<1x32x32xbf16> to vector<32x32xbf16>
    %cst_105 = arith.constant dense<0.000000e+00> : vector<32x32xf32>
    %264 = tpu.matmul %261, %263, %cst_105 {dimension_numbers = #tpu.dot_dimension_numbers<[1], [0], [0], [1], [0, 0, 1, 1], [], []>} : vector<32x32xbf16>, vector<32x32xbf16>, vector<32x32xf32> -> vector<32x32xf32>
    %c1_106 = arith.constant 1 : index
    %c0_107 = arith.constant 0 : index
    %c0_108 = arith.constant 0 : index
    %265 = vector.load %arg14[%c1_106, %c0_107, %c0_108] : memref<2x1x32xf32, #tpu.memory_space<vmem>>, vector<1x1x32xf32>
    %266 = vector.shape_cast %265 : vector<1x1x32xf32> to vector<1x32xf32>
    %267 = vector.broadcast %266 : vector<1x32xf32> to vector<32x32xf32>
    %268 = arith.addf %264, %267 : vector<32x32xf32>
    %cst_109 = arith.constant 0.000000e+00 : f32
    %269 = vector.broadcast %cst_109 : f32 to vector<32x32xf32>
    %270 = arith.maximumf %268, %269 : vector<32x32xf32>
    %271 = arith.truncf %270 : vector<32x32xf32> to vector<32x32xbf16>
    %c1_110 = arith.constant 1 : index
    %c0_111 = arith.constant 0 : index
    %c0_112 = arith.constant 0 : index
    %272 = vector.load %arg15[%c1_110, %c0_111, %c0_112] : memref<2x32x32xbf16, #tpu.memory_space<vmem>>, vector<1x32x32xbf16>
    %273 = vector.shape_cast %272 : vector<1x32x32xbf16> to vector<32x32xbf16>
    %cst_113 = arith.constant dense<0.000000e+00> : vector<32x32xf32>
    %274 = tpu.matmul %271, %273, %cst_113 {dimension_numbers = #tpu.dot_dimension_numbers<[1], [0], [0], [1], [0, 0, 1, 1], [], []>} : vector<32x32xbf16>, vector<32x32xbf16>, vector<32x32xf32> -> vector<32x32xf32>
    %c1_114 = arith.constant 1 : index
    %c0_115 = arith.constant 0 : index
    %c0_116 = arith.constant 0 : index
    %275 = vector.load %arg16[%c1_114, %c0_115, %c0_116] : memref<2x1x32xf32, #tpu.memory_space<vmem>>, vector<1x1x32xf32>
    %276 = vector.shape_cast %275 : vector<1x1x32xf32> to vector<1x32xf32>
    %277 = vector.broadcast %276 : vector<1x32xf32> to vector<32x32xf32>
    %278 = arith.addf %274, %277 : vector<32x32xf32>
    %279 = arith.addf %260, %278 : vector<32x32xf32>
    %c1_117 = arith.constant 1 : index
    %c0_118 = arith.constant 0 : index
    %c0_119 = arith.constant 0 : index
    %280 = vector.load %arg17[%c1_117, %c0_118, %c0_119] : memref<2x1x32xf32, #tpu.memory_space<vmem>>, vector<1x1x32xf32>
    %281 = vector.shape_cast %280 : vector<1x1x32xf32> to vector<1x32xf32>
    %c1_120 = arith.constant 1 : index
    %c0_121 = arith.constant 0 : index
    %c0_122 = arith.constant 0 : index
    %282 = vector.load %arg18[%c1_120, %c0_121, %c0_122] : memref<2x1x32xf32, #tpu.memory_space<vmem>>, vector<1x1x32xf32>
    %283 = vector.shape_cast %282 : vector<1x1x32xf32> to vector<1x32xf32>
    %cst_123 = arith.constant dense<0.000000e+00> : vector<32xf32>
    %284 = vector.multi_reduction <add>, %279, %cst_123 [1] : vector<32x32xf32> to vector<32xf32>
    %285 = vector.shape_cast %284 : vector<32xf32> to vector<32x1xf32>
    %cst_124 = arith.constant 3.200000e+01 : f32
    %286 = vector.broadcast %cst_124 : f32 to vector<32x1xf32>
    %287 = arith.divf %285, %286 : vector<32x1xf32>
    %288 = vector.broadcast %287 : vector<32x1xf32> to vector<32x32xf32>
    %289 = arith.subf %279, %288 : vector<32x32xf32>
    %290 = arith.mulf %289, %289 : vector<32x32xf32>
    %cst_125 = arith.constant dense<0.000000e+00> : vector<32xf32>
    %291 = vector.multi_reduction <add>, %290, %cst_125 [1] : vector<32x32xf32> to vector<32xf32>
    %292 = vector.shape_cast %291 : vector<32xf32> to vector<32x1xf32>
    %cst_126 = arith.constant 3.200000e+01 : f32
    %293 = vector.broadcast %cst_126 : f32 to vector<32x1xf32>
    %294 = arith.divf %292, %293 : vector<32x1xf32>
    %295 = vector.broadcast %287 : vector<32x1xf32> to vector<32x32xf32>
    %296 = arith.subf %279, %295 : vector<32x32xf32>
    %cst_127 = arith.constant 9.99999974E-6 : f32
    %297 = vector.broadcast %cst_127 : f32 to vector<32x1xf32>
    %298 = arith.addf %294, %297 : vector<32x1xf32>
    %299 = math.rsqrt %298 : vector<32x1xf32>
    %300 = vector.broadcast %299 : vector<32x1xf32> to vector<32x32xf32>
    %301 = arith.mulf %296, %300 : vector<32x32xf32>
    %302 = vector.broadcast %281 : vector<1x32xf32> to vector<32x32xf32>
    %303 = arith.mulf %301, %302 : vector<32x32xf32>
    %304 = vector.broadcast %283 : vector<1x32xf32> to vector<32x32xf32>
    %305 = arith.addf %303, %304 : vector<32x32xf32>
    %c0_128 = arith.constant 0 : index
    %c0_129 = arith.constant 0 : index
    %c0_130 = arith.constant 0 : index
    %306 = vector.load %arg19[%c0_128, %c0_129, %c0_130] : memref<1x32x32xf32, #tpu.memory_space<vmem>>, vector<1x32x32xf32>
    %307 = vector.shape_cast %306 : vector<1x32x32xf32> to vector<32x32xf32>
    %308 = vector.shape_cast %305 : vector<32x32xf32> to vector<1x32x32xf32>
    tpu.vector_store %arg19[%c0_128, %c0_129, %c0_130], %308 {strides = array<i32>} : memref<1x32x32xf32, #tpu.memory_space<vmem>>, vector<1x32x32xf32>,
    return
  }
  func.func @transform_0(%arg0: i32) -> (i32, i32, i32) {
    %c0_i32 = arith.constant 0 : i32
    %c0_i32_0 = arith.constant 0 : i32
    %c0_i32_1 = arith.constant 0 : i32
    return %arg0, %c0_i32, %c0_i32_0 : i32, i32, i32
  }
  func.func @transform_1(%arg0: i32) -> (i32, i32) {
    %c0_i32 = arith.constant 0 : i32
    %c0_i32_0 = arith.constant 0 : i32
    %c0_i32_1 = arith.constant 0 : i32
    return %c0_i32, %c0_i32_0 : i32, i32
  }
  func.func @transform_2(%arg0: i32) -> (i32, i32) {
    %c0_i32 = arith.constant 0 : i32
    %c0_i32_0 = arith.constant 0 : i32
    %c0_i32_1 = arith.constant 0 : i32
    return %c0_i32, %c0_i32_0 : i32, i32
  }
  func.func @transform_3(%arg0: i32) -> (i32, i32) {
    %c0_i32 = arith.constant 0 : i32
    %c0_i32_0 = arith.constant 0 : i32
    %c0_i32_1 = arith.constant 0 : i32
    return %c0_i32, %c0_i32_0 : i32, i32
  }
  func.func @transform_4(%arg0: i32) -> (i32, i32) {
    %c0_i32 = arith.constant 0 : i32
    %c0_i32_0 = arith.constant 0 : i32
    %c0_i32_1 = arith.constant 0 : i32
    return %c0_i32, %c0_i32_0 : i32, i32
  }
  func.func @transform_5(%arg0: i32) -> (i32, i32) {
    %c0_i32 = arith.constant 0 : i32
    %c0_i32_0 = arith.constant 0 : i32
    %c0_i32_1 = arith.constant 0 : i32
    return %c0_i32, %c0_i32_0 : i32, i32
  }
  func.func @transform_6(%arg0: i32) -> (i32, i32, i32) {
    %c0_i32 = arith.constant 0 : i32
    %c0_i32_0 = arith.constant 0 : i32
    %c0_i32_1 = arith.constant 0 : i32
    %c0_i32_2 = arith.constant 0 : i32
    return %c0_i32, %c0_i32_0, %c0_i32_1 : i32, i32, i32
  }
  func.func @transform_7(%arg0: i32) -> (i32, i32, i32) {
    %c0_i32 = arith.constant 0 : i32
    %c0_i32_0 = arith.constant 0 : i32
    %c0_i32_1 = arith.constant 0 : i32
    %c0_i32_2 = arith.constant 0 : i32
    return %c0_i32, %c0_i32_0, %c0_i32_1 : i32, i32, i32
  }
  func.func @transform_8(%arg0: i32) -> (i32, i32, i32) {
    %c0_i32 = arith.constant 0 : i32
    %c0_i32_0 = arith.constant 0 : i32
    %c0_i32_1 = arith.constant 0 : i32
    %c0_i32_2 = arith.constant 0 : i32
    return %c0_i32, %c0_i32_0, %c0_i32_1 : i32, i32, i32
  }
  func.func @transform_9(%arg0: i32) -> (i32, i32, i32) {
    %c0_i32 = arith.constant 0 : i32
    %c0_i32_0 = arith.constant 0 : i32
    %c0_i32_1 = arith.constant 0 : i32
    %c0_i32_2 = arith.constant 0 : i32
    return %c0_i32, %c0_i32_0, %c0_i32_1 : i32, i32, i32
  }
  func.func @transform_10(%arg0: i32) -> (i32, i32, i32) {
    %c0_i32 = arith.constant 0 : i32
    %c0_i32_0 = arith.constant 0 : i32
    %c0_i32_1 = arith.constant 0 : i32
    %c0_i32_2 = arith.constant 0 : i32
    return %c0_i32, %c0_i32_0, %c0_i32_1 : i32, i32, i32
  }
  func.func @transform_11(%arg0: i32) -> (i32, i32, i32) {
    %c0_i32 = arith.constant 0 : i32
    %c0_i32_0 = arith.constant 0 : i32
    %c0_i32_1 = arith.constant 0 : i32
    %c0_i32_2 = arith.constant 0 : i32
    return %c0_i32, %c0_i32_0, %c0_i32_1 : i32, i32, i32
  }
  func.func @transform_12(%arg0: i32) -> (i32, i32, i32) {
    %c0_i32 = arith.constant 0 : i32
    %c0_i32_0 = arith.constant 0 : i32
    %c0_i32_1 = arith.constant 0 : i32
    %c0_i32_2 = arith.constant 0 : i32
    return %c0_i32, %c0_i32_0, %c0_i32_1 : i32, i32, i32
  }
  func.func @transform_13(%arg0: i32) -> (i32, i32, i32) {
    %c0_i32 = arith.constant 0 : i32
    %c0_i32_0 = arith.constant 0 : i32
    %c0_i32_1 = arith.constant 0 : i32
    %c0_i32_2 = arith.constant 0 : i32
    return %c0_i32, %c0_i32_0, %c0_i32_1 : i32, i32, i32
  }
  func.func @transform_14(%arg0: i32) -> (i32, i32, i32) {
    %c0_i32 = arith.constant 0 : i32
    %c0_i32_0 = arith.constant 0 : i32
    %c0_i32_1 = arith.constant 0 : i32
    %c0_i32_2 = arith.constant 0 : i32
    return %c0_i32, %c0_i32_0, %c0_i32_1 : i32, i32, i32
  }
  func.func @transform_15(%arg0: i32) -> (i32, i32, i32) {
    %c0_i32 = arith.constant 0 : i32
    %c0_i32_0 = arith.constant 0 : i32
    %c0_i32_1 = arith.constant 0 : i32
    %c0_i32_2 = arith.constant 0 : i32
    return %c0_i32, %c0_i32_0, %c0_i32_1 : i32, i32, i32
  }
  func.func @transform_16(%arg0: i32) -> (i32, i32, i32) {
    %c0_i32 = arith.constant 0 : i32
    %c0_i32_0 = arith.constant 0 : i32
    %c0_i32_1 = arith.constant 0 : i32
    %c0_i32_2 = arith.constant 0 : i32
    return %c0_i32, %c0_i32_0, %c0_i32_1 : i32, i32, i32
  }
  func.func @transform_17(%arg0: i32) -> (i32, i32, i32) {
    %c0_i32 = arith.constant 0 : i32
    %c0_i32_0 = arith.constant 0 : i32
    %c0_i32_1 = arith.constant 0 : i32
    %c0_i32_2 = arith.constant 0 : i32
    return %c0_i32, %c0_i32_0, %c0_i32_1 : i32, i32, i32
  }
  func.func @transform_18(%arg0: i32) -> (i32, i32, i32) {
    %c0_i32 = arith.constant 0 : i32
    %c0_i32_0 = arith.constant 0 : i32
    %c0_i32_1 = arith.constant 0 : i32
    return %arg0, %c0_i32, %c0_i32_0 : i32, i32, i32
  }
}

</mosaic_0001>

<llo_original>
// kernel: trading_bert_forward.1
$region0: #{trading_bert_forward.1}
  #allocation0 [shape = 'u32[]', space=smem, size = 0x4, offset = 0x4, fixed_abs, tag = 'smem constant byte address 0x4 - core index']
  #allocation1 [shape = 'u32[144,128]{1,0:T(1,128)}', space=vmem, size = 0x12000, scoped, tag = 'internal scratch']
  %s0 = inlined_call_operand.vmem [shape: f32[2,32,16], index: 0, kind: input, shape index: {}]
  %s1 = inlined_call_operand.vmem [shape: f32[32,32], index: 1, kind: input, shape index: {}]
  %s2 = inlined_call_operand.vmem [shape: bf16[16,32], index: 2, kind: input, shape index: {}]
  %s3 = inlined_call_operand.vmem [shape: f32[1,32], index: 3, kind: input, shape index: {}]
  %s4 = inlined_call_operand.vmem [shape: bf16[32,32], index: 4, kind: input, shape index: {}]
  %s5 = inlined_call_operand.vmem [shape: f32[1,32], index: 5, kind: input, shape index: {}]
  %s6 = inlined_call_operand.vmem [shape: bf16[2,32,96], index: 6, kind: input, shape index: {}]
  %s7 = inlined_call_operand.vmem [shape: f32[2,1,96], index: 7, kind: input, shape index: {}]
  %s8 = inlined_call_operand.vmem [shape: bf16[2,32,32], index: 8, kind: input, shape index: {}]
  %s9 = inlined_call_operand.vmem [shape: f32[2,1,32], index: 9, kind: input, shape index: {}]
  %s10 = inlined_call_operand.vmem [shape: f32[2,1,32], index: 10, kind: input, shape index: {}]
  %s11 = inlined_call_operand.vmem [shape: f32[2,1,32], index: 11, kind: input, shape index: {}]
  %s12 = inlined_call_operand.vmem [shape: bf16[2,32,32], index: 12, kind: input, shape index: {}]
  %s13 = inlined_call_operand.vmem [shape: f32[2,1,32], index: 13, kind: input, shape index: {}]
  %s14 = inlined_call_operand.vmem [shape: bf16[2,32,32], index: 14, kind: input, shape index: {}]
  %s15 = inlined_call_operand.vmem [shape: f32[2,1,32], index: 15, kind: input, shape index: {}]
  %s16 = inlined_call_operand.vmem [shape: f32[2,1,32], index: 16, kind: input, shape index: {}]
  %s17 = inlined_call_operand.vmem [shape: f32[2,1,32], index: 17, kind: input, shape index: {}]
  %s18 = inlined_call_operand.hbm [shape: f32[2,32,32], index: 18, kind: output, shape index: {}]
  %s19 = sld [smem:[#allocation0]]
  $region105: #{trading_bert_forward.1} parent=0
    _
  %s21 = ssub.s32 1, %s19
  %s22 = scalar_select 0, %s21, %s19
  $region1: #{trading_bert_forward.1} parent=0
    #allocation2 [shape = 'u8[32768]{0}', space=vmem, size = 0x8000, scoped, tag = 'output window, operand 0']
    #allocation3 [shape = 's32[2]{0}', space=sflag, size = 0x8, scoped, tag = 'scoped memory for trading_bert_forward.1']
    %23 = vsyncpa [#allocation3], 0
    %s24 = scalar_lea.sflag [#allocation3], 1
    %25 = vsyncpa %s24, 0
    loop: start=0, step=1, limit=4
    $region2: #{trading_bert_forward.1} parent=1 // loop_pre_header
      _
    $region3: #{trading_bert_forward.1} parent=1 // loop_header
      %s27 = sphi 0, %s31
      %p28 = scmp.ge.s32.totalorder %s27, 4
      %s37 = sphi 0, %s39
      %s40 = sphi 0, %s37
      %s41 = sphi 0, %s40
      %s57 = sphi 0, %s41
      %s61 = sphi 0, %s61
      %s63 = sphi 0, %s61
      %s64 = sphi 0, %s63
      %s78 = sphi 0, %s64
      %s82 = sphi 0, %s82
      %s84 = sphi 0, %s82
      %s85 = sphi 0, %s84
      %s99 = sphi 0, %s85
      %s103 = sphi 0, %s103
      %s105 = sphi 0, %s103
      %s106 = sphi 0, %s105
      %s120 = sphi 0, %s106
      %s124 = sphi 0, %s124
      %s126 = sphi 0, %s124
      %s127 = sphi 0, %s126
      %s141 = sphi 0, %s127
      %s145 = sphi 0, %s145
      %s147 = sphi 0, %s145
      %s148 = sphi 0, %s147
      %s162 = sphi 0, %s148
      %s166 = sphi 0, %s166
      %s168 = sphi 0, %s166
      %s169 = sphi 0, %s168
      %s183 = sphi 0, %s169
      %s187 = sphi 0, %s187
      %s189 = sphi 0, %s187
      %s190 = sphi 0, %s189
      %s204 = sphi 0, %s190
      %s208 = sphi 0, %s208
      %s210 = sphi 0, %s208
      %s211 = sphi 0, %s210
      %s225 = sphi 0, %s211
      %s229 = sphi 0, %s229
      %s231 = sphi 0, %s229
      %s232 = sphi 0, %s231
      %s246 = sphi 0, %s232
      %s250 = sphi 0, %s250
      %s252 = sphi 0, %s250
      %s253 = sphi 0, %s252
      %s267 = sphi 0, %s253
      %s271 = sphi 0, %s271
      %s273 = sphi 0, %s271
      %s274 = sphi 0, %s273
      %s288 = sphi 0, %s274
      %s292 = sphi 0, %s292
      %s294 = sphi 0, %s292
      %s295 = sphi 0, %s294
      %s309 = sphi 0, %s295
      %s313 = sphi 0, %s313
      %s315 = sphi 0, %s313
      %s316 = sphi 0, %s315
      %s330 = sphi 0, %s316
      %s334 = sphi 0, %s334
      %s336 = sphi 0, %s334
      %s337 = sphi 0, %s336
      %s351 = sphi 0, %s337
      %s355 = sphi 0, %s355
      %s357 = sphi 0, %s355
      %s358 = sphi 0, %s357
      %s372 = sphi 0, %s358
      %s376 = sphi 0, %s376
      %s378 = sphi 0, %s376
      %s379 = sphi 0, %s378
      %s393 = sphi 0, %s379
      %s397 = sphi 0, %s397
      %s399 = sphi 0, %s397
      %s400 = sphi 0, %s399
      %s414 = sphi 0, %s400
      %s420 = sphi 0, %s422
      %s423 = sphi 0, %s420
      %s424 = sphi 0, %s423
      %s440 = sphi 0, %s424
    $region4: #{trading_bert_forward.1} parent=1 // loop_header_branch
      %30 = sbr.rel (%p28) target = $region8
    $region5: #{trading_bert_forward.1} parent=1 // loop_body
      %s32 = ssub.s32 %s27, 1
      %s33 = ssub.s32 %s27, 2
      %s34 = sadd.s32 %s27, 1
      %s35 = ssub.s32 %s27, %s34
      %p36 = scmp.eq.s32.totalorder %s35, 0
      %s38 = sadd.s32 %s37, 1
      %s39 = scalar_select %p36, %s37, %s38
      %p42 = pneg %p36
      %p43 = scmp.eq.s32.totalorder %s27, 1
      %p44 = por %p42, %p43
      %p45 = scmp.ne.s32.totalorder %s37, %s40
      %p46 = scmp.eq.s32.totalorder %s27, 0
      %p47 = por %p45, %p46
      %p48 = scmp.ne.s32.totalorder %s37, %s40
      %p49 = scmp.eq.s32.totalorder %s32, 1
      %p50 = por %p48, %p49
      %p51 = scmp.ne.s32.totalorder %s40, %s41
      %p52 = scmp.eq.s32.totalorder %s32, 0
      %p53 = por %p51, %p52
      %p54 = scmp.ne.s32.totalorder %s40, %s41
      %p55 = scmp.eq.s32.totalorder %s33, 1
      %p56 = por %p54, %p55
      %p58 = scmp.ne.s32.totalorder %s41, %s57
      %p59 = scmp.eq.s32.totalorder %s33, 0
      %p60 = por %p58, %p59
      %s62 = sadd.s32 %s61, 1
      %p65 = scmp.eq.s32.totalorder %s27, 1
      %p66 = scmp.ne.s32.totalorder %s61, %s63
      %p67 = scmp.eq.s32.totalorder %s27, 0
      %p68 = por %p66, %p67
      %p69 = scmp.ne.s32.totalorder %s61, %s63
      %p70 = scmp.eq.s32.totalorder %s32, 1
      %p71 = por %p69, %p70
      %p72 = scmp.ne.s32.totalorder %s63, %s64
      %p73 = scmp.eq.s32.totalorder %s32, 0
      %p74 = por %p72, %p73
      %p75 = scmp.ne.s32.totalorder %s63, %s64
      %p76 = scmp.eq.s32.totalorder %s33, 1
      %p77 = por %p75, %p76
      %p79 = scmp.ne.s32.totalorder %s64, %s78
      %p80 = scmp.eq.s32.totalorder %s33, 0
      %p81 = por %p79, %p80
      %s83 = sadd.s32 %s82, 1
      %p86 = scmp.eq.s32.totalorder %s27, 1
      %p87 = scmp.ne.s32.totalorder %s82, %s84
      %p88 = scmp.eq.s32.totalorder %s27, 0
      %p89 = por %p87, %p88
      %p90 = scmp.ne.s32.totalorder %s82, %s84
      %p91 = scmp.eq.s32.totalorder %s32, 1
      %p92 = por %p90, %p91
      %p93 = scmp.ne.s32.totalorder %s84, %s85
      %p94 = scmp.eq.s32.totalorder %s32, 0
      %p95 = por %p93, %p94
      %p96 = scmp.ne.s32.totalorder %s84, %s85
      %p97 = scmp.eq.s32.totalorder %s33, 1
      %p98 = por %p96, %p97
      %p100 = scmp.ne.s32.totalorder %s85, %s99
      %p101 = scmp.eq.s32.totalorder %s33, 0
      %p102 = por %p100, %p101
      %s104 = sadd.s32 %s103, 1
      %p107 = scmp.eq.s32.totalorder %s27, 1
      %p108 = scmp.ne.s32.totalorder %s103, %s105
      %p109 = scmp.eq.s32.totalorder %s27, 0
      %p110 = por %p108, %p109
      %p111 = scmp.ne.s32.totalorder %s103, %s105
      %p112 = scmp.eq.s32.totalorder %s32, 1
      %p113 = por %p111, %p112
      %p114 = scmp.ne.s32.totalorder %s105, %s106
      %p115 = scmp.eq.s32.totalorder %s32, 0
      %p116 = por %p114, %p115
      %p117 = scmp.ne.s32.totalorder %s105, %s106
      %p118 = scmp.eq.s32.totalorder %s33, 1
      %p119 = por %p117, %p118
      %p121 = scmp.ne.s32.totalorder %s106, %s120
      %p122 = scmp.eq.s32.totalorder %s33, 0
      %p123 = por %p121, %p122
      %s125 = sadd.s32 %s124, 1
      %p128 = scmp.eq.s32.totalorder %s27, 1
      %p129 = scmp.ne.s32.totalorder %s124, %s126
      %p130 = scmp.eq.s32.totalorder %s27, 0
      %p131 = por %p129, %p130
      %p132 = scmp.ne.s32.totalorder %s124, %s126
      %p133 = scmp.eq.s32.totalorder %s32, 1
      %p134 = por %p132, %p133
      %p135 = scmp.ne.s32.totalorder %s126, %s127
      %p136 = scmp.eq.s32.totalorder %s32, 0
      %p137 = por %p135, %p136
      %p138 = scmp.ne.s32.totalorder %s126, %s127
      %p139 = scmp.eq.s32.totalorder %s33, 1
      %p140 = por %p138, %p139
      %p142 = scmp.ne.s32.totalorder %s127, %s141
      %p143 = scmp.eq.s32.totalorder %s33, 0
      %p144 = por %p142, %p143
      %s146 = sadd.s32 %s145, 1
      %p149 = scmp.eq.s32.totalorder %s27, 1
      %p150 = scmp.ne.s32.totalorder %s145, %s147
      %p151 = scmp.eq.s32.totalorder %s27, 0
      %p152 = por %p150, %p151
      %p153 = scmp.ne.s32.totalorder %s145, %s147
      %p154 = scmp.eq.s32.totalorder %s32, 1
      %p155 = por %p153, %p154
      %p156 = scmp.ne.s32.totalorder %s147, %s148
      %p157 = scmp.eq.s32.totalorder %s32, 0
      %p158 = por %p156, %p157
      %p159 = scmp.ne.s32.totalorder %s147, %s148
      %p160 = scmp.eq.s32.totalorder %s33, 1
      %p161 = por %p159, %p160
      %p163 = scmp.ne.s32.totalorder %s148, %s162
      %p164 = scmp.eq.s32.totalorder %s33, 0
      %p165 = por %p163, %p164
      %s167 = sadd.s32 %s166, 1
      %p170 = scmp.eq.s32.totalorder %s27, 1
      %p171 = scmp.ne.s32.totalorder %s166, %s168
      %p172 = scmp.eq.s32.totalorder %s27, 0
      %p173 = por %p171, %p172
      %p174 = scmp.ne.s32.totalorder %s166, %s168
      %p175 = scmp.eq.s32.totalorder %s32, 1
      %p176 = por %p174, %p175
      %p177 = scmp.ne.s32.totalorder %s168, %s169
      %p178 = scmp.eq.s32.totalorder %s32, 0
      %p179 = por %p177, %p178
      %p180 = scmp.ne.s32.totalorder %s168, %s169
      %p181 = scmp.eq.s32.totalorder %s33, 1
      %p182 = por %p180, %p181
      %p184 = scmp.ne.s32.totalorder %s169, %s183
      %p185 = scmp.eq.s32.totalorder %s33, 0
      %p186 = por %p184, %p185
      %s188 = sadd.s32 %s187, 1
      %p191 = scmp.eq.s32.totalorder %s27, 1
      %p192 = scmp.ne.s32.totalorder %s187, %s189
      %p193 = scmp.eq.s32.totalorder %s27, 0
      %p194 = por %p192, %p193
      %p195 = scmp.ne.s32.totalorder %s187, %s189
      %p196 = scmp.eq.s32.totalorder %s32, 1
      %p197 = por %p195, %p196
      %p198 = scmp.ne.s32.totalorder %s189, %s190
      %p199 = scmp.eq.s32.totalorder %s32, 0
      %p200 = por %p198, %p199
      %p201 = scmp.ne.s32.totalorder %s189, %s190
      %p202 = scmp.eq.s32.totalorder %s33, 1
      %p203 = por %p201, %p202
      %p205 = scmp.ne.s32.totalorder %s190, %s204
      %p206 = scmp.eq.s32.totalorder %s33, 0
      %p207 = por %p205, %p206
      %s209 = sadd.s32 %s208, 1
      %p212 = scmp.eq.s32.totalorder %s27, 1
      %p213 = scmp.ne.s32.totalorder %s208, %s210
      %p214 = scmp.eq.s32.totalorder %s27, 0
      %p215 = por %p213, %p214
      %p216 = scmp.ne.s32.totalorder %s208, %s210
      %p217 = scmp.eq.s32.totalorder %s32, 1
      %p218 = por %p216, %p217
      %p219 = scmp.ne.s32.totalorder %s210, %s211
      %p220 = scmp.eq.s32.totalorder %s32, 0
      %p221 = por %p219, %p220
      %p222 = scmp.ne.s32.totalorder %s210, %s211
      %p223 = scmp.eq.s32.totalorder %s33, 1
      %p224 = por %p222, %p223
      %p226 = scmp.ne.s32.totalorder %s211, %s225
      %p227 = scmp.eq.s32.totalorder %s33, 0
      %p228 = por %p226, %p227
      %s230 = sadd.s32 %s229, 1
      %p233 = scmp.eq.s32.totalorder %s27, 1
      %p234 = scmp.ne.s32.totalorder %s229, %s231
      %p235 = scmp.eq.s32.totalorder %s27, 0
      %p236 = por %p234, %p235
      %p237 = scmp.ne.s32.totalorder %s229, %s231
      %p238 = scmp.eq.s32.totalorder %s32, 1
      %p239 = por %p237, %p238
      %p240 = scmp.ne.s32.totalorder %s231, %s232
      %p241 = scmp.eq.s32.totalorder %s32, 0
      %p242 = por %p240, %p241
      %p243 = scmp.ne.s32.totalorder %s231, %s232
      %p244 = scmp.eq.s32.totalorder %s33, 1
      %p245 = por %p243, %p244
      %p247 = scmp.ne.s32.totalorder %s232, %s246
      %p248 = scmp.eq.s32.totalorder %s33, 0
      %p249 = por %p247, %p248
      %s251 = sadd.s32 %s250, 1
      %p254 = scmp.eq.s32.totalorder %s27, 1
      %p255 = scmp.ne.s32.totalorder %s250, %s252
      %p256 = scmp.eq.s32.totalorder %s27, 0
      %p257 = por %p255, %p256
      %p258 = scmp.ne.s32.totalorder %s250, %s252
      %p259 = scmp.eq.s32.totalorder %s32, 1
      %p260 = por %p258, %p259
      %p261 = scmp.ne.s32.totalorder %s252, %s253
      %p262 = scmp.eq.s32.totalorder %s32, 0
      %p263 = por %p261, %p262
      %p264 = scmp.ne.s32.totalorder %s252, %s253
      %p265 = scmp.eq.s32.totalorder %s33, 1
      %p266 = por %p264, %p265
      %p268 = scmp.ne.s32.totalorder %s253, %s267
      %p269 = scmp.eq.s32.totalorder %s33, 0
      %p270 = por %p268, %p269
      %s272 = sadd.s32 %s271, 1
      %p275 = scmp.eq.s32.totalorder %s27, 1
      %p276 = scmp.ne.s32.totalorder %s271, %s273
      %p277 = scmp.eq.s32.totalorder %s27, 0
      %p278 = por %p276, %p277
      %p279 = scmp.ne.s32.totalorder %s271, %s273
      %p280 = scmp.eq.s32.totalorder %s32, 1
      %p281 = por %p279, %p280
      %p282 = scmp.ne.s32.totalorder %s273, %s274
      %p283 = scmp.eq.s32.totalorder %s32, 0
      %p284 = por %p282, %p283
      %p285 = scmp.ne.s32.totalorder %s273, %s274
      %p286 = scmp.eq.s32.totalorder %s33, 1
      %p287 = por %p285, %p286
      %p289 = scmp.ne.s32.totalorder %s274, %s288
      %p290 = scmp.eq.s32.totalorder %s33, 0
      %p291 = por %p289, %p290
      %s293 = sadd.s32 %s292, 1
      %p296 = scmp.eq.s32.totalorder %s27, 1
      %p297 = scmp.ne.s32.totalorder %s292, %s294
      %p298 = scmp.eq.s32.totalorder %s27, 0
      %p299 = por %p297, %p298
      %p300 = scmp.ne.s32.totalorder %s292, %s294
      %p301 = scmp.eq.s32.totalorder %s32, 1
      %p302 = por %p300, %p301
      %p303 = scmp.ne.s32.totalorder %s294, %s295
      %p304 = scmp.eq.s32.totalorder %s32, 0
      %p305 = por %p303, %p304
      %p306 = scmp.ne.s32.totalorder %s294, %s295
      %p307 = scmp.eq.s32.totalorder %s33, 1
      %p308 = por %p306, %p307
      %p310 = scmp.ne.s32.totalorder %s295, %s309
      %p311 = scmp.eq.s32.totalorder %s33, 0
      %p312 = por %p310, %p311
      %s314 = sadd.s32 %s313, 1
      %p317 = scmp.eq.s32.totalorder %s27, 1
      %p318 = scmp.ne.s32.totalorder %s313, %s315
      %p319 = scmp.eq.s32.totalorder %s27, 0
      %p320 = por %p318, %p319
      %p321 = scmp.ne.s32.totalorder %s313, %s315
      %p322 = scmp.eq.s32.totalorder %s32, 1
      %p323 = por %p321, %p322
      %p324 = scmp.ne.s32.totalorder %s315, %s316
      %p325 = scmp.eq.s32.totalorder %s32, 0
      %p326 = por %p324, %p325
      %p327 = scmp.ne.s32.totalorder %s315, %s316
      %p328 = scmp.eq.s32.totalorder %s33, 1
      %p329 = por %p327, %p328
      %p331 = scmp.ne.s32.totalorder %s316, %s330
      %p332 = scmp.eq.s32.totalorder %s33, 0
      %p333 = por %p331, %p332
      %s335 = sadd.s32 %s334, 1
      %p338 = scmp.eq.s32.totalorder %s27, 1
      %p339 = scmp.ne.s32.totalorder %s334, %s336
      %p340 = scmp.eq.s32.totalorder %s27, 0
      %p341 = por %p339, %p340
      %p342 = scmp.ne.s32.totalorder %s334, %s336
      %p343 = scmp.eq.s32.totalorder %s32, 1
      %p344 = por %p342, %p343
      %p345 = scmp.ne.s32.totalorder %s336, %s337
      %p346 = scmp.eq.s32.totalorder %s32, 0
      %p347 = por %p345, %p346
      %p348 = scmp.ne.s32.totalorder %s336, %s337
      %p349 = scmp.eq.s32.totalorder %s33, 1
      %p350 = por %p348, %p349
      %p352 = scmp.ne.s32.totalorder %s337, %s351
      %p353 = scmp.eq.s32.totalorder %s33, 0
      %p354 = por %p352, %p353
      %s356 = sadd.s32 %s355, 1
      %p359 = scmp.eq.s32.totalorder %s27, 1
      %p360 = scmp.ne.s32.totalorder %s355, %s357
      %p361 = scmp.eq.s32.totalorder %s27, 0
      %p362 = por %p360, %p361
      %p363 = scmp.ne.s32.totalorder %s355, %s357
      %p364 = scmp.eq.s32.totalorder %s32, 1
      %p365 = por %p363, %p364
      %p366 = scmp.ne.s32.totalorder %s357, %s358
      %p367 = scmp.eq.s32.totalorder %s32, 0
      %p368 = por %p366, %p367
      %p369 = scmp.ne.s32.totalorder %s357, %s358
      %p370 = scmp.eq.s32.totalorder %s33, 1
      %p371 = por %p369, %p370
      %p373 = scmp.ne.s32.totalorder %s358, %s372
      %p374 = scmp.eq.s32.totalorder %s33, 0
      %p375 = por %p373, %p374
      %s377 = sadd.s32 %s376, 1
      %p380 = scmp.eq.s32.totalorder %s27, 1
      %p381 = scmp.ne.s32.totalorder %s376, %s378
      %p382 = scmp.eq.s32.totalorder %s27, 0
      %p383 = por %p381, %p382
      %p384 = scmp.ne.s32.totalorder %s376, %s378
      %p385 = scmp.eq.s32.totalorder %s32, 1
      %p386 = por %p384, %p385
      %p387 = scmp.ne.s32.totalorder %s378, %s379
      %p388 = scmp.eq.s32.totalorder %s32, 0
      %p389 = por %p387, %p388
      %p390 = scmp.ne.s32.totalorder %s378, %s379
      %p391 = scmp.eq.s32.totalorder %s33, 1
      %p392 = por %p390, %p391
      %p394 = scmp.ne.s32.totalorder %s379, %s393
      %p395 = scmp.eq.s32.totalorder %s33, 0
      %p396 = por %p394, %p395
      %s398 = sadd.s32 %s397, 1
      %p401 = scmp.eq.s32.totalorder %s27, 1
      %p402 = scmp.ne.s32.totalorder %s397, %s399
      %p403 = scmp.eq.s32.totalorder %s27, 0
      %p404 = por %p402, %p403
      %p405 = scmp.ne.s32.totalorder %s397, %s399
      %p406 = scmp.eq.s32.totalorder %s32, 1
      %p407 = por %p405, %p406
      %p408 = scmp.ne.s32.totalorder %s399, %s400
      %p409 = scmp.eq.s32.totalorder %s32, 0
      %p410 = por %p408, %p409
      %p411 = scmp.ne.s32.totalorder %s399, %s400
      %p412 = scmp.eq.s32.totalorder %s33, 1
      %p413 = por %p411, %p412
      %p415 = scmp.ne.s32.totalorder %s400, %s414
      %p416 = scmp.eq.s32.totalorder %s33, 0
      %p417 = por %p415, %p416
      %s418 = ssub.s32 %s27, %s34
      %p419 = scmp.eq.s32.totalorder %s418, 0
      %s421 = sadd.s32 %s420, 1
      %s422 = scalar_select %p419, %s420, %s421
      %p425 = pneg %p419
      %p426 = scmp.eq.s32.totalorder %s27, 1
      %p427 = por %p425, %p426
      %p428 = scmp.ne.s32.totalorder %s420, %s423
      %p429 = scmp.eq.s32.totalorder %s27, 0
      %p430 = por %p428, %p429
      %p431 = scmp.ne.s32.totalorder %s420, %s423
      %p432 = scmp.eq.s32.totalorder %s32, 1
      %p433 = por %p431, %p432
      %p434 = scmp.ne.s32.totalorder %s423, %s424
      %p435 = scmp.eq.s32.totalorder %s32, 0
      %p436 = por %p434, %p435
      %p437 = scmp.ne.s32.totalorder %s423, %s424
      %p438 = scmp.eq.s32.totalorder %s33, 1
      %p439 = por %p437, %p438
      %p441 = scmp.ne.s32.totalorder %s424, %s440
      %p442 = scmp.eq.s32.totalorder %s33, 0
      %p443 = por %p441, %p442
      %p444 = scmp.le.s32.totalorder 1, %s27
      %p445 = scmp.lt.s32.totalorder %s27, 3
      %p446 = pnand %p444, %p445
      %p447 = pneg %p446
      // Predicated region
      $region9: #{trading_bert_forward.1} parent=5 // pred_check
        _
      $region10: #{trading_bert_forward.1} parent=5 // pred_check_branch
        %449 = sbr.rel (%p446) target = $region12
      $region11: #{trading_bert_forward.1} parent=5 // pred_region
        %s450 = ssub.s32 %s27, 1
        // Predicated region
        $region13: #{trading_bert_forward.1} parent=11 // pred_check
          %p451 = pneg %p74
        $region14: #{trading_bert_forward.1} parent=11 // pred_check_branch
          %453 = sbr.rel (%p451) target = $region16
        $region15: #{trading_bert_forward.1} parent=11 // pred_region
          _
        $region16: #{trading_bert_forward.1} parent=11 // pred_fallthru
          _
        // Predicated region
        $region17: #{trading_bert_forward.1} parent=11 // pred_check
          %p454 = pneg %p95
        $region18: #{trading_bert_forward.1} parent=11 // pred_check_branch
          %456 = sbr.rel (%p454) target = $region20
        $region19: #{trading_bert_forward.1} parent=11 // pred_region
          _
        $region20: #{trading_bert_forward.1} parent=11 // pred_fallthru
          _
        // Predicated region
        $region21: #{trading_bert_forward.1} parent=11 // pred_check
          %p457 = pneg %p116
        $region22: #{trading_bert_forward.1} parent=11 // pred_check_branch
          %459 = sbr.rel (%p457) target = $region24
        $region23: #{trading_bert_forward.1} parent=11 // pred_region
          _
        $region24: #{trading_bert_forward.1} parent=11 // pred_fallthru
          _
        // Predicated region
        $region25: #{trading_bert_forward.1} parent=11 // pred_check
          %p460 = pneg %p137
        $region26: #{trading_bert_forward.1} parent=11 // pred_check_branch
          %462 = sbr.rel (%p460) target = $region28
        $region27: #{trading_bert_forward.1} parent=11 // pred_region
          _
        $region28: #{trading_bert_forward.1} parent=11 // pred_fallthru
          _
        // Predicated region
        $region29: #{trading_bert_forward.1} parent=11 // pred_check
          %p463 = pneg %p158
        $region30: #{trading_bert_forward.1} parent=11 // pred_check_branch
          %465 = sbr.rel (%p463) target = $region32
        $region31: #{trading_bert_forward.1} parent=11 // pred_region
          _
        $region32: #{trading_bert_forward.1} parent=11 // pred_fallthru
          _
        // Predicated region
        $region33: #{trading_bert_forward.1} parent=11 // pred_check
          %p466 = pneg %p179
        $region34: #{trading_bert_forward.1} parent=11 // pred_check_branch
          %468 = sbr.rel (%p466) target = $region36
        $region35: #{trading_bert_forward.1} parent=11 // pred_region
          _
        $region36: #{trading_bert_forward.1} parent=11 // pred_fallthru
          _
        // Predicated region
        $region37: #{trading_bert_forward.1} parent=11 // pred_check
          %p469 = pneg %p200
        $region38: #{trading_bert_forward.1} parent=11 // pred_check_branch
          %471 = sbr.rel (%p469) target = $region40
        $region39: #{trading_bert_forward.1} parent=11 // pred_region
          _
        $region40: #{trading_bert_forward.1} parent=11 // pred_fallthru
          _
        // Predicated region
        $region41: #{trading_bert_forward.1} parent=11 // pred_check
          %p472 = pneg %p221
        $region42: #{trading_bert_forward.1} parent=11 // pred_check_branch
          %474 = sbr.rel (%p472) target = $region44
        $region43: #{trading_bert_forward.1} parent=11 // pred_region
          _
        $region44: #{trading_bert_forward.1} parent=11 // pred_fallthru
          _
        // Predicated region
        $region45: #{trading_bert_forward.1} parent=11 // pred_check
          %p475 = pneg %p242
        $region46: #{trading_bert_forward.1} parent=11 // pred_check_branch
          %477 = sbr.rel (%p475) target = $region48
        $region47: #{trading_bert_forward.1} parent=11 // pred_region
          _
        $region48: #{trading_bert_forward.1} parent=11 // pred_fallthru
          _
        // Predicated region
        $region49: #{trading_bert_forward.1} parent=11 // pred_check
          %p478 = pneg %p263
        $region50: #{trading_bert_forward.1} parent=11 // pred_check_branch
          %480 = sbr.rel (%p478) target = $region52
        $region51: #{trading_bert_forward.1} parent=11 // pred_region
          _
        $region52: #{trading_bert_forward.1} parent=11 // pred_fallthru
          _
        // Predicated region
        $region53: #{trading_bert_forward.1} parent=11 // pred_check
          %p481 = pneg %p284
        $region54: #{trading_bert_forward.1} parent=11 // pred_check_branch
          %483 = sbr.rel (%p481) target = $region56
        $region55: #{trading_bert_forward.1} parent=11 // pred_region
          _
        $region56: #{trading_bert_forward.1} parent=11 // pred_fallthru
          _
        // Predicated region
        $region57: #{trading_bert_forward.1} parent=11 // pred_check
          %p484 = pneg %p305
        $region58: #{trading_bert_forward.1} parent=11 // pred_check_branch
          %486 = sbr.rel (%p484) target = $region60
        $region59: #{trading_bert_forward.1} parent=11 // pred_region
          _
        $region60: #{trading_bert_forward.1} parent=11 // pred_fallthru
          _
        // Predicated region
        $region61: #{trading_bert_forward.1} parent=11 // pred_check
          %p487 = pneg %p326
        $region62: #{trading_bert_forward.1} parent=11 // pred_check_branch
          %489 = sbr.rel (%p487) target = $region64
        $region63: #{trading_bert_forward.1} parent=11 // pred_region
          _
        $region64: #{trading_bert_forward.1} parent=11 // pred_fallthru
          _
        // Predicated region
        $region65: #{trading_bert_forward.1} parent=11 // pred_check
          %p490 = pneg %p347
        $region66: #{trading_bert_forward.1} parent=11 // pred_check_branch
          %492 = sbr.rel (%p490) target = $region68
        $region67: #{trading_bert_forward.1} parent=11 // pred_region
          _
        $region68: #{trading_bert_forward.1} parent=11 // pred_fallthru
          _
        // Predicated region
        $region69: #{trading_bert_forward.1} parent=11 // pred_check
          %p493 = pneg %p368
        $region70: #{trading_bert_forward.1} parent=11 // pred_check_branch
          %495 = sbr.rel (%p493) target = $region72
        $region71: #{trading_bert_forward.1} parent=11 // pred_region
          _
        $region72: #{trading_bert_forward.1} parent=11 // pred_fallthru
          _
        // Predicated region
        $region73: #{trading_bert_forward.1} parent=11 // pred_check
          %p496 = pneg %p389
        $region74: #{trading_bert_forward.1} parent=11 // pred_check_branch
          %498 = sbr.rel (%p496) target = $region76
        $region75: #{trading_bert_forward.1} parent=11 // pred_region
          _
        $region76: #{trading_bert_forward.1} parent=11 // pred_fallthru
          _
        // Predicated region
        $region77: #{trading_bert_forward.1} parent=11 // pred_check
          %p499 = pneg %p410
        $region78: #{trading_bert_forward.1} parent=11 // pred_check_branch
          %501 = sbr.rel (%p499) target = $region80
        $region79: #{trading_bert_forward.1} parent=11 // pred_region
          _
        $region80: #{trading_bert_forward.1} parent=11 // pred_fallthru
          _
      $region12: #{trading_bert_forward.1} parent=5 // pred_fallthru
        _
      %p502 = scmp.lt.s32.totalorder %s27, 2
      // Predicated region
      $region81: #{trading_bert_forward.1} parent=5 // pred_check
        %p503 = pneg %p502
      $region82: #{trading_bert_forward.1} parent=5 // pred_check_branch
        %505 = sbr.rel (%p503) target = $region84
      $region83: #{trading_bert_forward.1} parent=5 // pred_region
        // Predicated region
        $region85: #{trading_bert_forward.1} parent=83 // pred_check
          %p506 = pneg %p47
        $region86: #{trading_bert_forward.1} parent=83 // pred_check_branch
          %508 = sbr.rel (%p506) target = $region88
        $region87: #{trading_bert_forward.1} parent=83 // pred_region
          %p509 = scmp.lt.s32.totalorder %s27, 1
          %s510 = scalar_select %p509, %s27, 1
          %s511 = smul.addr %s510, 4
          %s512 = smul.addr %s511, 8
          %s513 = scalar_lea.vmem %s0, %s512
        $region88: #{trading_bert_forward.1} parent=83 // pred_fallthru
          _
      $region84: #{trading_bert_forward.1} parent=5 // pred_fallthru
        _
      %p514 = scmp.le.s32.totalorder 1, %s27
      %p515 = scmp.lt.s32.totalorder %s27, 3
      %p516 = pnand %p514, %p515
      %p517 = pneg %p516
      // Predicated region
      $region89: #{trading_bert_forward.1} parent=5 // pred_check
        _
      $region90: #{trading_bert_forward.1} parent=5 // pred_check_branch
        %519 = sbr.rel (%p516) target = $region92
      $region91: #{trading_bert_forward.1} parent=5 // pred_region
        %s520 = ssub.s32 %s27, 1
        %p521 = scmp.lt.s32.totalorder %s32, 1
        %s522 = scalar_select %p521, %s32, 1
        %s523 = smul.addr %s522, 4
        %s524 = smul.addr %s523, 8
        %s525 = scalar_lea.vmem %s0, %s524
        %p526 = pneg %p53
        %p527 = pneg %p50
        %p528 = pneg %p74
        %p529 = pneg %p71
        %p530 = pneg %p95
        %p531 = pneg %p92
        %p532 = pneg %p116
        %p533 = pneg %p113
        %p534 = pneg %p137
        %p535 = pneg %p134
        %p536 = pneg %p158
        %p537 = pneg %p155
        %p538 = pneg %p179
        %p539 = pneg %p176
        %p540 = pneg %p200
        %p541 = pneg %p197
        %p542 = pneg %p221
        %p543 = pneg %p218
        %p544 = pneg %p242
        %p545 = pneg %p239
        %p546 = pneg %p263
        %p547 = pneg %p260
        %p548 = pneg %p284
        %p549 = pneg %p281
        %p550 = pneg %p305
        %p551 = pneg %p302
        %p552 = pneg %p326
        %p553 = pneg %p323
        %p554 = pneg %p347
        %p555 = pneg %p344
        %p556 = pneg %p368
        %p557 = pneg %p365
        %p558 = pneg %p389
        %p559 = pneg %p386
        %p560 = pneg %p410
        %p561 = pneg %p407
        %p562 = pneg %p436
        %p563 = pneg %p433
        %s564 = sand.u32 %s423, 1
        %s565 = scalar_lea.sflag [#allocation3], %s564
        %s566 = sand.u32 %s423, 1
        %s567 = smul.addr %s566, 32
        %s568 = scalar_lea.vmem [#allocation2], %s567
        %p569 = scmp.lt.s32.totalorder %s32, 1
        %s570 = scalar_select %p569, %s32, 1
        %s571 = smul.addr %s570, 4
        %s572 = smul.addr %s571, 8
        %s573 = scalar_lea.vmem %s0, %s572
        %v575 = vld [vmem:[%s573] sm:$0xff]
        %v576 = vld [vmem:[%s573 + $0x8] sm:$0xff]
        %v577 = vld [vmem:[%s573 + $0x10] sm:$0xff]
        %v578 = vld [vmem:[%s573 + $0x18] sm:$0xff]
        %v579 = vpack.c.bf16 %v576, %v575
        %v580 = vpack.c.bf16 %v578, %v577
        %v581 = vld [vmem:[%s2] sm:$0xf]
        %v582 = vld [vmem:[%s2 + $0x4] sm:$0xf]
        %v583 = vld [vmem:[%s3] sm:$0x1]
        %v585 = vlaneseq
        %v586 = vshrl.u32 %v585, 7
        %v587 = vsub.s32 0, %v586
        %v588 = vrot.slane %v583, %v587
        %v592 = vunpack.c.l.b16 %v581
        %v593 = vunpack.c.l.b16 %v582
        %v594 = vpack.c.b16 %v593, %v592
        %vm596 = vcmask 130048
        %v598 = vsel %vm596, %v579, 0
        %v601 = vsel %vm596, %v580, 0
        %603 = vmatprep.subr.bf16.mxu0 0
        %604 = vmatpush1.bf16.msra.mxu0 %v594
        %605 = vmatprep.subr.bf16.mxu0 0
        %606 = vmatpush1.bf16.msra.mxu0 0
        %607 = vmatprep.subr.bf16.mxu0 0
        %608 = vmatpush1.bf16.msra.mxu0 0
        %609 = vmatprep.subr.bf16.mxu0 0
        %610 = vmatpush1.bf16.msra.mxu0 0
        %611 = vmatprep.subr.bf16.mxu0 0
        %612 = vmatpush1.bf16.msra.mxu0 0
        %613 = vmatprep.subr.bf16.mxu0 0
        %614 = vmatpush1.bf16.msra.mxu0 0
        %615 = vmatprep.subr.bf16.mxu0 0
        %616 = vmatpush1.bf16.msra.mxu0 0
        %617 = vmatprep.subr.bf16.mxu0 0
        %618 = vmatpush1.bf16.msra.mxu0 0
        %619 = vmatprep.subr.bf16.mxu0 0
        %620 = vmatpush1.bf16.msra.mxu0 0
        %621 = vmatprep.subr.bf16.mxu0 0
        %622 = vmatpush1.bf16.msra.mxu0 0
        %623 = vmatprep.subr.bf16.mxu0 0
        %624 = vmatpush1.bf16.msra.mxu0 0
        %625 = vmatprep.subr.bf16.mxu0 0
        %626 = vmatpush1.bf16.msra.mxu0 0
        %627 = vmatprep.subr.bf16.mxu0 0
        %628 = vmatpush1.bf16.msra.mxu0 0
        %629 = vmatprep.subr.bf16.mxu0 0
        %630 = vmatpush1.bf16.msra.mxu0 0
        %631 = vmatprep.subr.bf16.mxu0 0
        %632 = vmatpush1.bf16.msra.mxu0 0
        %633 = vmatprep.subr.bf16.mxu0 0
        %634 = vmatpush1.bf16.msra.mxu0 0
        %635 = vmatprep.mubr.bf16.mxu0 0
        %636 = vmatmul.mubr.bf16.gmra.mrb[0].mxu0 %v598
        %v637 = vpop.f32.mrb[0].mxu0
        %v638 = vadd.f32 %v588, %v637
        %v639 = vpop.f32.mrb[0].mxu0
        %v640 = vpop.f32.mrb[0].mxu0
        %v641 = vadd.f32 %v588, %v640
        %v642 = vpop.f32.mrb[0].mxu0
        %643 = vmatprep.mubr.bf16.mxu0 0
        %644 = vmatmul.mubr.bf16.gmra.mrb[0].mxu0 %v601
        %v645 = vpop.f32.mrb[0].mxu0
        %v646 = vadd.f32 %v588, %v645
        %v647 = vpop.f32.mrb[0].mxu0
        %v648 = vpop.f32.mrb[0].mxu0
        %v649 = vadd.f32 %v588, %v648
        %v650 = vpop.f32.mrb[0].mxu0
        %651 = vdwg.mxu0
        %vm652 = vcmp.ge.f32.partialorder %v638, 0.0
        %vm653 = vcmp.ge.f32.partialorder %v641, 0.0
        %vm654 = vcmp.ge.f32.partialorder %v646, 0.0
        %vm655 = vcmp.ge.f32.partialorder %v649, 0.0
        %v656 = vmul.f32 %v638, 0.1
        %v657 = vmul.f32 %v641, 0.1
        %v658 = vmul.f32 %v646, 0.1
        %v659 = vmul.f32 %v649, 0.1
        %v660 = vsel %vm652, %v638, %v656
        %v661 = vsel %vm653, %v641, %v657
        %v662 = vsel %vm654, %v646, %v658
        %v663 = vsel %vm655, %v649, %v659
        %v664 = vpack.c.bf16 %v661, %v660
        %v665 = vpack.c.bf16 %v663, %v662
        %v666 = vld [vmem:[%s4] sm:$0xf]
        %v667 = vld [vmem:[%s4 + $0x4] sm:$0xf]
        %v668 = vld [vmem:[%s4 + $0x8] sm:$0xf]
        %v669 = vld [vmem:[%s4 + $0xc] sm:$0xf]
        %v670 = vld [vmem:[%s5] sm:$0x1]
        %v672 = vlaneseq
        %v673 = vshrl.u32 %v672, 7
        %v674 = vsub.s32 0, %v673
        %v675 = vrot.slane %v670, %v674
        %v681 = vunpack.c.l.b16 %v666
        %v682 = vunpack.c.l.b16 %v667
        %v683 = vunpack.c.l.b16 %v668
        %v684 = vunpack.c.l.b16 %v669
        %v685 = vpack.c.b16 %v682, %v681
        %v686 = vpack.c.b16 %v684, %v683
        %vm689 = vcmask 261120
        %v691 = vsel %vm689, %v664, 0
        %v694 = vsel %vm689, %v665, 0
        %696 = vmatprep.subr.bf16.mxu0 0
        %697 = vmatpush1.bf16.msra.mxu0 %v685
        %698 = vmatprep.subr.bf16.mxu0 0
        %699 = vmatpush1.bf16.msra.mxu0 %v686
        %700 = vmatprep.subr.bf16.mxu0 0
        %701 = vmatpush1.bf16.msra.mxu0 0
        %702 = vmatprep.subr.bf16.mxu0 0
        %703 = vmatpush1.bf16.msra.mxu0 0
        %704 = vmatprep.subr.bf16.mxu0 0
        %705 = vmatpush1.bf16.msra.mxu0 0
        %706 = vmatprep.subr.bf16.mxu0 0
        %707 = vmatpush1.bf16.msra.mxu0 0
        %708 = vmatprep.subr.bf16.mxu0 0
        %709 = vmatpush1.bf16.msra.mxu0 0
        %710 = vmatprep.subr.bf16.mxu0 0
        %711 = vmatpush1.bf16.msra.mxu0 0
        %712 = vmatprep.subr.bf16.mxu0 0
        %713 = vmatpush1.bf16.msra.mxu0 0
        %714 = vmatprep.subr.bf16.mxu0 0
        %715 = vmatpush1.bf16.msra.mxu0 0
        %716 = vmatprep.subr.bf16.mxu0 0
        %717 = vmatpush1.bf16.msra.mxu0 0
        %718 = vmatprep.subr.bf16.mxu0 0
        %719 = vmatpush1.bf16.msra.mxu0 0
        %720 = vmatprep.subr.bf16.mxu0 0
        %721 = vmatpush1.bf16.msra.mxu0 0
        %722 = vmatprep.subr.bf16.mxu0 0
        %723 = vmatpush1.bf16.msra.mxu0 0
        %724 = vmatprep.subr.bf16.mxu0 0
        %725 = vmatpush1.bf16.msra.mxu0 0
        %726 = vmatprep.subr.bf16.mxu0 0
        %727 = vmatpush1.bf16.msra.mxu0 0
        %728 = vmatprep.mubr.bf16.mxu0 0
        %729 = vmatmul.mubr.bf16.gmra.mrb[0].mxu0 %v691
        %v730 = vpop.f32.mrb[0].mxu0
        %v731 = vadd.f32 %v675, %v730
        %v732 = vpop.f32.mrb[0].mxu0
        %v733 = vpop.f32.mrb[0].mxu0
        %v734 = vadd.f32 %v675, %v733
        %v735 = vpop.f32.mrb[0].mxu0
        %736 = vmatprep.mubr.bf16.mxu0 0
        %737 = vmatmul.mubr.bf16.gmra.mrb[0].mxu0 %v694
        %v738 = vpop.f32.mrb[0].mxu0
        %v739 = vadd.f32 %v675, %v738
        %v740 = vpop.f32.mrb[0].mxu0
        %v741 = vpop.f32.mrb[0].mxu0
        %v742 = vadd.f32 %v675, %v741
        %v743 = vpop.f32.mrb[0].mxu0
        %744 = vdwg.mxu0
        %vm745 = vcmp.ge.f32.partialorder %v731, 0.0
        %vm746 = vcmp.ge.f32.partialorder %v734, 0.0
        %vm747 = vcmp.ge.f32.partialorder %v739, 0.0
        %vm748 = vcmp.ge.f32.partialorder %v742, 0.0
        %v749 = vmul.f32 %v731, 0.1
        %v750 = vmul.f32 %v734, 0.1
        %v751 = vmul.f32 %v739, 0.1
        %v752 = vmul.f32 %v742, 0.1
        %v753 = vsel %vm745, %v731, %v749
        %v754 = vsel %vm746, %v734, %v750
        %v755 = vsel %vm747, %v739, %v751
        %v756 = vsel %vm748, %v742, %v752
        %v757 = vld [vmem:[%s1] sm:$0xff]
        %v758 = vld [vmem:[%s1 + $0x8] sm:$0xff]
        %v759 = vld [vmem:[%s1 + $0x10] sm:$0xff]
        %v760 = vld [vmem:[%s1 + $0x18] sm:$0xff]
        %v761 = vadd.f32 %v753, %v757
        %v762 = vadd.f32 %v754, %v758
        %v763 = vadd.f32 %v755, %v759
        %v764 = vadd.f32 %v756, %v760
        %v765 = vpack.c.bf16 %v762, %v761
        %v766 = vpack.c.bf16 %v764, %v763
        %v767 = vld [vmem:[%s6] sm:$0xf]
        %v768 = vld [vmem:[%s6 + $0x4] sm:$0xf]
        %v769 = vld [vmem:[%s6 + $0x8] sm:$0xf]
        %v770 = vld [vmem:[%s6 + $0xc] sm:$0xf]
        %v771 = vld [vmem:[%s7] sm:$0x1]
        %v773 = vlaneseq
        %v774 = vshrl.u32 %v773, 7
        %v775 = vsub.s32 0, %v774
        %v776 = vrot.slane %v771, %v775
        %v782 = vunpack.c.l.b16 %v767
        %v783 = vunpack.c.l.b16 %v768
        %v784 = vunpack.c.l.b16 %v769
        %v785 = vunpack.c.l.b16 %v770
        %v786 = vpack.c.b16 %v783, %v782
        %v787 = vpack.c.b16 %v785, %v784
        %v791 = vsel %vm689, %v765, 0
        %v794 = vsel %vm689, %v766, 0
        %796 = vmatprep.subr.bf16.mxu0 0
        %797 = vmatpush1.bf16.msra.mxu0 %v786
        %798 = vmatprep.subr.bf16.mxu0 0
        %799 = vmatpush1.bf16.msra.mxu0 %v787
        %800 = vmatprep.subr.bf16.mxu0 0
        %801 = vmatpush1.bf16.msra.mxu0 0
        %802 = vmatprep.subr.bf16.mxu0 0
        %803 = vmatpush1.bf16.msra.mxu0 0
        %804 = vmatprep.subr.bf16.mxu0 0
        %805 = vmatpush1.bf16.msra.mxu0 0
        %806 = vmatprep.subr.bf16.mxu0 0
        %807 = vmatpush1.bf16.msra.mxu0 0
        %808 = vmatprep.subr.bf16.mxu0 0
        %809 = vmatpush1.bf16.msra.mxu0 0
        %810 = vmatprep.subr.bf16.mxu0 0
        %811 = vmatpush1.bf16.msra.mxu0 0
        %812 = vmatprep.subr.bf16.mxu0 0
        %813 = vmatpush1.bf16.msra.mxu0 0
        %814 = vmatprep.subr.bf16.mxu0 0
        %815 = vmatpush1.bf16.msra.mxu0 0
        %816 = vmatprep.subr.bf16.mxu0 0
        %817 = vmatpush1.bf16.msra.mxu0 0
        %818 = vmatprep.subr.bf16.mxu0 0
        %819 = vmatpush1.bf16.msra.mxu0 0
        %820 = vmatprep.subr.bf16.mxu0 0
        %821 = vmatpush1.bf16.msra.mxu0 0
        %822 = vmatprep.subr.bf16.mxu0 0
        %823 = vmatpush1.bf16.msra.mxu0 0
        %824 = vmatprep.subr.bf16.mxu0 0
        %825 = vmatpush1.bf16.msra.mxu0 0
        %826 = vmatprep.subr.bf16.mxu0 0
        %827 = vmatpush1.bf16.msra.mxu0 0
        %828 = vmatprep.mubr.bf16.mxu0 0
        %829 = vmatmul.mubr.bf16.gmra.mrb[0].mxu0 %v791
        %v830 = vpop.f32.mrb[0].mxu0
        %v831 = vadd.f32 %v776, %v830
        %v832 = vpop.f32.mrb[0].mxu0
        %v833 = vpop.f32.mrb[0].mxu0
        %v834 = vadd.f32 %v776, %v833
        %v835 = vpop.f32.mrb[0].mxu0
        %836 = vmatprep.mubr.bf16.mxu0 0
        %837 = vmatmul.mubr.bf16.gmra.mrb[0].mxu0 %v794
        %v838 = vpop.f32.mrb[0].mxu0
        %v839 = vadd.f32 %v776, %v838
        %v840 = vpop.f32.mrb[0].mxu0
        %v841 = vpop.f32.mrb[0].mxu0
        %v842 = vadd.f32 %v776, %v841
        %v843 = vpop.f32.mrb[0].mxu0
        %844 = vdwg.mxu0
        %v845 = vpack.c.bf16 %v834, %v831
        %v846 = vpack.c.bf16 %v842, %v839
        %849 = vrot.lane.b32.xlu0 %v845, 120
        %v850 = vpop.permute.xlu0 %849
        %851 = vrot.lane.b32.xlu0 %v846, 120
        %v852 = vpop.permute.xlu0 %851
        %853 = vrot.lane.b32.xlu0 %v845, 112
        %v854 = vpop.permute.xlu0 %853
        %855 = vrot.lane.b32.xlu0 %v846, 112
        %v856 = vpop.permute.xlu0 %855
        %857 = vrot.lane.b32.xlu0 %v845, 104
        %v858 = vpop.permute.xlu0 %857
        %859 = vrot.lane.b32.xlu0 %v846, 104
        %v860 = vpop.permute.xlu0 %859
        %861 = vrot.lane.b32.xlu0 %v845, 96
        %v862 = vpop.permute.xlu0 %861
        %863 = vrot.lane.b32.xlu0 %v846, 96
        %v864 = vpop.permute.xlu0 %863
        %vm865 = vcmask 64512
        %v867 = vsel %vm865, %v845, 0
        %v870 = vsel %vm865, %v846, 0
        %v873 = vsel %vm865, %v862, 0
        %v876 = vsel %vm865, %v864, 0
        %878 = vmatprep.subr.bf16.mxu0 0
        %879 = vmatpush1.bf16.xpose.msra.mxu0 %v873
        %880 = vmatprep.subr.bf16.mxu0 0
        %881 = vmatpush1.bf16.xpose.msra.mxu0 %v876
        %882 = vmatprep.subr.bf16.mxu0 0
        %883 = vmatpush1.bf16.xpose.msra.mxu0 0
        %884 = vmatprep.subr.bf16.mxu0 0
        %885 = vmatpush1.bf16.xpose.msra.mxu0 0
        %886 = vmatprep.subr.bf16.mxu0 0
        %887 = vmatpush1.bf16.xpose.msra.mxu0 0
        %888 = vmatprep.subr.bf16.mxu0 0
        %889 = vmatpush1.bf16.xpose.msra.mxu0 0
        %890 = vmatprep.subr.bf16.mxu0 0
        %891 = vmatpush1.bf16.xpose.msra.mxu0 0
        %892 = vmatprep.subr.bf16.mxu0 0
        %893 = vmatpush1.bf16.xpose.msra.mxu0 0
        %894 = vmatprep.subr.bf16.mxu0 0
        %895 = vmatpush1.bf16.xpose.msra.mxu0 0
        %896 = vmatprep.subr.bf16.mxu0 0
        %897 = vmatpush1.bf16.xpose.msra.mxu0 0
        %898 = vmatprep.subr.bf16.mxu0 0
        %899 = vmatpush1.bf16.xpose.msra.mxu0 0
        %900 = vmatprep.subr.bf16.mxu0 0
        %901 = vmatpush1.bf16.xpose.msra.mxu0 0
        %902 = vmatprep.subr.bf16.mxu0 0
        %903 = vmatpush1.bf16.xpose.msra.mxu0 0
        %904 = vmatprep.subr.bf16.mxu0 0
        %905 = vmatpush1.bf16.xpose.msra.mxu0 0
        %906 = vmatprep.subr.bf16.mxu0 0
        %907 = vmatpush1.bf16.xpose.msra.mxu0 0
        %908 = vmatprep.subr.bf16.mxu0 0
        %909 = vmatpush1.bf16.xpose.msra.mxu0 0
        %910 = vmatprep.mubr.bf16.mxu0 0
        %911 = vmatmul.mubr.bf16.gmra.mrb[0].mxu0 %v867
        %v912 = vpop.f32.mrb[0].mxu0
        %v913 = vadd.f32 0.0, %v912
        %v914 = vpop.f32.mrb[0].mxu0
        %v915 = vpop.f32.mrb[0].mxu0
        %v916 = vadd.f32 0.0, %v915
        %v917 = vpop.f32.mrb[0].mxu0
        %918 = vmatprep.mubr.bf16.mxu0 0
        %919 = vmatmul.mubr.bf16.gmra.mrb[0].mxu0 %v870
        %v920 = vpop.f32.mrb[0].mxu0
        %v921 = vadd.f32 0.0, %v920
        %v922 = vpop.f32.mrb[0].mxu0
        %v923 = vpop.f32.mrb[0].mxu0
        %v924 = vadd.f32 0.0, %v923
        %v925 = vpop.f32.mrb[0].mxu0
        %926 = vdwg.mxu0
        %927 = vrot.lane.b32.xlu0 %v850, 96
        %v928 = vpop.permute.xlu0 %927
        %929 = vrot.lane.b32.xlu0 %v852, 96
        %v930 = vpop.permute.xlu0 %929
        %v932 = vsel %vm865, %v850, 0
        %v935 = vsel %vm865, %v852, 0
        %v938 = vsel %vm865, %v928, 0
        %v941 = vsel %vm865, %v930, 0
        %943 = vmatprep.subr.bf16.mxu0 0
        %944 = vmatpush1.bf16.xpose.msra.mxu0 %v938
        %945 = vmatprep.subr.bf16.mxu0 0
        %946 = vmatpush1.bf16.xpose.msra.mxu0 %v941
        %947 = vmatprep.subr.bf16.mxu0 0
        %948 = vmatpush1.bf16.xpose.msra.mxu0 0
        %949 = vmatprep.subr.bf16.mxu0 0
        %950 = vmatpush1.bf16.xpose.msra.mxu0 0
        %951 = vmatprep.subr.bf16.mxu0 0
        %952 = vmatpush1.bf16.xpose.msra.mxu0 0
        %953 = vmatprep.subr.bf16.mxu0 0
        %954 = vmatpush1.bf16.xpose.msra.mxu0 0
        %955 = vmatprep.subr.bf16.mxu0 0
        %956 = vmatpush1.bf16.xpose.msra.mxu0 0
        %957 = vmatprep.subr.bf16.mxu0 0
        %958 = vmatpush1.bf16.xpose.msra.mxu0 0
        %959 = vmatprep.subr.bf16.mxu0 0
        %960 = vmatpush1.bf16.xpose.msra.mxu0 0
        %961 = vmatprep.subr.bf16.mxu0 0
        %962 = vmatpush1.bf16.xpose.msra.mxu0 0
        %963 = vmatprep.subr.bf16.mxu0 0
        %964 = vmatpush1.bf16.xpose.msra.mxu0 0
        %965 = vmatprep.subr.bf16.mxu0 0
        %966 = vmatpush1.bf16.xpose.msra.mxu0 0
        %967 = vmatprep.subr.bf16.mxu0 0
        %968 = vmatpush1.bf16.xpose.msra.mxu0 0
        %969 = vmatprep.subr.bf16.mxu0 0
        %970 = vmatpush1.bf16.xpose.msra.mxu0 0
        %971 = vmatprep.subr.bf16.mxu0 0
        %972 = vmatpush1.bf16.xpose.msra.mxu0 0
        %973 = vmatprep.subr.bf16.mxu0 0
        %974 = vmatpush1.bf16.xpose.msra.mxu0 0
        %975 = vmatprep.mubr.bf16.mxu0 0
        %976 = vmatmul.mubr.bf16.gmra.mrb[0].mxu0 %v932
        %v977 = vpop.f32.mrb[0].mxu0
        %v978 = vadd.f32 0.0, %v977
        %v979 = vpop.f32.mrb[0].mxu0
        %v980 = vpop.f32.mrb[0].mxu0
        %v981 = vadd.f32 0.0, %v980
        %v982 = vpop.f32.mrb[0].mxu0
        %983 = vmatprep.mubr.bf16.mxu0 0
        %984 = vmatmul.mubr.bf16.gmra.mrb[0].mxu0 %v935
        %v985 = vpop.f32.mrb[0].mxu0
        %v986 = vadd.f32 0.0, %v985
        %v987 = vpop.f32.mrb[0].mxu0
        %v988 = vpop.f32.mrb[0].mxu0
        %v989 = vadd.f32 0.0, %v988
        %v990 = vpop.f32.mrb[0].mxu0
        %991 = vdwg.mxu0
        %992 = vrot.lane.b32.xlu0 %v854, 96
        %v993 = vpop.permute.xlu0 %992
        %994 = vrot.lane.b32.xlu0 %v856, 96
        %v995 = vpop.permute.xlu0 %994
        %v997 = vsel %vm865, %v854, 0
        %v1000 = vsel %vm865, %v856, 0
        %v1003 = vsel %vm865, %v993, 0
        %v1006 = vsel %vm865, %v995, 0
        %1008 = vmatprep.subr.bf16.mxu0 0
        %1009 = vmatpush1.bf16.xpose.msra.mxu0 %v1003
        %1010 = vmatprep.subr.bf16.mxu0 0
        %1011 = vmatpush1.bf16.xpose.msra.mxu0 %v1006
        %1012 = vmatprep.subr.bf16.mxu0 0
        %1013 = vmatpush1.bf16.xpose.msra.mxu0 0
        %1014 = vmatprep.subr.bf16.mxu0 0
        %1015 = vmatpush1.bf16.xpose.msra.mxu0 0
        %1016 = vmatprep.subr.bf16.mxu0 0
        %1017 = vmatpush1.bf16.xpose.msra.mxu0 0
        %1018 = vmatprep.subr.bf16.mxu0 0
        %1019 = vmatpush1.bf16.xpose.msra.mxu0 0
        %1020 = vmatprep.subr.bf16.mxu0 0
        %1021 = vmatpush1.bf16.xpose.msra.mxu0 0
        %1022 = vmatprep.subr.bf16.mxu0 0
        %1023 = vmatpush1.bf16.xpose.msra.mxu0 0
        %1024 = vmatprep.subr.bf16.mxu0 0
        %1025 = vmatpush1.bf16.xpose.msra.mxu0 0
        %1026 = vmatprep.subr.bf16.mxu0 0
        %1027 = vmatpush1.bf16.xpose.msra.mxu0 0
        %1028 = vmatprep.subr.bf16.mxu0 0
        %1029 = vmatpush1.bf16.xpose.msra.mxu0 0
        %1030 = vmatprep.subr.bf16.mxu0 0
        %1031 = vmatpush1.bf16.xpose.msra.mxu0 0
        %1032 = vmatprep.subr.bf16.mxu0 0
        %1033 = vmatpush1.bf16.xpose.msra.mxu0 0
        %1034 = vmatprep.subr.bf16.mxu0 0
        %1035 = vmatpush1.bf16.xpose.msra.mxu0 0
        %1036 = vmatprep.subr.bf16.mxu0 0
        %1037 = vmatpush1.bf16.xpose.msra.mxu0 0
        %1038 = vmatprep.subr.bf16.mxu0 0
        %1039 = vmatpush1.bf16.xpose.msra.mxu0 0
        %1040 = vmatprep.mubr.bf16.mxu0 0
        %1041 = vmatmul.mubr.bf16.gmra.mrb[0].mxu0 %v997
        %v1042 = vpop.f32.mrb[0].mxu0
        %v1043 = vadd.f32 0.0, %v1042
        %v1044 = vpop.f32.mrb[0].mxu0
        %v1045 = vpop.f32.mrb[0].mxu0
        %v1046 = vadd.f32 0.0, %v1045
        %v1047 = vpop.f32.mrb[0].mxu0
        %1048 = vmatprep.mubr.bf16.mxu0 0
        %1049 = vmatmul.mubr.bf16.gmra.mrb[0].mxu0 %v1000
        %v1050 = vpop.f32.mrb[0].mxu0
        %v1051 = vadd.f32 0.0, %v1050
        %v1052 = vpop.f32.mrb[0].mxu0
        %v1053 = vpop.f32.mrb[0].mxu0
        %v1054 = vadd.f32 0.0, %v1053
        %v1055 = vpop.f32.mrb[0].mxu0
        %1056 = vdwg.mxu0
        %1057 = vrot.lane.b32.xlu0 %v858, 96
        %v1058 = vpop.permute.xlu0 %1057
        %1059 = vrot.lane.b32.xlu0 %v860, 96
        %v1060 = vpop.permute.xlu0 %1059
        %v1062 = vsel %vm865, %v858, 0
        %v1065 = vsel %vm865, %v860, 0
        %v1068 = vsel %vm865, %v1058, 0
        %v1071 = vsel %vm865, %v1060, 0
        %1073 = vmatprep.subr.bf16.mxu0 0
        %1074 = vmatpush1.bf16.xpose.msra.mxu0 %v1068
        %1075 = vmatprep.subr.bf16.mxu0 0
        %1076 = vmatpush1.bf16.xpose.msra.mxu0 %v1071
        %1077 = vmatprep.subr.bf16.mxu0 0
        %1078 = vmatpush1.bf16.xpose.msra.mxu0 0
        %1079 = vmatprep.subr.bf16.mxu0 0
        %1080 = vmatpush1.bf16.xpose.msra.mxu0 0
        %1081 = vmatprep.subr.bf16.mxu0 0
        %1082 = vmatpush1.bf16.xpose.msra.mxu0 0
        %1083 = vmatprep.subr.bf16.mxu0 0
        %1084 = vmatpush1.bf16.xpose.msra.mxu0 0
        %1085 = vmatprep.subr.bf16.mxu0 0
        %1086 = vmatpush1.bf16.xpose.msra.mxu0 0
        %1087 = vmatprep.subr.bf16.mxu0 0
        %1088 = vmatpush1.bf16.xpose.msra.mxu0 0
        %1089 = vmatprep.subr.bf16.mxu0 0
        %1090 = vmatpush1.bf16.xpose.msra.mxu0 0
        %1091 = vmatprep.subr.bf16.mxu0 0
        %1092 = vmatpush1.bf16.xpose.msra.mxu0 0
        %1093 = vmatprep.subr.bf16.mxu0 0
        %1094 = vmatpush1.bf16.xpose.msra.mxu0 0
        %1095 = vmatprep.subr.bf16.mxu0 0
        %1096 = vmatpush1.bf16.xpose.msra.mxu0 0
        %1097 = vmatprep.subr.bf16.mxu0 0
        %1098 = vmatpush1.bf16.xpose.msra.mxu0 0
        %1099 = vmatprep.subr.bf16.mxu0 0
        %1100 = vmatpush1.bf16.xpose.msra.mxu0 0
        %1101 = vmatprep.subr.bf16.mxu0 0
        %1102 = vmatpush1.bf16.xpose.msra.mxu0 0
        %1103 = vmatprep.subr.bf16.mxu0 0
        %1104 = vmatpush1.bf16.xpose.msra.mxu0 0
        %1105 = vmatprep.mubr.bf16.mxu0 0
        %1106 = vmatmul.mubr.bf16.gmra.mrb[0].mxu0 %v1062
        %v1107 = vpop.f32.mrb[0].mxu0
        %v1108 = vadd.f32 0.0, %v1107
        %v1109 = vpop.f32.mrb[0].mxu0
        %v1110 = vpop.f32.mrb[0].mxu0
        %v1111 = vadd.f32 0.0, %v1110
        %v1112 = vpop.f32.mrb[0].mxu0
        %1113 = vmatprep.mubr.bf16.mxu0 0
        %1114 = vmatmul.mubr.bf16.gmra.mrb[0].mxu0 %v1065
        %v1115 = vpop.f32.mrb[0].mxu0
        %v1116 = vadd.f32 0.0, %v1115
        %v1117 = vpop.f32.mrb[0].mxu0
        %v1118 = vpop.f32.mrb[0].mxu0
        %v1119 = vadd.f32 0.0, %v1118
        %v1120 = vpop.f32.mrb[0].mxu0
        %1121 = vdwg.mxu0
        %v1122 = vmul.f32 %v913, 0.35355338
        %v1123 = vmul.f32 %v916, 0.35355338
        %v1124 = vmul.f32 %v921, 0.35355338
        %v1125 = vmul.f32 %v924, 0.35355338
        %v1126 = vmul.f32 %v978, 0.35355338
        %v1127 = vmul.f32 %v981, 0.35355338
        %v1128 = vmul.f32 %v986, 0.35355338
        %v1129 = vmul.f32 %v989, 0.35355338
        %v1130 = vmul.f32 %v1043, 0.35355338
        %v1131 = vmul.f32 %v1046, 0.35355338
        %v1132 = vmul.f32 %v1051, 0.35355338
        %v1133 = vmul.f32 %v1054, 0.35355338
        %v1134 = vmul.f32 %v1108, 0.35355338
        %v1135 = vmul.f32 %v1111, 0.35355338
        %v1136 = vmul.f32 %v1116, 0.35355338
        %v1137 = vmul.f32 %v1119, 0.35355338
        %v1138 = vsel %vm689, %v1122, -inf
        %1139 = vmax.xlane.f32.xlu0 %v1138
        %v1140 = vpop.xlane.xlu0 %1139
        %v1141 = vsel %vm689, %v1123, -inf
        %1142 = vmax.xlane.f32.xlu0 %v1141
        %v1143 = vpop.xlane.xlu0 %1142
        %v1144 = vsel %vm689, %v1124, -inf
        %1145 = vmax.xlane.f32.xlu0 %v1144
        %v1146 = vpop.xlane.xlu0 %1145
        %v1147 = vsel %vm689, %v1125, -inf
        %1148 = vmax.xlane.f32.xlu0 %v1147
        %v1149 = vpop.xlane.xlu0 %1148
        %v1150 = vsel %vm689, %v1126, -inf
        %1151 = vmax.xlane.f32.xlu0 %v1150
        %v1152 = vpop.xlane.xlu0 %1151
        %v1153 = vsel %vm689, %v1127, -inf
        %1154 = vmax.xlane.f32.xlu0 %v1153
        %v1155 = vpop.xlane.xlu0 %1154
        %v1156 = vsel %vm689, %v1128, -inf
        %1157 = vmax.xlane.f32.xlu0 %v1156
        %v1158 = vpop.xlane.xlu0 %1157
        %v1159 = vsel %vm689, %v1129, -inf
        %1160 = vmax.xlane.f32.xlu0 %v1159
        %v1161 = vpop.xlane.xlu0 %1160
        %v1162 = vsel %vm689, %v1130, -inf
        %1163 = vmax.xlane.f32.xlu0 %v1162
        %v1164 = vpop.xlane.xlu0 %1163
        %v1165 = vsel %vm689, %v1131, -inf
        %1166 = vmax.xlane.f32.xlu0 %v1165
        %v1167 = vpop.xlane.xlu0 %1166
        %v1168 = vsel %vm689, %v1132, -inf
        %1169 = vmax.xlane.f32.xlu0 %v1168
        %v1170 = vpop.xlane.xlu0 %1169
        %v1171 = vsel %vm689, %v1133, -inf
        %1172 = vmax.xlane.f32.xlu0 %v1171
        %v1173 = vpop.xlane.xlu0 %1172
        %v1174 = vsel %vm689, %v1134, -inf
        %1175 = vmax.xlane.f32.xlu0 %v1174
        %v1176 = vpop.xlane.xlu0 %1175
        %v1177 = vsel %vm689, %v1135, -inf
        %1178 = vmax.xlane.f32.xlu0 %v1177
        %v1179 = vpop.xlane.xlu0 %1178
        %v1180 = vsel %vm689, %v1136, -inf
        %1181 = vmax.xlane.f32.xlu0 %v1180
        %v1182 = vpop.xlane.xlu0 %1181
        %v1183 = vsel %vm689, %v1137, -inf
        %1184 = vmax.xlane.f32.xlu0 %v1183
        %v1185 = vpop.xlane.xlu0 %1184
        %v1186 = vsub.f32 %v1122, %v1140
        %v1187 = vsub.f32 %v1123, %v1143
        %v1188 = vsub.f32 %v1124, %v1146
        %v1189 = vsub.f32 %v1125, %v1149
        %v1190 = vsub.f32 %v1126, %v1152
        %v1191 = vsub.f32 %v1127, %v1155
        %v1192 = vsub.f32 %v1128, %v1158
        %v1193 = vsub.f32 %v1129, %v1161
        %v1194 = vsub.f32 %v1130, %v1164
        %v1195 = vsub.f32 %v1131, %v1167
        %v1196 = vsub.f32 %v1132, %v1170
        %v1197 = vsub.f32 %v1133, %v1173
        %v1198 = vsub.f32 %v1134, %v1176
        %v1199 = vsub.f32 %v1135, %v1179
        %v1200 = vsub.f32 %v1136, %v1182
        %v1201 = vsub.f32 %v1137, %v1185
        %v1202 = vmul.f32 %v1186, 1.442695
        %v1203 = vpow.pop %v1202
        %v1204 = vmul.f32 %v1187, 1.442695
        %v1205 = vpow.pop %v1204
        %v1206 = vmul.f32 %v1188, 1.442695
        %v1207 = vpow.pop %v1206
        %v1208 = vmul.f32 %v1189, 1.442695
        %v1209 = vpow.pop %v1208
        %v1210 = vmul.f32 %v1190, 1.442695
        %v1211 = vpow.pop %v1210
        %v1212 = vmul.f32 %v1191, 1.442695
        %v1213 = vpow.pop %v1212
        %v1214 = vmul.f32 %v1192, 1.442695
        %v1215 = vpow.pop %v1214
        %v1216 = vmul.f32 %v1193, 1.442695
        %v1217 = vpow.pop %v1216
        %v1218 = vmul.f32 %v1194, 1.442695
        %v1219 = vpow.pop %v1218
        %v1220 = vmul.f32 %v1195, 1.442695
        %v1221 = vpow.pop %v1220
        %v1222 = vmul.f32 %v1196, 1.442695
        %v1223 = vpow.pop %v1222
        %v1224 = vmul.f32 %v1197, 1.442695
        %v1225 = vpow.pop %v1224
        %v1226 = vmul.f32 %v1198, 1.442695
        %v1227 = vpow.pop %v1226
        %v1228 = vmul.f32 %v1199, 1.442695
        %v1229 = vpow.pop %v1228
        %v1230 = vmul.f32 %v1200, 1.442695
        %v1231 = vpow.pop %v1230
        %v1232 = vmul.f32 %v1201, 1.442695
        %v1233 = vpow.pop %v1232
        %v1234 = vsel %vm689, %v1203, 0.0
        %1235 = vadd.xlane.f32.xlu0 %v1234
        %v1236 = vpop.xlane.xlu0 %1235
        %v1237 = vsel %vm689, %v1205, 0.0
        %1238 = vadd.xlane.f32.xlu0 %v1237
        %v1239 = vpop.xlane.xlu0 %1238
        %v1240 = vsel %vm689, %v1207, 0.0
        %1241 = vadd.xlane.f32.xlu0 %v1240
        %v1242 = vpop.xlane.xlu0 %1241
        %v1243 = vsel %vm689, %v1209, 0.0
        %1244 = vadd.xlane.f32.xlu0 %v1243
        %v1245 = vpop.xlane.xlu0 %1244
        %v1246 = vsel %vm689, %v1211, 0.0
        %1247 = vadd.xlane.f32.xlu0 %v1246
        %v1248 = vpop.xlane.xlu0 %1247
        %v1249 = vsel %vm689, %v1213, 0.0
        %1250 = vadd.xlane.f32.xlu0 %v1249
        %v1251 = vpop.xlane.xlu0 %1250
        %v1252 = vsel %vm689, %v1215, 0.0
        %1253 = vadd.xlane.f32.xlu0 %v1252
        %v1254 = vpop.xlane.xlu0 %1253
        %v1255 = vsel %vm689, %v1217, 0.0
        %1256 = vadd.xlane.f32.xlu0 %v1255
        %v1257 = vpop.xlane.xlu0 %1256
        %v1258 = vsel %vm689, %v1219, 0.0
        %1259 = vadd.xlane.f32.xlu0 %v1258
        %v1260 = vpop.xlane.xlu0 %1259
        %v1261 = vsel %vm689, %v1221, 0.0
        %1262 = vadd.xlane.f32.xlu0 %v1261
        %v1263 = vpop.xlane.xlu0 %1262
        %v1264 = vsel %vm689, %v1223, 0.0
        %1265 = vadd.xlane.f32.xlu0 %v1264
        %v1266 = vpop.xlane.xlu0 %1265
        %v1267 = vsel %vm689, %v1225, 0.0
        %1268 = vadd.xlane.f32.xlu0 %v1267
        %v1269 = vpop.xlane.xlu0 %1268
        %v1270 = vsel %vm689, %v1227, 0.0
        %1271 = vadd.xlane.f32.xlu0 %v1270
        %v1272 = vpop.xlane.xlu0 %1271
        %v1273 = vsel %vm689, %v1229, 0.0
        %1274 = vadd.xlane.f32.xlu0 %v1273
        %v1275 = vpop.xlane.xlu0 %1274
        %v1276 = vsel %vm689, %v1231, 0.0
        %1277 = vadd.xlane.f32.xlu0 %v1276
        %v1278 = vpop.xlane.xlu0 %1277
        %v1279 = vsel %vm689, %v1233, 0.0
        %1280 = vadd.xlane.f32.xlu0 %v1279
        %v1281 = vpop.xlane.xlu0 %1280
        %v1282 = vrcp.pop %v1236
        %v1283 = vrcp.pop %v1239
        %v1284 = vrcp.pop %v1242
        %v1285 = vrcp.pop %v1245
        %v1286 = vrcp.pop %v1248
        %v1287 = vrcp.pop %v1251
        %v1288 = vrcp.pop %v1254
        %v1289 = vrcp.pop %v1257
        %v1290 = vrcp.pop %v1260
        %v1291 = vrcp.pop %v1263
        %v1292 = vrcp.pop %v1266
        %v1293 = vrcp.pop %v1269
        %v1294 = vrcp.pop %v1272
        %v1295 = vrcp.pop %v1275
        %v1296 = vrcp.pop %v1278
        %v1297 = vrcp.pop %v1281
        %v1298 = vmul.f32 %v1203, %v1282
        %v1299 = vmul.f32 %v1205, %v1283
        %v1300 = vmul.f32 %v1207, %v1284
        %v1301 = vmul.f32 %v1209, %v1285
        %v1302 = vmul.f32 %v1211, %v1286
        %v1303 = vmul.f32 %v1213, %v1287
        %v1304 = vmul.f32 %v1215, %v1288
        %v1305 = vmul.f32 %v1217, %v1289
        %v1306 = vmul.f32 %v1219, %v1290
        %v1307 = vmul.f32 %v1221, %v1291
        %v1308 = vmul.f32 %v1223, %v1292
        %v1309 = vmul.f32 %v1225, %v1293
        %v1310 = vmul.f32 %v1227, %v1294
        %v1311 = vmul.f32 %v1229, %v1295
        %v1312 = vmul.f32 %v1231, %v1296
        %v1313 = vmul.f32 %v1233, %v1297
        %v1314 = vpack.c.bf16 %v1299, %v1298
        %v1315 = vpack.c.bf16 %v1301, %v1300
        %v1316 = vpack.c.bf16 %v1303, %v1302
        %v1317 = vpack.c.bf16 %v1305, %v1304
        %v1318 = vpack.c.bf16 %v1307, %v1306
        %v1319 = vpack.c.bf16 %v1309, %v1308
        %v1320 = vpack.c.bf16 %v1311, %v1310
        %v1321 = vpack.c.bf16 %v1313, %v1312
        %1322 = vrot.lane.b32.xlu0 %v845, 64
        %v1323 = vpop.permute.xlu0 %1322
        %1324 = vrot.lane.b32.xlu0 %v846, 64
        %v1325 = vpop.permute.xlu0 %1324
        %v1329 = vsel %vm689, %v1314, 0
        %v1332 = vsel %vm689, %v1315, 0
        %1334 = vmatprep.subr.bf16.mxu0 0
        %1335 = vmatpush1.bf16.msra.mxu0 %v1323
        %1336 = vmatprep.subr.bf16.mxu0 0
        %1337 = vmatpush1.bf16.msra.mxu0 %v1325
        %1338 = vmatprep.subr.bf16.mxu0 0
        %1339 = vmatpush1.bf16.msra.mxu0 0
        %1340 = vmatprep.subr.bf16.mxu0 0
        %1341 = vmatpush1.bf16.msra.mxu0 0
        %1342 = vmatprep.subr.bf16.mxu0 0
        %1343 = vmatpush1.bf16.msra.mxu0 0
        %1344 = vmatprep.subr.bf16.mxu0 0
        %1345 = vmatpush1.bf16.msra.mxu0 0
        %1346 = vmatprep.subr.bf16.mxu0 0
        %1347 = vmatpush1.bf16.msra.mxu0 0
        %1348 = vmatprep.subr.bf16.mxu0 0
        %1349 = vmatpush1.bf16.msra.mxu0 0
        %1350 = vmatprep.subr.bf16.mxu0 0
        %1351 = vmatpush1.bf16.msra.mxu0 0
        %1352 = vmatprep.subr.bf16.mxu0 0
        %1353 = vmatpush1.bf16.msra.mxu0 0
        %1354 = vmatprep.subr.bf16.mxu0 0
        %1355 = vmatpush1.bf16.msra.mxu0 0
        %1356 = vmatprep.subr.bf16.mxu0 0
        %1357 = vmatpush1.bf16.msra.mxu0 0
        %1358 = vmatprep.subr.bf16.mxu0 0
        %1359 = vmatpush1.bf16.msra.mxu0 0
        %1360 = vmatprep.subr.bf16.mxu0 0
        %1361 = vmatpush1.bf16.msra.mxu0 0
        %1362 = vmatprep.subr.bf16.mxu0 0
        %1363 = vmatpush1.bf16.msra.mxu0 0
        %1364 = vmatprep.subr.bf16.mxu0 0
        %1365 = vmatpush1.bf16.msra.mxu0 0
        %1366 = vmatprep.mubr.bf16.mxu0 0
        %1367 = vmatmul.mubr.bf16.gmra.mrb[0].mxu0 %v1329
        %v1368 = vpop.f32.mrb[0].mxu0
        %v1369 = vadd.f32 0.0, %v1368
        %v1370 = vpop.f32.mrb[0].mxu0
        %v1371 = vpop.f32.mrb[0].mxu0
        %v1372 = vadd.f32 0.0, %v1371
        %v1373 = vpop.f32.mrb[0].mxu0
        %1374 = vmatprep.mubr.bf16.mxu0 0
        %1375 = vmatmul.mubr.bf16.gmra.mrb[0].mxu0 %v1332
        %v1376 = vpop.f32.mrb[0].mxu0
        %v1377 = vadd.f32 0.0, %v1376
        %v1378 = vpop.f32.mrb[0].mxu0
        %v1379 = vpop.f32.mrb[0].mxu0
        %v1380 = vadd.f32 0.0, %v1379
        %v1381 = vpop.f32.mrb[0].mxu0
        %1382 = vdwg.mxu0
        %1383 = vrot.lane.b32.xlu0 %v850, 64
        %v1384 = vpop.permute.xlu0 %1383
        %1385 = vrot.lane.b32.xlu0 %v852, 64
        %v1386 = vpop.permute.xlu0 %1385
        %v1390 = vsel %vm689, %v1316, 0
        %v1393 = vsel %vm689, %v1317, 0
        %1395 = vmatprep.subr.bf16.mxu0 0
        %1396 = vmatpush1.bf16.msra.mxu0 %v1384
        %1397 = vmatprep.subr.bf16.mxu0 0
        %1398 = vmatpush1.bf16.msra.mxu0 %v1386
        %1399 = vmatprep.subr.bf16.mxu0 0
        %1400 = vmatpush1.bf16.msra.mxu0 0
        %1401 = vmatprep.subr.bf16.mxu0 0
        %1402 = vmatpush1.bf16.msra.mxu0 0
        %1403 = vmatprep.subr.bf16.mxu0 0
        %1404 = vmatpush1.bf16.msra.mxu0 0
        %1405 = vmatprep.subr.bf16.mxu0 0
        %1406 = vmatpush1.bf16.msra.mxu0 0
        %1407 = vmatprep.subr.bf16.mxu0 0
        %1408 = vmatpush1.bf16.msra.mxu0 0
        %1409 = vmatprep.subr.bf16.mxu0 0
        %1410 = vmatpush1.bf16.msra.mxu0 0
        %1411 = vmatprep.subr.bf16.mxu0 0
        %1412 = vmatpush1.bf16.msra.mxu0 0
        %1413 = vmatprep.subr.bf16.mxu0 0
        %1414 = vmatpush1.bf16.msra.mxu0 0
        %1415 = vmatprep.subr.bf16.mxu0 0
        %1416 = vmatpush1.bf16.msra.mxu0 0
        %1417 = vmatprep.subr.bf16.mxu0 0
        %1418 = vmatpush1.bf16.msra.mxu0 0
        %1419 = vmatprep.subr.bf16.mxu0 0
        %1420 = vmatpush1.bf16.msra.mxu0 0
        %1421 = vmatprep.subr.bf16.mxu0 0
        %1422 = vmatpush1.bf16.msra.mxu0 0
        %1423 = vmatprep.subr.bf16.mxu0 0
        %1424 = vmatpush1.bf16.msra.mxu0 0
        %1425 = vmatprep.subr.bf16.mxu0 0
        %1426 = vmatpush1.bf16.msra.mxu0 0
        %1427 = vmatprep.mubr.bf16.mxu0 0
        %1428 = vmatmul.mubr.bf16.gmra.mrb[0].mxu0 %v1390
        %v1429 = vpop.f32.mrb[0].mxu0
        %v1430 = vadd.f32 0.0, %v1429
        %v1431 = vpop.f32.mrb[0].mxu0
        %v1432 = vpop.f32.mrb[0].mxu0
        %v1433 = vadd.f32 0.0, %v1432
        %v1434 = vpop.f32.mrb[0].mxu0
        %1435 = vmatprep.mubr.bf16.mxu0 0
        %1436 = vmatmul.mubr.bf16.gmra.mrb[0].mxu0 %v1393
        %v1437 = vpop.f32.mrb[0].mxu0
        %v1438 = vadd.f32 0.0, %v1437
        %v1439 = vpop.f32.mrb[0].mxu0
        %v1440 = vpop.f32.mrb[0].mxu0
        %v1441 = vadd.f32 0.0, %v1440
        %v1442 = vpop.f32.mrb[0].mxu0
        %1443 = vdwg.mxu0
        %1444 = vrot.lane.b32.xlu0 %v854, 64
        %v1445 = vpop.permute.xlu0 %1444
        %1446 = vrot.lane.b32.xlu0 %v856, 64
        %v1447 = vpop.permute.xlu0 %1446
        %v1451 = vsel %vm689, %v1318, 0
        %v1454 = vsel %vm689, %v1319, 0
        %1456 = vmatprep.subr.bf16.mxu0 0
        %1457 = vmatpush1.bf16.msra.mxu0 %v1445
        %1458 = vmatprep.subr.bf16.mxu0 0
        %1459 = vmatpush1.bf16.msra.mxu0 %v1447
        %1460 = vmatprep.subr.bf16.mxu0 0
        %1461 = vmatpush1.bf16.msra.mxu0 0
        %1462 = vmatprep.subr.bf16.mxu0 0
        %1463 = vmatpush1.bf16.msra.mxu0 0
        %1464 = vmatprep.subr.bf16.mxu0 0
        %1465 = vmatpush1.bf16.msra.mxu0 0
        %1466 = vmatprep.subr.bf16.mxu0 0
        %1467 = vmatpush1.bf16.msra.mxu0 0
        %1468 = vmatprep.subr.bf16.mxu0 0
        %1469 = vmatpush1.bf16.msra.mxu0 0
        %1470 = vmatprep.subr.bf16.mxu0 0
        %1471 = vmatpush1.bf16.msra.mxu0 0
        %1472 = vmatprep.subr.bf16.mxu0 0
        %1473 = vmatpush1.bf16.msra.mxu0 0
        %1474 = vmatprep.subr.bf16.mxu0 0
        %1475 = vmatpush1.bf16.msra.mxu0 0
        %1476 = vmatprep.subr.bf16.mxu0 0
        %1477 = vmatpush1.bf16.msra.mxu0 0
        %1478 = vmatprep.subr.bf16.mxu0 0
        %1479 = vmatpush1.bf16.msra.mxu0 0
        %1480 = vmatprep.subr.bf16.mxu0 0
        %1481 = vmatpush1.bf16.msra.mxu0 0
        %1482 = vmatprep.subr.bf16.mxu0 0
        %1483 = vmatpush1.bf16.msra.mxu0 0
        %1484 = vmatprep.subr.bf16.mxu0 0
        %1485 = vmatpush1.bf16.msra.mxu0 0
        %1486 = vmatprep.subr.bf16.mxu0 0
        %1487 = vmatpush1.bf16.msra.mxu0 0
        %1488 = vmatprep.mubr.bf16.mxu0 0
        %1489 = vmatmul.mubr.bf16.gmra.mrb[0].mxu0 %v1451
        %v1490 = vpop.f32.mrb[0].mxu0
        %v1491 = vadd.f32 0.0, %v1490
        %v1492 = vpop.f32.mrb[0].mxu0
        %v1493 = vpop.f32.mrb[0].mxu0
        %v1494 = vadd.f32 0.0, %v1493
        %v1495 = vpop.f32.mrb[0].mxu0
        %1496 = vmatprep.mubr.bf16.mxu0 0
        %1497 = vmatmul.mubr.bf16.gmra.mrb[0].mxu0 %v1454
        %v1498 = vpop.f32.mrb[0].mxu0
        %v1499 = vadd.f32 0.0, %v1498
        %v1500 = vpop.f32.mrb[0].mxu0
        %v1501 = vpop.f32.mrb[0].mxu0
        %v1502 = vadd.f32 0.0, %v1501
        %v1503 = vpop.f32.mrb[0].mxu0
        %1504 = vdwg.mxu0
        %1505 = vrot.lane.b32.xlu0 %v858, 64
        %v1506 = vpop.permute.xlu0 %1505
        %1507 = vrot.lane.b32.xlu0 %v860, 64
        %v1508 = vpop.permute.xlu0 %1507
        %v1512 = vsel %vm689, %v1320, 0
        %v1515 = vsel %vm689, %v1321, 0
        %1517 = vmatprep.subr.bf16.mxu0 0
        %1518 = vmatpush1.bf16.msra.mxu0 %v1506
        %1519 = vmatprep.subr.bf16.mxu0 0
        %1520 = vmatpush1.bf16.msra.mxu0 %v1508
        %1521 = vmatprep.subr.bf16.mxu0 0
        %1522 = vmatpush1.bf16.msra.mxu0 0
        %1523 = vmatprep.subr.bf16.mxu0 0
        %1524 = vmatpush1.bf16.msra.mxu0 0
        %1525 = vmatprep.subr.bf16.mxu0 0
        %1526 = vmatpush1.bf16.msra.mxu0 0
        %1527 = vmatprep.subr.bf16.mxu0 0
        %1528 = vmatpush1.bf16.msra.mxu0 0
        %1529 = vmatprep.subr.bf16.mxu0 0
        %1530 = vmatpush1.bf16.msra.mxu0 0
        %1531 = vmatprep.subr.bf16.mxu0 0
        %1532 = vmatpush1.bf16.msra.mxu0 0
        %1533 = vmatprep.subr.bf16.mxu0 0
        %1534 = vmatpush1.bf16.msra.mxu0 0
        %1535 = vmatprep.subr.bf16.mxu0 0
        %1536 = vmatpush1.bf16.msra.mxu0 0
        %1537 = vmatprep.subr.bf16.mxu0 0
        %1538 = vmatpush1.bf16.msra.mxu0 0
        %1539 = vmatprep.subr.bf16.mxu0 0
        %1540 = vmatpush1.bf16.msra.mxu0 0
        %1541 = vmatprep.subr.bf16.mxu0 0
        %1542 = vmatpush1.bf16.msra.mxu0 0
        %1543 = vmatprep.subr.bf16.mxu0 0
        %1544 = vmatpush1.bf16.msra.mxu0 0
        %1545 = vmatprep.subr.bf16.mxu0 0
        %1546 = vmatpush1.bf16.msra.mxu0 0
        %1547 = vmatprep.subr.bf16.mxu0 0
        %1548 = vmatpush1.bf16.msra.mxu0 0
        %1549 = vmatprep.mubr.bf16.mxu0 0
        %1550 = vmatmul.mubr.bf16.gmra.mrb[0].mxu0 %v1512
        %v1551 = vpop.f32.mrb[0].mxu0
        %v1552 = vadd.f32 0.0, %v1551
        %v1553 = vpop.f32.mrb[0].mxu0
        %v1554 = vpop.f32.mrb[0].mxu0
        %v1555 = vadd.f32 0.0, %v1554
        %v1556 = vpop.f32.mrb[0].mxu0
        %1557 = vmatprep.mubr.bf16.mxu0 0
        %1558 = vmatmul.mubr.bf16.gmra.mrb[0].mxu0 %v1515
        %v1559 = vpop.f32.mrb[0].mxu0
        %v1560 = vadd.f32 0.0, %v1559
        %v1561 = vpop.f32.mrb[0].mxu0
        %v1562 = vpop.f32.mrb[0].mxu0
        %v1563 = vadd.f32 0.0, %v1562
        %v1564 = vpop.f32.mrb[0].mxu0
        %1565 = vdwg.mxu0
        %1570 = vrot.lane.b32.xlu0 %v1430, 8
        %v1571 = vpop.permute.xlu0 %1570
        %1572 = vrot.lane.b32.xlu0 %v1433, 8
        %v1573 = vpop.permute.xlu0 %1572
        %1574 = vrot.lane.b32.xlu0 %v1438, 8
        %v1575 = vpop.permute.xlu0 %1574
        %1576 = vrot.lane.b32.xlu0 %v1441, 8
        %v1577 = vpop.permute.xlu0 %1576
        %1586 = vrot.lane.b32.xlu0 %v1491, 16
        %v1587 = vpop.permute.xlu0 %1586
        %1588 = vrot.lane.b32.xlu0 %v1494, 16
        %v1589 = vpop.permute.xlu0 %1588
        %1590 = vrot.lane.b32.xlu0 %v1499, 16
        %v1591 = vpop.permute.xlu0 %1590
        %1592 = vrot.lane.b32.xlu0 %v1502, 16
        %v1593 = vpop.permute.xlu0 %1592
        %1602 = vrot.lane.b32.xlu0 %v1552, 24
        %v1603 = vpop.permute.xlu0 %1602
        %1604 = vrot.lane.b32.xlu0 %v1555, 24
        %v1605 = vpop.permute.xlu0 %1604
        %1606 = vrot.lane.b32.xlu0 %v1560, 24
        %v1607 = vpop.permute.xlu0 %1606
        %1608 = vrot.lane.b32.xlu0 %v1563, 24
        %v1609 = vpop.permute.xlu0 %1608
        %v1614 = vsel %vm865, %v1369, %v1571
        %v1615 = vsel %vm865, %v1372, %v1573
        %v1616 = vsel %vm865, %v1377, %v1575
        %v1617 = vsel %vm865, %v1380, %v1577
        %v1618 = vsel %vm596, %v1614, %v1587
        %v1619 = vsel %vm596, %v1615, %v1589
        %v1620 = vsel %vm596, %v1616, %v1591
        %v1621 = vsel %vm596, %v1617, %v1593
        %vm1622 = vcmask 195584
        %v1623 = vsel %vm1622, %v1618, %v1603
        %v1624 = vsel %vm1622, %v1619, %v1605
        %v1625 = vsel %vm1622, %v1620, %v1607
        %v1626 = vsel %vm1622, %v1621, %v1609
        %v1627 = vpack.c.bf16 %v1624, %v1623
        %v1628 = vpack.c.bf16 %v1626, %v1625
        %v1629 = vld [vmem:[%s8] sm:$0xf]
        %v1630 = vld [vmem:[%s8 + $0x4] sm:$0xf]
        %v1631 = vld [vmem:[%s8 + $0x8] sm:$0xf]
        %v1632 = vld [vmem:[%s8 + $0xc] sm:$0xf]
        %v1633 = vld [vmem:[%s9] sm:$0x1]
        %v1635 = vlaneseq
        %v1636 = vshrl.u32 %v1635, 7
        %v1637 = vsub.s32 0, %v1636
        %v1638 = vrot.slane %v1633, %v1637
        %v1644 = vunpack.c.l.b16 %v1629
        %v1645 = vunpack.c.l.b16 %v1630
        %v1646 = vunpack.c.l.b16 %v1631
        %v1647 = vunpack.c.l.b16 %v1632
        %v1648 = vpack.c.b16 %v1645, %v1644
        %v1649 = vpack.c.b16 %v1647, %v1646
        %v1653 = vsel %vm689, %v1627, 0
        %v1656 = vsel %vm689, %v1628, 0
        %1658 = vmatprep.subr.bf16.mxu0 0
        %1659 = vmatpush1.bf16.msra.mxu0 %v1648
        %1660 = vmatprep.subr.bf16.mxu0 0
        %1661 = vmatpush1.bf16.msra.mxu0 %v1649
        %1662 = vmatprep.subr.bf16.mxu0 0
        %1663 = vmatpush1.bf16.msra.mxu0 0
        %1664 = vmatprep.subr.bf16.mxu0 0
        %1665 = vmatpush1.bf16.msra.mxu0 0
        %1666 = vmatprep.subr.bf16.mxu0 0
        %1667 = vmatpush1.bf16.msra.mxu0 0
        %1668 = vmatprep.subr.bf16.mxu0 0
        %1669 = vmatpush1.bf16.msra.mxu0 0
        %1670 = vmatprep.subr.bf16.mxu0 0
        %1671 = vmatpush1.bf16.msra.mxu0 0
        %1672 = vmatprep.subr.bf16.mxu0 0
        %1673 = vmatpush1.bf16.msra.mxu0 0
        %1674 = vmatprep.subr.bf16.mxu0 0
        %1675 = vmatpush1.bf16.msra.mxu0 0
        %1676 = vmatprep.subr.bf16.mxu0 0
        %1677 = vmatpush1.bf16.msra.mxu0 0
        %1678 = vmatprep.subr.bf16.mxu0 0
        %1679 = vmatpush1.bf16.msra.mxu0 0
        %1680 = vmatprep.subr.bf16.mxu0 0
        %1681 = vmatpush1.bf16.msra.mxu0 0
        %1682 = vmatprep.subr.bf16.mxu0 0
        %1683 = vmatpush1.bf16.msra.mxu0 0
        %1684 = vmatprep.subr.bf16.mxu0 0
        %1685 = vmatpush1.bf16.msra.mxu0 0
        %1686 = vmatprep.subr.bf16.mxu0 0
        %1687 = vmatpush1.bf16.msra.mxu0 0
        %1688 = vmatprep.subr.bf16.mxu0 0
        %1689 = vmatpush1.bf16.msra.mxu0 0
        %1690 = vmatprep.mubr.bf16.mxu0 0
        %1691 = vmatmul.mubr.bf16.gmra.mrb[0].mxu0 %v1653
        %v1692 = vpop.f32.mrb[0].mxu0
        %v1693 = vadd.f32 %v1638, %v1692
        %v1694 = vpop.f32.mrb[0].mxu0
        %v1695 = vpop.f32.mrb[0].mxu0
        %v1696 = vadd.f32 %v1638, %v1695
        %v1697 = vpop.f32.mrb[0].mxu0
        %1698 = vmatprep.mubr.bf16.mxu0 0
        %1699 = vmatmul.mubr.bf16.gmra.mrb[0].mxu0 %v1656
        %v1700 = vpop.f32.mrb[0].mxu0
        %v1701 = vadd.f32 %v1638, %v1700
        %v1702 = vpop.f32.mrb[0].mxu0
        %v1703 = vpop.f32.mrb[0].mxu0
        %v1704 = vadd.f32 %v1638, %v1703
        %v1705 = vpop.f32.mrb[0].mxu0
        %1706 = vdwg.mxu0
        %v1707 = vadd.f32 %v761, %v1693
        %v1708 = vadd.f32 %v762, %v1696
        %v1709 = vadd.f32 %v763, %v1701
        %v1710 = vadd.f32 %v764, %v1704
        %v1711 = vld [vmem:[%s10] sm:$0x1]
        %v1712 = vld [vmem:[%s11] sm:$0x1]
        %v1713 = vsel %vm689, %v1707, 0.0
        %1714 = vadd.xlane.f32.xlu0 %v1713
        %v1715 = vpop.xlane.xlu0 %1714
        %v1716 = vsel %vm689, %v1708, 0.0
        %1717 = vadd.xlane.f32.xlu0 %v1716
        %v1718 = vpop.xlane.xlu0 %1717
        %v1719 = vsel %vm689, %v1709, 0.0
        %1720 = vadd.xlane.f32.xlu0 %v1719
        %v1721 = vpop.xlane.xlu0 %1720
        %v1722 = vsel %vm689, %v1710, 0.0
        %1723 = vadd.xlane.f32.xlu0 %v1722
        %v1724 = vpop.xlane.xlu0 %1723
        %v1725 = vrcp.pop 32.0
        %v1726 = vmul.f32 %v1715, %v1725
        %v1727 = vmul.f32 %v1718, %v1725
        %v1728 = vmul.f32 %v1721, %v1725
        %v1729 = vmul.f32 %v1724, %v1725
        %v1730 = vsub.f32 %v1707, %v1726
        %v1731 = vsub.f32 %v1708, %v1727
        %v1732 = vsub.f32 %v1709, %v1728
        %v1733 = vsub.f32 %v1710, %v1729
        %v1734 = vmul.f32 %v1730, %v1730
        %v1735 = vmul.f32 %v1731, %v1731
        %v1736 = vmul.f32 %v1732, %v1732
        %v1737 = vmul.f32 %v1733, %v1733
        %v1738 = vsel %vm689, %v1734, 0.0
        %1739 = vadd.xlane.f32.xlu0 %v1738
        %v1740 = vpop.xlane.xlu0 %1739
        %v1741 = vsel %vm689, %v1735, 0.0
        %1742 = vadd.xlane.f32.xlu0 %v1741
        %v1743 = vpop.xlane.xlu0 %1742
        %v1744 = vsel %vm689, %v1736, 0.0
        %1745 = vadd.xlane.f32.xlu0 %v1744
        %v1746 = vpop.xlane.xlu0 %1745
        %v1747 = vsel %vm689, %v1737, 0.0
        %1748 = vadd.xlane.f32.xlu0 %v1747
        %v1749 = vpop.xlane.xlu0 %1748
        %v1750 = vmul.f32 %v1740, %v1725
        %v1751 = vmul.f32 %v1743, %v1725
        %v1752 = vmul.f32 %v1746, %v1725
        %v1753 = vmul.f32 %v1749, %v1725
        %v1754 = vadd.f32 %v1750, 1e-05
        %v1755 = vadd.f32 %v1751, 1e-05
        %v1756 = vadd.f32 %v1752, 1e-05
        %v1757 = vadd.f32 %v1753, 1e-05
        %v1758 = vrsqrt.pop %v1754
        %v1759 = vrsqrt.pop %v1755
        %v1760 = vrsqrt.pop %v1756
        %v1761 = vrsqrt.pop %v1757
        %v1762 = vmul.f32 %v1730, %v1758
        %v1763 = vmul.f32 %v1731, %v1759
        %v1764 = vmul.f32 %v1732, %v1760
        %v1765 = vmul.f32 %v1733, %v1761
        %v1767 = vlaneseq
        %v1768 = vshrl.u32 %v1767, 7
        %v1769 = vsub.s32 0, %v1768
        %v1770 = vrot.slane %v1711, %v1769
        %v1772 = vmul.f32 %v1762, %v1770
        %v1773 = vmul.f32 %v1763, %v1770
        %v1774 = vmul.f32 %v1764, %v1770
        %v1775 = vmul.f32 %v1765, %v1770
        %v1777 = vlaneseq
        %v1778 = vshrl.u32 %v1777, 7
        %v1779 = vsub.s32 0, %v1778
        %v1780 = vrot.slane %v1712, %v1779
        %v1782 = vadd.f32 %v1772, %v1780
        %v1783 = vadd.f32 %v1773, %v1780
        %v1784 = vadd.f32 %v1774, %v1780
        %v1785 = vadd.f32 %v1775, %v1780
        %v1786 = vpack.c.bf16 %v1783, %v1782
        %v1787 = vpack.c.bf16 %v1785, %v1784
        %v1788 = vld [vmem:[%s12] sm:$0xf]
        %v1789 = vld [vmem:[%s12 + $0x4] sm:$0xf]
        %v1790 = vld [vmem:[%s12 + $0x8] sm:$0xf]
        %v1791 = vld [vmem:[%s12 + $0xc] sm:$0xf]
        %v1792 = vld [vmem:[%s13] sm:$0x1]
        %v1794 = vlaneseq
        %v1795 = vshrl.u32 %v1794, 7
        %v1796 = vsub.s32 0, %v1795
        %v1797 = vrot.slane %v1792, %v1796
        %v1803 = vunpack.c.l.b16 %v1788
        %v1804 = vunpack.c.l.b16 %v1789
        %v1805 = vunpack.c.l.b16 %v1790
        %v1806 = vunpack.c.l.b16 %v1791
        %v1807 = vpack.c.b16 %v1804, %v1803
        %v1808 = vpack.c.b16 %v1806, %v1805
        %v1812 = vsel %vm689, %v1786, 0
        %v1815 = vsel %vm689, %v1787, 0
        %1817 = vmatprep.subr.bf16.mxu0 0
        %1818 = vmatpush1.bf16.msra.mxu0 %v1807
        %1819 = vmatprep.subr.bf16.mxu0 0
        %1820 = vmatpush1.bf16.msra.mxu0 %v1808
        %1821 = vmatprep.subr.bf16.mxu0 0
        %1822 = vmatpush1.bf16.msra.mxu0 0
        %1823 = vmatprep.subr.bf16.mxu0 0
        %1824 = vmatpush1.bf16.msra.mxu0 0
        %1825 = vmatprep.subr.bf16.mxu0 0
        %1826 = vmatpush1.bf16.msra.mxu0 0
        %1827 = vmatprep.subr.bf16.mxu0 0
        %1828 = vmatpush1.bf16.msra.mxu0 0
        %1829 = vmatprep.subr.bf16.mxu0 0
        %1830 = vmatpush1.bf16.msra.mxu0 0
        %1831 = vmatprep.subr.bf16.mxu0 0
        %1832 = vmatpush1.bf16.msra.mxu0 0
        %1833 = vmatprep.subr.bf16.mxu0 0
        %1834 = vmatpush1.bf16.msra.mxu0 0
        %1835 = vmatprep.subr.bf16.mxu0 0
        %1836 = vmatpush1.bf16.msra.mxu0 0
        %1837 = vmatprep.subr.bf16.mxu0 0
        %1838 = vmatpush1.bf16.msra.mxu0 0
        %1839 = vmatprep.subr.bf16.mxu0 0
        %1840 = vmatpush1.bf16.msra.mxu0 0
        %1841 = vmatprep.subr.bf16.mxu0 0
        %1842 = vmatpush1.bf16.msra.mxu0 0
        %1843 = vmatprep.subr.bf16.mxu0 0
        %1844 = vmatpush1.bf16.msra.mxu0 0
        %1845 = vmatprep.subr.bf16.mxu0 0
        %1846 = vmatpush1.bf16.msra.mxu0 0
        %1847 = vmatprep.subr.bf16.mxu0 0
        %1848 = vmatpush1.bf16.msra.mxu0 0
        %1849 = vmatprep.mubr.bf16.mxu0 0
        %1850 = vmatmul.mubr.bf16.gmra.mrb[0].mxu0 %v1812
        %v1851 = vpop.f32.mrb[0].mxu0
        %v1852 = vadd.f32 %v1797, %v1851
        %v1853 = vpop.f32.mrb[0].mxu0
        %v1854 = vpop.f32.mrb[0].mxu0
        %v1855 = vadd.f32 %v1797, %v1854
        %v1856 = vpop.f32.mrb[0].mxu0
        %1857 = vmatprep.mubr.bf16.mxu0 0
        %1858 = vmatmul.mubr.bf16.gmra.mrb[0].mxu0 %v1815
        %v1859 = vpop.f32.mrb[0].mxu0
        %v1860 = vadd.f32 %v1797, %v1859
        %v1861 = vpop.f32.mrb[0].mxu0
        %v1862 = vpop.f32.mrb[0].mxu0
        %v1863 = vadd.f32 %v1797, %v1862
        %v1864 = vpop.f32.mrb[0].mxu0
        %1865 = vdwg.mxu0
        %v1866 = vmax.f32 %v1852, 0.0
        %v1867 = vmax.f32 %v1855, 0.0
        %v1868 = vmax.f32 %v1860, 0.0
        %v1869 = vmax.f32 %v1863, 0.0
        %v1870 = vpack.c.bf16 %v1867, %v1866
        %v1871 = vpack.c.bf16 %v1869, %v1868
        %v1872 = vld [vmem:[%s14] sm:$0xf]
        %v1873 = vld [vmem:[%s14 + $0x4] sm:$0xf]
        %v1874 = vld [vmem:[%s14 + $0x8] sm:$0xf]
        %v1875 = vld [vmem:[%s14 + $0xc] sm:$0xf]
        %v1876 = vld [vmem:[%s15] sm:$0x1]
        %v1878 = vlaneseq
        %v1879 = vshrl.u32 %v1878, 7
        %v1880 = vsub.s32 0, %v1879
        %v1881 = vrot.slane %v1876, %v1880
        %v1887 = vunpack.c.l.b16 %v1872
        %v1888 = vunpack.c.l.b16 %v1873
        %v1889 = vunpack.c.l.b16 %v1874
        %v1890 = vunpack.c.l.b16 %v1875
        %v1891 = vpack.c.b16 %v1888, %v1887
        %v1892 = vpack.c.b16 %v1890, %v1889
        %v1896 = vsel %vm689, %v1870, 0
        %v1899 = vsel %vm689, %v1871, 0
        %1901 = vmatprep.subr.bf16.mxu0 0
        %1902 = vmatpush1.bf16.msra.mxu0 %v1891
        %1903 = vmatprep.subr.bf16.mxu0 0
        %1904 = vmatpush1.bf16.msra.mxu0 %v1892
        %1905 = vmatprep.subr.bf16.mxu0 0
        %1906 = vmatpush1.bf16.msra.mxu0 0
        %1907 = vmatprep.subr.bf16.mxu0 0
        %1908 = vmatpush1.bf16.msra.mxu0 0
        %1909 = vmatprep.subr.bf16.mxu0 0
        %1910 = vmatpush1.bf16.msra.mxu0 0
        %1911 = vmatprep.subr.bf16.mxu0 0
        %1912 = vmatpush1.bf16.msra.mxu0 0
        %1913 = vmatprep.subr.bf16.mxu0 0
        %1914 = vmatpush1.bf16.msra.mxu0 0
        %1915 = vmatprep.subr.bf16.mxu0 0
        %1916 = vmatpush1.bf16.msra.mxu0 0
        %1917 = vmatprep.subr.bf16.mxu0 0
        %1918 = vmatpush1.bf16.msra.mxu0 0
        %1919 = vmatprep.subr.bf16.mxu0 0
        %1920 = vmatpush1.bf16.msra.mxu0 0
        %1921 = vmatprep.subr.bf16.mxu0 0
        %1922 = vmatpush1.bf16.msra.mxu0 0
        %1923 = vmatprep.subr.bf16.mxu0 0
        %1924 = vmatpush1.bf16.msra.mxu0 0
        %1925 = vmatprep.subr.bf16.mxu0 0
        %1926 = vmatpush1.bf16.msra.mxu0 0
        %1927 = vmatprep.subr.bf16.mxu0 0
        %1928 = vmatpush1.bf16.msra.mxu0 0
        %1929 = vmatprep.subr.bf16.mxu0 0
        %1930 = vmatpush1.bf16.msra.mxu0 0
        %1931 = vmatprep.subr.bf16.mxu0 0
        %1932 = vmatpush1.bf16.msra.mxu0 0
        %1933 = vmatprep.mubr.bf16.mxu0 0
        %1934 = vmatmul.mubr.bf16.gmra.mrb[0].mxu0 %v1896
        %v1935 = vpop.f32.mrb[0].mxu0
        %v1936 = vadd.f32 %v1881, %v1935
        %v1937 = vpop.f32.mrb[0].mxu0
        %v1938 = vpop.f32.mrb[0].mxu0
        %v1939 = vadd.f32 %v1881, %v1938
        %v1940 = vpop.f32.mrb[0].mxu0
        %1941 = vmatprep.mubr.bf16.mxu0 0
        %1942 = vmatmul.mubr.bf16.gmra.mrb[0].mxu0 %v1899
        %v1943 = vpop.f32.mrb[0].mxu0
        %v1944 = vadd.f32 %v1881, %v1943
        %v1945 = vpop.f32.mrb[0].mxu0
        %v1946 = vpop.f32.mrb[0].mxu0
        %v1947 = vadd.f32 %v1881, %v1946
        %v1948 = vpop.f32.mrb[0].mxu0
        %1949 = vdwg.mxu0
        %v1950 = vadd.f32 %v1782, %v1936
        %v1951 = vadd.f32 %v1783, %v1939
        %v1952 = vadd.f32 %v1784, %v1944
        %v1953 = vadd.f32 %v1785, %v1947
        %v1954 = vld [vmem:[%s16] sm:$0x1]
        %v1955 = vld [vmem:[%s17] sm:$0x1]
        %v1956 = vsel %vm689, %v1950, 0.0
        %1957 = vadd.xlane.f32.xlu0 %v1956
        %v1958 = vpop.xlane.xlu0 %1957
        %v1959 = vsel %vm689, %v1951, 0.0
        %1960 = vadd.xlane.f32.xlu0 %v1959
        %v1961 = vpop.xlane.xlu0 %1960
        %v1962 = vsel %vm689, %v1952, 0.0
        %1963 = vadd.xlane.f32.xlu0 %v1962
        %v1964 = vpop.xlane.xlu0 %1963
        %v1965 = vsel %vm689, %v1953, 0.0
        %1966 = vadd.xlane.f32.xlu0 %v1965
        %v1967 = vpop.xlane.xlu0 %1966
        %v1968 = vmul.f32 %v1958, %v1725
        %v1969 = vmul.f32 %v1961, %v1725
        %v1970 = vmul.f32 %v1964, %v1725
        %v1971 = vmul.f32 %v1967, %v1725
        %v1972 = vsub.f32 %v1950, %v1968
        %v1973 = vsub.f32 %v1951, %v1969
        %v1974 = vsub.f32 %v1952, %v1970
        %v1975 = vsub.f32 %v1953, %v1971
        %v1976 = vmul.f32 %v1972, %v1972
        %v1977 = vmul.f32 %v1973, %v1973
        %v1978 = vmul.f32 %v1974, %v1974
        %v1979 = vmul.f32 %v1975, %v1975
        %v1980 = vsel %vm689, %v1976, 0.0
        %1981 = vadd.xlane.f32.xlu0 %v1980
        %v1982 = vpop.xlane.xlu0 %1981
        %v1983 = vsel %vm689, %v1977, 0.0
        %1984 = vadd.xlane.f32.xlu0 %v1983
        %v1985 = vpop.xlane.xlu0 %1984
        %v1986 = vsel %vm689, %v1978, 0.0
        %1987 = vadd.xlane.f32.xlu0 %v1986
        %v1988 = vpop.xlane.xlu0 %1987
        %v1989 = vsel %vm689, %v1979, 0.0
        %1990 = vadd.xlane.f32.xlu0 %v1989
        %v1991 = vpop.xlane.xlu0 %1990
        %v1992 = vmul.f32 %v1982, %v1725
        %v1993 = vmul.f32 %v1985, %v1725
        %v1994 = vmul.f32 %v1988, %v1725
        %v1995 = vmul.f32 %v1991, %v1725
        %v1996 = vadd.f32 %v1992, 1e-05
        %v1997 = vadd.f32 %v1993, 1e-05
        %v1998 = vadd.f32 %v1994, 1e-05
        %v1999 = vadd.f32 %v1995, 1e-05
        %v2000 = vrsqrt.pop %v1996
        %v2001 = vrsqrt.pop %v1997
        %v2002 = vrsqrt.pop %v1998
        %v2003 = vrsqrt.pop %v1999
        %v2004 = vmul.f32 %v1972, %v2000
        %v2005 = vmul.f32 %v1973, %v2001
        %v2006 = vmul.f32 %v1974, %v2002
        %v2007 = vmul.f32 %v1975, %v2003
        %v2009 = vlaneseq
        %v2010 = vshrl.u32 %v2009, 7
        %v2011 = vsub.s32 0, %v2010
        %v2012 = vrot.slane %v1954, %v2011
        %v2014 = vmul.f32 %v2004, %v2012
        %v2015 = vmul.f32 %v2005, %v2012
        %v2016 = vmul.f32 %v2006, %v2012
        %v2017 = vmul.f32 %v2007, %v2012
        %v2019 = vlaneseq
        %v2020 = vshrl.u32 %v2019, 7
        %v2021 = vsub.s32 0, %v2020
        %v2022 = vrot.slane %v1955, %v2021
        %v2024 = vadd.f32 %v2014, %v2022
        %v2025 = vadd.f32 %v2015, %v2022
        %v2026 = vadd.f32 %v2016, %v2022
        %v2027 = vadd.f32 %v2017, %v2022
        %v2028 = vpack.c.bf16 %v2025, %v2024
        %v2029 = vpack.c.bf16 %v2027, %v2026
        %s2030 = scalar_lea.vmem %s6, 16
        %v2031 = vld [vmem:[%s2030] sm:$0xf]
        %v2032 = vld [vmem:[%s2030 + $0x4] sm:$0xf]
        %v2033 = vld [vmem:[%s2030 + $0x8] sm:$0xf]
        %v2034 = vld [vmem:[%s2030 + $0xc] sm:$0xf]
        %s2035 = scalar_lea.vmem %s7, 1
        %v2036 = vld [vmem:[%s2035] sm:$0x1]
        %v2038 = vlaneseq
        %v2039 = vshrl.u32 %v2038, 7
        %v2040 = vsub.s32 0, %v2039
        %v2041 = vrot.slane %v2036, %v2040
        %v2047 = vunpack.c.l.b16 %v2031
        %v2048 = vunpack.c.l.b16 %v2032
        %v2049 = vunpack.c.l.b16 %v2033
        %v2050 = vunpack.c.l.b16 %v2034
        %v2051 = vpack.c.b16 %v2048, %v2047
        %v2052 = vpack.c.b16 %v2050, %v2049
        %v2056 = vsel %vm689, %v2028, 0
        %v2059 = vsel %vm689, %v2029, 0
        %2061 = vmatprep.subr.bf16.mxu0 0
        %2062 = vmatpush1.bf16.msra.mxu0 %v2051
        %2063 = vmatprep.subr.bf16.mxu0 0
        %2064 = vmatpush1.bf16.msra.mxu0 %v2052
        %2065 = vmatprep.subr.bf16.mxu0 0
        %2066 = vmatpush1.bf16.msra.mxu0 0
        %2067 = vmatprep.subr.bf16.mxu0 0
        %2068 = vmatpush1.bf16.msra.mxu0 0
        %2069 = vmatprep.subr.bf16.mxu0 0
        %2070 = vmatpush1.bf16.msra.mxu0 0
        %2071 = vmatprep.subr.bf16.mxu0 0
        %2072 = vmatpush1.bf16.msra.mxu0 0
        %2073 = vmatprep.subr.bf16.mxu0 0
        %2074 = vmatpush1.bf16.msra.mxu0 0
        %2075 = vmatprep.subr.bf16.mxu0 0
        %2076 = vmatpush1.bf16.msra.mxu0 0
        %2077 = vmatprep.subr.bf16.mxu0 0
        %2078 = vmatpush1.bf16.msra.mxu0 0
        %2079 = vmatprep.subr.bf16.mxu0 0
        %2080 = vmatpush1.bf16.msra.mxu0 0
        %2081 = vmatprep.subr.bf16.mxu0 0
        %2082 = vmatpush1.bf16.msra.mxu0 0
        %2083 = vmatprep.subr.bf16.mxu0 0
        %2084 = vmatpush1.bf16.msra.mxu0 0
        %2085 = vmatprep.subr.bf16.mxu0 0
        %2086 = vmatpush1.bf16.msra.mxu0 0
        %2087 = vmatprep.subr.bf16.mxu0 0
        %2088 = vmatpush1.bf16.msra.mxu0 0
        %2089 = vmatprep.subr.bf16.mxu0 0
        %2090 = vmatpush1.bf16.msra.mxu0 0
        %2091 = vmatprep.subr.bf16.mxu0 0
        %2092 = vmatpush1.bf16.msra.mxu0 0
        %2093 = vmatprep.mubr.bf16.mxu0 0
        %2094 = vmatmul.mubr.bf16.gmra.mrb[0].mxu0 %v2056
        %v2095 = vpop.f32.mrb[0].mxu0
        %v2096 = vadd.f32 %v2041, %v2095
        %v2097 = vpop.f32.mrb[0].mxu0
        %v2098 = vpop.f32.mrb[0].mxu0
        %v2099 = vadd.f32 %v2041, %v2098
        %v2100 = vpop.f32.mrb[0].mxu0
        %2101 = vmatprep.mubr.bf16.mxu0 0
        %2102 = vmatmul.mubr.bf16.gmra.mrb[0].mxu0 %v2059
        %v2103 = vpop.f32.mrb[0].mxu0
        %v2104 = vadd.f32 %v2041, %v2103
        %v2105 = vpop.f32.mrb[0].mxu0
        %v2106 = vpop.f32.mrb[0].mxu0
        %v2107 = vadd.f32 %v2041, %v2106
        %v2108 = vpop.f32.mrb[0].mxu0
        %2109 = vdwg.mxu0
        %v2110 = vpack.c.bf16 %v2099, %v2096
        %v2111 = vpack.c.bf16 %v2107, %v2104
        %2114 = vrot.lane.b32.xlu0 %v2110, 120
        %v2115 = vpop.permute.xlu0 %2114
        %2116 = vrot.lane.b32.xlu0 %v2111, 120
        %v2117 = vpop.permute.xlu0 %2116
        %2118 = vrot.lane.b32.xlu0 %v2110, 112
        %v2119 = vpop.permute.xlu0 %2118
        %2120 = vrot.lane.b32.xlu0 %v2111, 112
        %v2121 = vpop.permute.xlu0 %2120
        %2122 = vrot.lane.b32.xlu0 %v2110, 104
        %v2123 = vpop.permute.xlu0 %2122
        %2124 = vrot.lane.b32.xlu0 %v2111, 104
        %v2125 = vpop.permute.xlu0 %2124
        %2126 = vrot.lane.b32.xlu0 %v2110, 96
        %v2127 = vpop.permute.xlu0 %2126
        %2128 = vrot.lane.b32.xlu0 %v2111, 96
        %v2129 = vpop.permute.xlu0 %2128
        %v2131 = vsel %vm865, %v2110, 0
        %v2134 = vsel %vm865, %v2111, 0
        %v2137 = vsel %vm865, %v2127, 0
        %v2140 = vsel %vm865, %v2129, 0
        %2142 = vmatprep.subr.bf16.mxu0 0
        %2143 = vmatpush1.bf16.xpose.msra.mxu0 %v2137
        %2144 = vmatprep.subr.bf16.mxu0 0
        %2145 = vmatpush1.bf16.xpose.msra.mxu0 %v2140
        %2146 = vmatprep.subr.bf16.mxu0 0
        %2147 = vmatpush1.bf16.xpose.msra.mxu0 0
        %2148 = vmatprep.subr.bf16.mxu0 0
        %2149 = vmatpush1.bf16.xpose.msra.mxu0 0
        %2150 = vmatprep.subr.bf16.mxu0 0
        %2151 = vmatpush1.bf16.xpose.msra.mxu0 0
        %2152 = vmatprep.subr.bf16.mxu0 0
        %2153 = vmatpush1.bf16.xpose.msra.mxu0 0
        %2154 = vmatprep.subr.bf16.mxu0 0
        %2155 = vmatpush1.bf16.xpose.msra.mxu0 0
        %2156 = vmatprep.subr.bf16.mxu0 0
        %2157 = vmatpush1.bf16.xpose.msra.mxu0 0
        %2158 = vmatprep.subr.bf16.mxu0 0
        %2159 = vmatpush1.bf16.xpose.msra.mxu0 0
        %2160 = vmatprep.subr.bf16.mxu0 0
        %2161 = vmatpush1.bf16.xpose.msra.mxu0 0
        %2162 = vmatprep.subr.bf16.mxu0 0
        %2163 = vmatpush1.bf16.xpose.msra.mxu0 0
        %2164 = vmatprep.subr.bf16.mxu0 0
        %2165 = vmatpush1.bf16.xpose.msra.mxu0 0
        %2166 = vmatprep.subr.bf16.mxu0 0
        %2167 = vmatpush1.bf16.xpose.msra.mxu0 0
        %2168 = vmatprep.subr.bf16.mxu0 0
        %2169 = vmatpush1.bf16.xpose.msra.mxu0 0
        %2170 = vmatprep.subr.bf16.mxu0 0
        %2171 = vmatpush1.bf16.xpose.msra.mxu0 0
        %2172 = vmatprep.subr.bf16.mxu0 0
        %2173 = vmatpush1.bf16.xpose.msra.mxu0 0
        %2174 = vmatprep.mubr.bf16.mxu0 0
        %2175 = vmatmul.mubr.bf16.gmra.mrb[0].mxu0 %v2131
        %v2176 = vpop.f32.mrb[0].mxu0
        %v2177 = vadd.f32 0.0, %v2176
        %v2178 = vpop.f32.mrb[0].mxu0
        %v2179 = vpop.f32.mrb[0].mxu0
        %v2180 = vadd.f32 0.0, %v2179
        %v2181 = vpop.f32.mrb[0].mxu0
        %2182 = vmatprep.mubr.bf16.mxu0 0
        %2183 = vmatmul.mubr.bf16.gmra.mrb[0].mxu0 %v2134
        %v2184 = vpop.f32.mrb[0].mxu0
        %v2185 = vadd.f32 0.0, %v2184
        %v2186 = vpop.f32.mrb[0].mxu0
        %v2187 = vpop.f32.mrb[0].mxu0
        %v2188 = vadd.f32 0.0, %v2187
        %v2189 = vpop.f32.mrb[0].mxu0
        %2190 = vdwg.mxu0
        %2191 = vrot.lane.b32.xlu0 %v2115, 96
        %v2192 = vpop.permute.xlu0 %2191
        %2193 = vrot.lane.b32.xlu0 %v2117, 96
        %v2194 = vpop.permute.xlu0 %2193
        %v2196 = vsel %vm865, %v2115, 0
        %v2199 = vsel %vm865, %v2117, 0
        %v2202 = vsel %vm865, %v2192, 0
        %v2205 = vsel %vm865, %v2194, 0
        %2207 = vmatprep.subr.bf16.mxu0 0
        %2208 = vmatpush1.bf16.xpose.msra.mxu0 %v2202
        %2209 = vmatprep.subr.bf16.mxu0 0
        %2210 = vmatpush1.bf16.xpose.msra.mxu0 %v2205
        %2211 = vmatprep.subr.bf16.mxu0 0
        %2212 = vmatpush1.bf16.xpose.msra.mxu0 0
        %2213 = vmatprep.subr.bf16.mxu0 0
        %2214 = vmatpush1.bf16.xpose.msra.mxu0 0
        %2215 = vmatprep.subr.bf16.mxu0 0
        %2216 = vmatpush1.bf16.xpose.msra.mxu0 0
        %2217 = vmatprep.subr.bf16.mxu0 0
        %2218 = vmatpush1.bf16.xpose.msra.mxu0 0
        %2219 = vmatprep.subr.bf16.mxu0 0
        %2220 = vmatpush1.bf16.xpose.msra.mxu0 0
        %2221 = vmatprep.subr.bf16.mxu0 0
        %2222 = vmatpush1.bf16.xpose.msra.mxu0 0
        %2223 = vmatprep.subr.bf16.mxu0 0
        %2224 = vmatpush1.bf16.xpose.msra.mxu0 0
        %2225 = vmatprep.subr.bf16.mxu0 0
        %2226 = vmatpush1.bf16.xpose.msra.mxu0 0
        %2227 = vmatprep.subr.bf16.mxu0 0
        %2228 = vmatpush1.bf16.xpose.msra.mxu0 0
        %2229 = vmatprep.subr.bf16.mxu0 0
        %2230 = vmatpush1.bf16.xpose.msra.mxu0 0
        %2231 = vmatprep.subr.bf16.mxu0 0
        %2232 = vmatpush1.bf16.xpose.msra.mxu0 0
        %2233 = vmatprep.subr.bf16.mxu0 0
        %2234 = vmatpush1.bf16.xpose.msra.mxu0 0
        %2235 = vmatprep.subr.bf16.mxu0 0
        %2236 = vmatpush1.bf16.xpose.msra.mxu0 0
        %2237 = vmatprep.subr.bf16.mxu0 0
        %2238 = vmatpush1.bf16.xpose.msra.mxu0 0
        %2239 = vmatprep.mubr.bf16.mxu0 0
        %2240 = vmatmul.mubr.bf16.gmra.mrb[0].mxu0 %v2196
        %v2241 = vpop.f32.mrb[0].mxu0
        %v2242 = vadd.f32 0.0, %v2241
        %v2243 = vpop.f32.mrb[0].mxu0
        %v2244 = vpop.f32.mrb[0].mxu0
        %v2245 = vadd.f32 0.0, %v2244
        %v2246 = vpop.f32.mrb[0].mxu0
        %2247 = vmatprep.mubr.bf16.mxu0 0
        %2248 = vmatmul.mubr.bf16.gmra.mrb[0].mxu0 %v2199
        %v2249 = vpop.f32.mrb[0].mxu0
        %v2250 = vadd.f32 0.0, %v2249
        %v2251 = vpop.f32.mrb[0].mxu0
        %v2252 = vpop.f32.mrb[0].mxu0
        %v2253 = vadd.f32 0.0, %v2252
        %v2254 = vpop.f32.mrb[0].mxu0
        %2255 = vdwg.mxu0
        %2256 = vrot.lane.b32.xlu0 %v2119, 96
        %v2257 = vpop.permute.xlu0 %2256
        %2258 = vrot.lane.b32.xlu0 %v2121, 96
        %v2259 = vpop.permute.xlu0 %2258
        %v2261 = vsel %vm865, %v2119, 0
        %v2264 = vsel %vm865, %v2121, 0
        %v2267 = vsel %vm865, %v2257, 0
        %v2270 = vsel %vm865, %v2259, 0
        %2272 = vmatprep.subr.bf16.mxu0 0
        %2273 = vmatpush1.bf16.xpose.msra.mxu0 %v2267
        %2274 = vmatprep.subr.bf16.mxu0 0
        %2275 = vmatpush1.bf16.xpose.msra.mxu0 %v2270
        %2276 = vmatprep.subr.bf16.mxu0 0
        %2277 = vmatpush1.bf16.xpose.msra.mxu0 0
        %2278 = vmatprep.subr.bf16.mxu0 0
        %2279 = vmatpush1.bf16.xpose.msra.mxu0 0
        %2280 = vmatprep.subr.bf16.mxu0 0
        %2281 = vmatpush1.bf16.xpose.msra.mxu0 0
        %2282 = vmatprep.subr.bf16.mxu0 0
        %2283 = vmatpush1.bf16.xpose.msra.mxu0 0
        %2284 = vmatprep.subr.bf16.mxu0 0
        %2285 = vmatpush1.bf16.xpose.msra.mxu0 0
        %2286 = vmatprep.subr.bf16.mxu0 0
        %2287 = vmatpush1.bf16.xpose.msra.mxu0 0
        %2288 = vmatprep.subr.bf16.mxu0 0
        %2289 = vmatpush1.bf16.xpose.msra.mxu0 0
        %2290 = vmatprep.subr.bf16.mxu0 0
        %2291 = vmatpush1.bf16.xpose.msra.mxu0 0
        %2292 = vmatprep.subr.bf16.mxu0 0
        %2293 = vmatpush1.bf16.xpose.msra.mxu0 0
        %2294 = vmatprep.subr.bf16.mxu0 0
        %2295 = vmatpush1.bf16.xpose.msra.mxu0 0
        %2296 = vmatprep.subr.bf16.mxu0 0
        %2297 = vmatpush1.bf16.xpose.msra.mxu0 0
        %2298 = vmatprep.subr.bf16.mxu0 0
        %2299 = vmatpush1.bf16.xpose.msra.mxu0 0
        %2300 = vmatprep.subr.bf16.mxu0 0
        %2301 = vmatpush1.bf16.xpose.msra.mxu0 0
        %2302 = vmatprep.subr.bf16.mxu0 0
        %2303 = vmatpush1.bf16.xpose.msra.mxu0 0
        %2304 = vmatprep.mubr.bf16.mxu0 0
        %2305 = vmatmul.mubr.bf16.gmra.mrb[0].mxu0 %v2261
        %v2306 = vpop.f32.mrb[0].mxu0
        %v2307 = vadd.f32 0.0, %v2306
        %v2308 = vpop.f32.mrb[0].mxu0
        %v2309 = vpop.f32.mrb[0].mxu0
        %v2310 = vadd.f32 0.0, %v2309
        %v2311 = vpop.f32.mrb[0].mxu0
        %2312 = vmatprep.mubr.bf16.mxu0 0
        %2313 = vmatmul.mubr.bf16.gmra.mrb[0].mxu0 %v2264
        %v2314 = vpop.f32.mrb[0].mxu0
        %v2315 = vadd.f32 0.0, %v2314
        %v2316 = vpop.f32.mrb[0].mxu0
        %v2317 = vpop.f32.mrb[0].mxu0
        %v2318 = vadd.f32 0.0, %v2317
        %v2319 = vpop.f32.mrb[0].mxu0
        %2320 = vdwg.mxu0
        %2321 = vrot.lane.b32.xlu0 %v2123, 96
        %v2322 = vpop.permute.xlu0 %2321
        %2323 = vrot.lane.b32.xlu0 %v2125, 96
        %v2324 = vpop.permute.xlu0 %2323
        %v2326 = vsel %vm865, %v2123, 0
        %v2329 = vsel %vm865, %v2125, 0
        %v2332 = vsel %vm865, %v2322, 0
        %v2335 = vsel %vm865, %v2324, 0
        %2337 = vmatprep.subr.bf16.mxu0 0
        %2338 = vmatpush1.bf16.xpose.msra.mxu0 %v2332
        %2339 = vmatprep.subr.bf16.mxu0 0
        %2340 = vmatpush1.bf16.xpose.msra.mxu0 %v2335
        %2341 = vmatprep.subr.bf16.mxu0 0
        %2342 = vmatpush1.bf16.xpose.msra.mxu0 0
        %2343 = vmatprep.subr.bf16.mxu0 0
        %2344 = vmatpush1.bf16.xpose.msra.mxu0 0
        %2345 = vmatprep.subr.bf16.mxu0 0
        %2346 = vmatpush1.bf16.xpose.msra.mxu0 0
        %2347 = vmatprep.subr.bf16.mxu0 0
        %2348 = vmatpush1.bf16.xpose.msra.mxu0 0
        %2349 = vmatprep.subr.bf16.mxu0 0
        %2350 = vmatpush1.bf16.xpose.msra.mxu0 0
        %2351 = vmatprep.subr.bf16.mxu0 0
        %2352 = vmatpush1.bf16.xpose.msra.mxu0 0
        %2353 = vmatprep.subr.bf16.mxu0 0
        %2354 = vmatpush1.bf16.xpose.msra.mxu0 0
        %2355 = vmatprep.subr.bf16.mxu0 0
        %2356 = vmatpush1.bf16.xpose.msra.mxu0 0
        %2357 = vmatprep.subr.bf16.mxu0 0
        %2358 = vmatpush1.bf16.xpose.msra.mxu0 0
        %2359 = vmatprep.subr.bf16.mxu0 0
        %2360 = vmatpush1.bf16.xpose.msra.mxu0 0
        %2361 = vmatprep.subr.bf16.mxu0 0
        %2362 = vmatpush1.bf16.xpose.msra.mxu0 0
        %2363 = vmatprep.subr.bf16.mxu0 0
        %2364 = vmatpush1.bf16.xpose.msra.mxu0 0
        %2365 = vmatprep.subr.bf16.mxu0 0
        %2366 = vmatpush1.bf16.xpose.msra.mxu0 0
        %2367 = vmatprep.subr.bf16.mxu0 0
        %2368 = vmatpush1.bf16.xpose.msra.mxu0 0
        %2369 = vmatprep.mubr.bf16.mxu0 0
        %2370 = vmatmul.mubr.bf16.gmra.mrb[0].mxu0 %v2326
        %v2371 = vpop.f32.mrb[0].mxu0
        %v2372 = vadd.f32 0.0, %v2371
        %v2373 = vpop.f32.mrb[0].mxu0
        %v2374 = vpop.f32.mrb[0].mxu0
        %v2375 = vadd.f32 0.0, %v2374
        %v2376 = vpop.f32.mrb[0].mxu0
        %2377 = vmatprep.mubr.bf16.mxu0 0
        %2378 = vmatmul.mubr.bf16.gmra.mrb[0].mxu0 %v2329
        %v2379 = vpop.f32.mrb[0].mxu0
        %v2380 = vadd.f32 0.0, %v2379
        %v2381 = vpop.f32.mrb[0].mxu0
        %v2382 = vpop.f32.mrb[0].mxu0
        %v2383 = vadd.f32 0.0, %v2382
        %v2384 = vpop.f32.mrb[0].mxu0
        %2385 = vdwg.mxu0
        %v2386 = vmul.f32 %v2177, 0.35355338
        %v2387 = vmul.f32 %v2180, 0.35355338
        %v2388 = vmul.f32 %v2185, 0.35355338
        %v2389 = vmul.f32 %v2188, 0.35355338
        %v2390 = vmul.f32 %v2242, 0.35355338
        %v2391 = vmul.f32 %v2245, 0.35355338
        %v2392 = vmul.f32 %v2250, 0.35355338
        %v2393 = vmul.f32 %v2253, 0.35355338
        %v2394 = vmul.f32 %v2307, 0.35355338
        %v2395 = vmul.f32 %v2310, 0.35355338
        %v2396 = vmul.f32 %v2315, 0.35355338
        %v2397 = vmul.f32 %v2318, 0.35355338
        %v2398 = vmul.f32 %v2372, 0.35355338
        %v2399 = vmul.f32 %v2375, 0.35355338
        %v2400 = vmul.f32 %v2380, 0.35355338
        %v2401 = vmul.f32 %v2383, 0.35355338
        %v2402 = vsel %vm689, %v2386, -inf
        %2403 = vmax.xlane.f32.xlu0 %v2402
        %v2404 = vpop.xlane.xlu0 %2403
        %v2405 = vsel %vm689, %v2387, -inf
        %2406 = vmax.xlane.f32.xlu0 %v2405
        %v2407 = vpop.xlane.xlu0 %2406
        %v2408 = vsel %vm689, %v2388, -inf
        %2409 = vmax.xlane.f32.xlu0 %v2408
        %v2410 = vpop.xlane.xlu0 %2409
        %v2411 = vsel %vm689, %v2389, -inf
        %2412 = vmax.xlane.f32.xlu0 %v2411
        %v2413 = vpop.xlane.xlu0 %2412
        %v2414 = vsel %vm689, %v2390, -inf
        %2415 = vmax.xlane.f32.xlu0 %v2414
        %v2416 = vpop.xlane.xlu0 %2415
        %v2417 = vsel %vm689, %v2391, -inf
        %2418 = vmax.xlane.f32.xlu0 %v2417
        %v2419 = vpop.xlane.xlu0 %2418
        %v2420 = vsel %vm689, %v2392, -inf
        %2421 = vmax.xlane.f32.xlu0 %v2420
        %v2422 = vpop.xlane.xlu0 %2421
        %v2423 = vsel %vm689, %v2393, -inf
        %2424 = vmax.xlane.f32.xlu0 %v2423
        %v2425 = vpop.xlane.xlu0 %2424
        %v2426 = vsel %vm689, %v2394, -inf
        %2427 = vmax.xlane.f32.xlu0 %v2426
        %v2428 = vpop.xlane.xlu0 %2427
        %v2429 = vsel %vm689, %v2395, -inf
        %2430 = vmax.xlane.f32.xlu0 %v2429
        %v2431 = vpop.xlane.xlu0 %2430
        %v2432 = vsel %vm689, %v2396, -inf
        %2433 = vmax.xlane.f32.xlu0 %v2432
        %v2434 = vpop.xlane.xlu0 %2433
        %v2435 = vsel %vm689, %v2397, -inf
        %2436 = vmax.xlane.f32.xlu0 %v2435
        %v2437 = vpop.xlane.xlu0 %2436
        %v2438 = vsel %vm689, %v2398, -inf
        %2439 = vmax.xlane.f32.xlu0 %v2438
        %v2440 = vpop.xlane.xlu0 %2439
        %v2441 = vsel %vm689, %v2399, -inf
        %2442 = vmax.xlane.f32.xlu0 %v2441
        %v2443 = vpop.xlane.xlu0 %2442
        %v2444 = vsel %vm689, %v2400, -inf
        %2445 = vmax.xlane.f32.xlu0 %v2444
        %v2446 = vpop.xlane.xlu0 %2445
        %v2447 = vsel %vm689, %v2401, -inf
        %2448 = vmax.xlane.f32.xlu0 %v2447
        %v2449 = vpop.xlane.xlu0 %2448
        %v2450 = vsub.f32 %v2386, %v2404
        %v2451 = vsub.f32 %v2387, %v2407
        %v2452 = vsub.f32 %v2388, %v2410
        %v2453 = vsub.f32 %v2389, %v2413
        %v2454 = vsub.f32 %v2390, %v2416
        %v2455 = vsub.f32 %v2391, %v2419
        %v2456 = vsub.f32 %v2392, %v2422
        %v2457 = vsub.f32 %v2393, %v2425
        %v2458 = vsub.f32 %v2394, %v2428
        %v2459 = vsub.f32 %v2395, %v2431
        %v2460 = vsub.f32 %v2396, %v2434
        %v2461 = vsub.f32 %v2397, %v2437
        %v2462 = vsub.f32 %v2398, %v2440
        %v2463 = vsub.f32 %v2399, %v2443
        %v2464 = vsub.f32 %v2400, %v2446
        %v2465 = vsub.f32 %v2401, %v2449
        %v2466 = vmul.f32 %v2450, 1.442695
        %v2467 = vpow.pop %v2466
        %v2468 = vmul.f32 %v2451, 1.442695
        %v2469 = vpow.pop %v2468
        %v2470 = vmul.f32 %v2452, 1.442695
        %v2471 = vpow.pop %v2470
        %v2472 = vmul.f32 %v2453, 1.442695
        %v2473 = vpow.pop %v2472
        %v2474 = vmul.f32 %v2454, 1.442695
        %v2475 = vpow.pop %v2474
        %v2476 = vmul.f32 %v2455, 1.442695
        %v2477 = vpow.pop %v2476
        %v2478 = vmul.f32 %v2456, 1.442695
        %v2479 = vpow.pop %v2478
        %v2480 = vmul.f32 %v2457, 1.442695
        %v2481 = vpow.pop %v2480
        %v2482 = vmul.f32 %v2458, 1.442695
        %v2483 = vpow.pop %v2482
        %v2484 = vmul.f32 %v2459, 1.442695
        %v2485 = vpow.pop %v2484
        %v2486 = vmul.f32 %v2460, 1.442695
        %v2487 = vpow.pop %v2486
        %v2488 = vmul.f32 %v2461, 1.442695
        %v2489 = vpow.pop %v2488
        %v2490 = vmul.f32 %v2462, 1.442695
        %v2491 = vpow.pop %v2490
        %v2492 = vmul.f32 %v2463, 1.442695
        %v2493 = vpow.pop %v2492
        %v2494 = vmul.f32 %v2464, 1.442695
        %v2495 = vpow.pop %v2494
        %v2496 = vmul.f32 %v2465, 1.442695
        %v2497 = vpow.pop %v2496
        %v2498 = vsel %vm689, %v2467, 0.0
        %2499 = vadd.xlane.f32.xlu0 %v2498
        %v2500 = vpop.xlane.xlu0 %2499
        %v2501 = vsel %vm689, %v2469, 0.0
        %2502 = vadd.xlane.f32.xlu0 %v2501
        %v2503 = vpop.xlane.xlu0 %2502
        %v2504 = vsel %vm689, %v2471, 0.0
        %2505 = vadd.xlane.f32.xlu0 %v2504
        %v2506 = vpop.xlane.xlu0 %2505
        %v2507 = vsel %vm689, %v2473, 0.0
        %2508 = vadd.xlane.f32.xlu0 %v2507
        %v2509 = vpop.xlane.xlu0 %2508
        %v2510 = vsel %vm689, %v2475, 0.0
        %2511 = vadd.xlane.f32.xlu0 %v2510
        %v2512 = vpop.xlane.xlu0 %2511
        %v2513 = vsel %vm689, %v2477, 0.0
        %2514 = vadd.xlane.f32.xlu0 %v2513
        %v2515 = vpop.xlane.xlu0 %2514
        %v2516 = vsel %vm689, %v2479, 0.0
        %2517 = vadd.xlane.f32.xlu0 %v2516
        %v2518 = vpop.xlane.xlu0 %2517
        %v2519 = vsel %vm689, %v2481, 0.0
        %2520 = vadd.xlane.f32.xlu0 %v2519
        %v2521 = vpop.xlane.xlu0 %2520
        %v2522 = vsel %vm689, %v2483, 0.0
        %2523 = vadd.xlane.f32.xlu0 %v2522
        %v2524 = vpop.xlane.xlu0 %2523
        %v2525 = vsel %vm689, %v2485, 0.0
        %2526 = vadd.xlane.f32.xlu0 %v2525
        %v2527 = vpop.xlane.xlu0 %2526
        %v2528 = vsel %vm689, %v2487, 0.0
        %2529 = vadd.xlane.f32.xlu0 %v2528
        %v2530 = vpop.xlane.xlu0 %2529
        %v2531 = vsel %vm689, %v2489, 0.0
        %2532 = vadd.xlane.f32.xlu0 %v2531
        %v2533 = vpop.xlane.xlu0 %2532
        %v2534 = vsel %vm689, %v2491, 0.0
        %2535 = vadd.xlane.f32.xlu0 %v2534
        %v2536 = vpop.xlane.xlu0 %2535
        %v2537 = vsel %vm689, %v2493, 0.0
        %2538 = vadd.xlane.f32.xlu0 %v2537
        %v2539 = vpop.xlane.xlu0 %2538
        %v2540 = vsel %vm689, %v2495, 0.0
        %2541 = vadd.xlane.f32.xlu0 %v2540
        %v2542 = vpop.xlane.xlu0 %2541
        %v2543 = vsel %vm689, %v2497, 0.0
        %2544 = vadd.xlane.f32.xlu0 %v2543
        %v2545 = vpop.xlane.xlu0 %2544
        %v2546 = vrcp.pop %v2500
        %v2547 = vrcp.pop %v2503
        %v2548 = vrcp.pop %v2506
        %v2549 = vrcp.pop %v2509
        %v2550 = vrcp.pop %v2512
        %v2551 = vrcp.pop %v2515
        %v2552 = vrcp.pop %v2518
        %v2553 = vrcp.pop %v2521
        %v2554 = vrcp.pop %v2524
        %v2555 = vrcp.pop %v2527
        %v2556 = vrcp.pop %v2530
        %v2557 = vrcp.pop %v2533
        %v2558 = vrcp.pop %v2536
        %v2559 = vrcp.pop %v2539
        %v2560 = vrcp.pop %v2542
        %v2561 = vrcp.pop %v2545
        %v2562 = vmul.f32 %v2467, %v2546
        %v2563 = vmul.f32 %v2469, %v2547
        %v2564 = vmul.f32 %v2471, %v2548
        %v2565 = vmul.f32 %v2473, %v2549
        %v2566 = vmul.f32 %v2475, %v2550
        %v2567 = vmul.f32 %v2477, %v2551
        %v2568 = vmul.f32 %v2479, %v2552
        %v2569 = vmul.f32 %v2481, %v2553
        %v2570 = vmul.f32 %v2483, %v2554
        %v2571 = vmul.f32 %v2485, %v2555
        %v2572 = vmul.f32 %v2487, %v2556
        %v2573 = vmul.f32 %v2489, %v2557
        %v2574 = vmul.f32 %v2491, %v2558
        %v2575 = vmul.f32 %v2493, %v2559
        %v2576 = vmul.f32 %v2495, %v2560
        %v2577 = vmul.f32 %v2497, %v2561
        %v2578 = vpack.c.bf16 %v2563, %v2562
        %v2579 = vpack.c.bf16 %v2565, %v2564
        %v2580 = vpack.c.bf16 %v2567, %v2566
        %v2581 = vpack.c.bf16 %v2569, %v2568
        %v2582 = vpack.c.bf16 %v2571, %v2570
        %v2583 = vpack.c.bf16 %v2573, %v2572
        %v2584 = vpack.c.bf16 %v2575, %v2574
        %v2585 = vpack.c.bf16 %v2577, %v2576
        %2586 = vrot.lane.b32.xlu0 %v2110, 64
        %v2587 = vpop.permute.xlu0 %2586
        %2588 = vrot.lane.b32.xlu0 %v2111, 64
        %v2589 = vpop.permute.xlu0 %2588
        %v2593 = vsel %vm689, %v2578, 0
        %v2596 = vsel %vm689, %v2579, 0
        %2598 = vmatprep.subr.bf16.mxu0 0
        %2599 = vmatpush1.bf16.msra.mxu0 %v2587
        %2600 = vmatprep.subr.bf16.mxu0 0
        %2601 = vmatpush1.bf16.msra.mxu0 %v2589
        %2602 = vmatprep.subr.bf16.mxu0 0
        %2603 = vmatpush1.bf16.msra.mxu0 0
        %2604 = vmatprep.subr.bf16.mxu0 0
        %2605 = vmatpush1.bf16.msra.mxu0 0
        %2606 = vmatprep.subr.bf16.mxu0 0
        %2607 = vmatpush1.bf16.msra.mxu0 0
        %2608 = vmatprep.subr.bf16.mxu0 0
        %2609 = vmatpush1.bf16.msra.mxu0 0
        %2610 = vmatprep.subr.bf16.mxu0 0
        %2611 = vmatpush1.bf16.msra.mxu0 0
        %2612 = vmatprep.subr.bf16.mxu0 0
        %2613 = vmatpush1.bf16.msra.mxu0 0
        %2614 = vmatprep.subr.bf16.mxu0 0
        %2615 = vmatpush1.bf16.msra.mxu0 0
        %2616 = vmatprep.subr.bf16.mxu0 0
        %2617 = vmatpush1.bf16.msra.mxu0 0
        %2618 = vmatprep.subr.bf16.mxu0 0
        %2619 = vmatpush1.bf16.msra.mxu0 0
        %2620 = vmatprep.subr.bf16.mxu0 0
        %2621 = vmatpush1.bf16.msra.mxu0 0
        %2622 = vmatprep.subr.bf16.mxu0 0
        %2623 = vmatpush1.bf16.msra.mxu0 0
        %2624 = vmatprep.subr.bf16.mxu0 0
        %2625 = vmatpush1.bf16.msra.mxu0 0
        %2626 = vmatprep.subr.bf16.mxu0 0
        %2627 = vmatpush1.bf16.msra.mxu0 0
        %2628 = vmatprep.subr.bf16.mxu0 0
        %2629 = vmatpush1.bf16.msra.mxu0 0
        %2630 = vmatprep.mubr.bf16.mxu0 0
        %2631 = vmatmul.mubr.bf16.gmra.mrb[0].mxu0 %v2593
        %v2632 = vpop.f32.mrb[0].mxu0
        %v2633 = vadd.f32 0.0, %v2632
        %v2634 = vpop.f32.mrb[0].mxu0
        %v2635 = vpop.f32.mrb[0].mxu0
        %v2636 = vadd.f32 0.0, %v2635
        %v2637 = vpop.f32.mrb[0].mxu0
        %2638 = vmatprep.mubr.bf16.mxu0 0
        %2639 = vmatmul.mubr.bf16.gmra.mrb[0].mxu0 %v2596
        %v2640 = vpop.f32.mrb[0].mxu0
        %v2641 = vadd.f32 0.0, %v2640
        %v2642 = vpop.f32.mrb[0].mxu0
        %v2643 = vpop.f32.mrb[0].mxu0
        %v2644 = vadd.f32 0.0, %v2643
        %v2645 = vpop.f32.mrb[0].mxu0
        %2646 = vdwg.mxu0
        %2647 = vrot.lane.b32.xlu0 %v2115, 64
        %v2648 = vpop.permute.xlu0 %2647
        %2649 = vrot.lane.b32.xlu0 %v2117, 64
        %v2650 = vpop.permute.xlu0 %2649
        %v2654 = vsel %vm689, %v2580, 0
        %v2657 = vsel %vm689, %v2581, 0
        %2659 = vmatprep.subr.bf16.mxu0 0
        %2660 = vmatpush1.bf16.msra.mxu0 %v2648
        %2661 = vmatprep.subr.bf16.mxu0 0
        %2662 = vmatpush1.bf16.msra.mxu0 %v2650
        %2663 = vmatprep.subr.bf16.mxu0 0
        %2664 = vmatpush1.bf16.msra.mxu0 0
        %2665 = vmatprep.subr.bf16.mxu0 0
        %2666 = vmatpush1.bf16.msra.mxu0 0
        %2667 = vmatprep.subr.bf16.mxu0 0
        %2668 = vmatpush1.bf16.msra.mxu0 0
        %2669 = vmatprep.subr.bf16.mxu0 0
        %2670 = vmatpush1.bf16.msra.mxu0 0
        %2671 = vmatprep.subr.bf16.mxu0 0
        %2672 = vmatpush1.bf16.msra.mxu0 0
        %2673 = vmatprep.subr.bf16.mxu0 0
        %2674 = vmatpush1.bf16.msra.mxu0 0
        %2675 = vmatprep.subr.bf16.mxu0 0
        %2676 = vmatpush1.bf16.msra.mxu0 0
        %2677 = vmatprep.subr.bf16.mxu0 0
        %2678 = vmatpush1.bf16.msra.mxu0 0
        %2679 = vmatprep.subr.bf16.mxu0 0
        %2680 = vmatpush1.bf16.msra.mxu0 0
        %2681 = vmatprep.subr.bf16.mxu0 0
        %2682 = vmatpush1.bf16.msra.mxu0 0
        %2683 = vmatprep.subr.bf16.mxu0 0
        %2684 = vmatpush1.bf16.msra.mxu0 0
        %2685 = vmatprep.subr.bf16.mxu0 0
        %2686 = vmatpush1.bf16.msra.mxu0 0
        %2687 = vmatprep.subr.bf16.mxu0 0
        %2688 = vmatpush1.bf16.msra.mxu0 0
        %2689 = vmatprep.subr.bf16.mxu0 0
        %2690 = vmatpush1.bf16.msra.mxu0 0
        %2691 = vmatprep.mubr.bf16.mxu0 0
        %2692 = vmatmul.mubr.bf16.gmra.mrb[0].mxu0 %v2654
        %v2693 = vpop.f32.mrb[0].mxu0
        %v2694 = vadd.f32 0.0, %v2693
        %v2695 = vpop.f32.mrb[0].mxu0
        %v2696 = vpop.f32.mrb[0].mxu0
        %v2697 = vadd.f32 0.0, %v2696
        %v2698 = vpop.f32.mrb[0].mxu0
        %2699 = vmatprep.mubr.bf16.mxu0 0
        %2700 = vmatmul.mubr.bf16.gmra.mrb[0].mxu0 %v2657
        %v2701 = vpop.f32.mrb[0].mxu0
        %v2702 = vadd.f32 0.0, %v2701
        %v2703 = vpop.f32.mrb[0].mxu0
        %v2704 = vpop.f32.mrb[0].mxu0
        %v2705 = vadd.f32 0.0, %v2704
        %v2706 = vpop.f32.mrb[0].mxu0
        %2707 = vdwg.mxu0
        %2708 = vrot.lane.b32.xlu0 %v2119, 64
        %v2709 = vpop.permute.xlu0 %2708
        %2710 = vrot.lane.b32.xlu0 %v2121, 64
        %v2711 = vpop.permute.xlu0 %2710
        %v2715 = vsel %vm689, %v2582, 0
        %v2718 = vsel %vm689, %v2583, 0
        %2720 = vmatprep.subr.bf16.mxu0 0
        %2721 = vmatpush1.bf16.msra.mxu0 %v2709
        %2722 = vmatprep.subr.bf16.mxu0 0
        %2723 = vmatpush1.bf16.msra.mxu0 %v2711
        %2724 = vmatprep.subr.bf16.mxu0 0
        %2725 = vmatpush1.bf16.msra.mxu0 0
        %2726 = vmatprep.subr.bf16.mxu0 0
        %2727 = vmatpush1.bf16.msra.mxu0 0
        %2728 = vmatprep.subr.bf16.mxu0 0
        %2729 = vmatpush1.bf16.msra.mxu0 0
        %2730 = vmatprep.subr.bf16.mxu0 0
        %2731 = vmatpush1.bf16.msra.mxu0 0
        %2732 = vmatprep.subr.bf16.mxu0 0
        %2733 = vmatpush1.bf16.msra.mxu0 0
        %2734 = vmatprep.subr.bf16.mxu0 0
        %2735 = vmatpush1.bf16.msra.mxu0 0
        %2736 = vmatprep.subr.bf16.mxu0 0
        %2737 = vmatpush1.bf16.msra.mxu0 0
        %2738 = vmatprep.subr.bf16.mxu0 0
        %2739 = vmatpush1.bf16.msra.mxu0 0
        %2740 = vmatprep.subr.bf16.mxu0 0
        %2741 = vmatpush1.bf16.msra.mxu0 0
        %2742 = vmatprep.subr.bf16.mxu0 0
        %2743 = vmatpush1.bf16.msra.mxu0 0
        %2744 = vmatprep.subr.bf16.mxu0 0
        %2745 = vmatpush1.bf16.msra.mxu0 0
        %2746 = vmatprep.subr.bf16.mxu0 0
        %2747 = vmatpush1.bf16.msra.mxu0 0
        %2748 = vmatprep.subr.bf16.mxu0 0
        %2749 = vmatpush1.bf16.msra.mxu0 0
        %2750 = vmatprep.subr.bf16.mxu0 0
        %2751 = vmatpush1.bf16.msra.mxu0 0
        %2752 = vmatprep.mubr.bf16.mxu0 0
        %2753 = vmatmul.mubr.bf16.gmra.mrb[0].mxu0 %v2715
        %v2754 = vpop.f32.mrb[0].mxu0
        %v2755 = vadd.f32 0.0, %v2754
        %v2756 = vpop.f32.mrb[0].mxu0
        %v2757 = vpop.f32.mrb[0].mxu0
        %v2758 = vadd.f32 0.0, %v2757
        %v2759 = vpop.f32.mrb[0].mxu0
        %2760 = vmatprep.mubr.bf16.mxu0 0
        %2761 = vmatmul.mubr.bf16.gmra.mrb[0].mxu0 %v2718
        %v2762 = vpop.f32.mrb[0].mxu0
        %v2763 = vadd.f32 0.0, %v2762
        %v2764 = vpop.f32.mrb[0].mxu0
        %v2765 = vpop.f32.mrb[0].mxu0
        %v2766 = vadd.f32 0.0, %v2765
        %v2767 = vpop.f32.mrb[0].mxu0
        %2768 = vdwg.mxu0
        %2769 = vrot.lane.b32.xlu0 %v2123, 64
        %v2770 = vpop.permute.xlu0 %2769
        %2771 = vrot.lane.b32.xlu0 %v2125, 64
        %v2772 = vpop.permute.xlu0 %2771
        %v2776 = vsel %vm689, %v2584, 0
        %v2779 = vsel %vm689, %v2585, 0
        %2781 = vmatprep.subr.bf16.mxu0 0
        %2782 = vmatpush1.bf16.msra.mxu0 %v2770
        %2783 = vmatprep.subr.bf16.mxu0 0
        %2784 = vmatpush1.bf16.msra.mxu0 %v2772
        %2785 = vmatprep.subr.bf16.mxu0 0
        %2786 = vmatpush1.bf16.msra.mxu0 0
        %2787 = vmatprep.subr.bf16.mxu0 0
        %2788 = vmatpush1.bf16.msra.mxu0 0
        %2789 = vmatprep.subr.bf16.mxu0 0
        %2790 = vmatpush1.bf16.msra.mxu0 0
        %2791 = vmatprep.subr.bf16.mxu0 0
        %2792 = vmatpush1.bf16.msra.mxu0 0
        %2793 = vmatprep.subr.bf16.mxu0 0
        %2794 = vmatpush1.bf16.msra.mxu0 0
        %2795 = vmatprep.subr.bf16.mxu0 0
        %2796 = vmatpush1.bf16.msra.mxu0 0
        %2797 = vmatprep.subr.bf16.mxu0 0
        %2798 = vmatpush1.bf16.msra.mxu0 0
        %2799 = vmatprep.subr.bf16.mxu0 0
        %2800 = vmatpush1.bf16.msra.mxu0 0
        %2801 = vmatprep.subr.bf16.mxu0 0
        %2802 = vmatpush1.bf16.msra.mxu0 0
        %2803 = vmatprep.subr.bf16.mxu0 0
        %2804 = vmatpush1.bf16.msra.mxu0 0
        %2805 = vmatprep.subr.bf16.mxu0 0
        %2806 = vmatpush1.bf16.msra.mxu0 0
        %2807 = vmatprep.subr.bf16.mxu0 0
        %2808 = vmatpush1.bf16.msra.mxu0 0
        %2809 = vmatprep.subr.bf16.mxu0 0
        %2810 = vmatpush1.bf16.msra.mxu0 0
        %2811 = vmatprep.subr.bf16.mxu0 0
        %2812 = vmatpush1.bf16.msra.mxu0 0
        %2813 = vmatprep.mubr.bf16.mxu0 0
        %2814 = vmatmul.mubr.bf16.gmra.mrb[0].mxu0 %v2776
        %v2815 = vpop.f32.mrb[0].mxu0
        %v2816 = vadd.f32 0.0, %v2815
        %v2817 = vpop.f32.mrb[0].mxu0
        %v2818 = vpop.f32.mrb[0].mxu0
        %v2819 = vadd.f32 0.0, %v2818
        %v2820 = vpop.f32.mrb[0].mxu0
        %2821 = vmatprep.mubr.bf16.mxu0 0
        %2822 = vmatmul.mubr.bf16.gmra.mrb[0].mxu0 %v2779
        %v2823 = vpop.f32.mrb[0].mxu0
        %v2824 = vadd.f32 0.0, %v2823
        %v2825 = vpop.f32.mrb[0].mxu0
        %v2826 = vpop.f32.mrb[0].mxu0
        %v2827 = vadd.f32 0.0, %v2826
        %v2828 = vpop.f32.mrb[0].mxu0
        %2829 = vdwg.mxu0
        %2834 = vrot.lane.b32.xlu0 %v2694, 8
        %v2835 = vpop.permute.xlu0 %2834
        %2836 = vrot.lane.b32.xlu0 %v2697, 8
        %v2837 = vpop.permute.xlu0 %2836
        %2838 = vrot.lane.b32.xlu0 %v2702, 8
        %v2839 = vpop.permute.xlu0 %2838
        %2840 = vrot.lane.b32.xlu0 %v2705, 8
        %v2841 = vpop.permute.xlu0 %2840
        %2850 = vrot.lane.b32.xlu0 %v2755, 16
        %v2851 = vpop.permute.xlu0 %2850
        %2852 = vrot.lane.b32.xlu0 %v2758, 16
        %v2853 = vpop.permute.xlu0 %2852
        %2854 = vrot.lane.b32.xlu0 %v2763, 16
        %v2855 = vpop.permute.xlu0 %2854
        %2856 = vrot.lane.b32.xlu0 %v2766, 16
        %v2857 = vpop.permute.xlu0 %2856
        %2866 = vrot.lane.b32.xlu0 %v2816, 24
        %v2867 = vpop.permute.xlu0 %2866
        %2868 = vrot.lane.b32.xlu0 %v2819, 24
        %v2869 = vpop.permute.xlu0 %2868
        %2870 = vrot.lane.b32.xlu0 %v2824, 24
        %v2871 = vpop.permute.xlu0 %2870
        %2872 = vrot.lane.b32.xlu0 %v2827, 24
        %v2873 = vpop.permute.xlu0 %2872
        %v2878 = vsel %vm865, %v2633, %v2835
        %v2879 = vsel %vm865, %v2636, %v2837
        %v2880 = vsel %vm865, %v2641, %v2839
        %v2881 = vsel %vm865, %v2644, %v2841
        %v2882 = vsel %vm596, %v2878, %v2851
        %v2883 = vsel %vm596, %v2879, %v2853
        %v2884 = vsel %vm596, %v2880, %v2855
        %v2885 = vsel %vm596, %v2881, %v2857
        %v2886 = vsel %vm1622, %v2882, %v2867
        %v2887 = vsel %vm1622, %v2883, %v2869
        %v2888 = vsel %vm1622, %v2884, %v2871
        %v2889 = vsel %vm1622, %v2885, %v2873
        %v2890 = vpack.c.bf16 %v2887, %v2886
        %v2891 = vpack.c.bf16 %v2889, %v2888
        %s2892 = scalar_lea.vmem %s8, 16
        %v2893 = vld [vmem:[%s2892] sm:$0xf]
        %v2894 = vld [vmem:[%s2892 + $0x4] sm:$0xf]
        %v2895 = vld [vmem:[%s2892 + $0x8] sm:$0xf]
        %v2896 = vld [vmem:[%s2892 + $0xc] sm:$0xf]
        %s2897 = scalar_lea.vmem %s9, 1
        %v2898 = vld [vmem:[%s2897] sm:$0x1]
        %v2900 = vlaneseq
        %v2901 = vshrl.u32 %v2900, 7
        %v2902 = vsub.s32 0, %v2901
        %v2903 = vrot.slane %v2898, %v2902
        %v2909 = vunpack.c.l.b16 %v2893
        %v2910 = vunpack.c.l.b16 %v2894
        %v2911 = vunpack.c.l.b16 %v2895
        %v2912 = vunpack.c.l.b16 %v2896
        %v2913 = vpack.c.b16 %v2910, %v2909
        %v2914 = vpack.c.b16 %v2912, %v2911
        %v2918 = vsel %vm689, %v2890, 0
        %v2921 = vsel %vm689, %v2891, 0
        %2923 = vmatprep.subr.bf16.mxu0 0
        %2924 = vmatpush1.bf16.msra.mxu0 %v2913
        %2925 = vmatprep.subr.bf16.mxu0 0
        %2926 = vmatpush1.bf16.msra.mxu0 %v2914
        %2927 = vmatprep.subr.bf16.mxu0 0
        %2928 = vmatpush1.bf16.msra.mxu0 0
        %2929 = vmatprep.subr.bf16.mxu0 0
        %2930 = vmatpush1.bf16.msra.mxu0 0
        %2931 = vmatprep.subr.bf16.mxu0 0
        %2932 = vmatpush1.bf16.msra.mxu0 0
        %2933 = vmatprep.subr.bf16.mxu0 0
        %2934 = vmatpush1.bf16.msra.mxu0 0
        %2935 = vmatprep.subr.bf16.mxu0 0
        %2936 = vmatpush1.bf16.msra.mxu0 0
        %2937 = vmatprep.subr.bf16.mxu0 0
        %2938 = vmatpush1.bf16.msra.mxu0 0
        %2939 = vmatprep.subr.bf16.mxu0 0
        %2940 = vmatpush1.bf16.msra.mxu0 0
        %2941 = vmatprep.subr.bf16.mxu0 0
        %2942 = vmatpush1.bf16.msra.mxu0 0
        %2943 = vmatprep.subr.bf16.mxu0 0
        %2944 = vmatpush1.bf16.msra.mxu0 0
        %2945 = vmatprep.subr.bf16.mxu0 0
        %2946 = vmatpush1.bf16.msra.mxu0 0
        %2947 = vmatprep.subr.bf16.mxu0 0
        %2948 = vmatpush1.bf16.msra.mxu0 0
        %2949 = vmatprep.subr.bf16.mxu0 0
        %2950 = vmatpush1.bf16.msra.mxu0 0
        %2951 = vmatprep.subr.bf16.mxu0 0
        %2952 = vmatpush1.bf16.msra.mxu0 0
        %2953 = vmatprep.subr.bf16.mxu0 0
        %2954 = vmatpush1.bf16.msra.mxu0 0
        %2955 = vmatprep.mubr.bf16.mxu0 0
        %2956 = vmatmul.mubr.bf16.gmra.mrb[0].mxu0 %v2918
        %v2957 = vpop.f32.mrb[0].mxu0
        %v2958 = vadd.f32 %v2903, %v2957
        %v2959 = vpop.f32.mrb[0].mxu0
        %v2960 = vpop.f32.mrb[0].mxu0
        %v2961 = vadd.f32 %v2903, %v2960
        %v2962 = vpop.f32.mrb[0].mxu0
        %2963 = vmatprep.mubr.bf16.mxu0 0
        %2964 = vmatmul.mubr.bf16.gmra.mrb[0].mxu0 %v2921
        %v2965 = vpop.f32.mrb[0].mxu0
        %v2966 = vadd.f32 %v2903, %v2965
        %v2967 = vpop.f32.mrb[0].mxu0
        %v2968 = vpop.f32.mrb[0].mxu0
        %v2969 = vadd.f32 %v2903, %v2968
        %v2970 = vpop.f32.mrb[0].mxu0
        %2971 = vdwg.mxu0
        %v2972 = vadd.f32 %v2024, %v2958
        %v2973 = vadd.f32 %v2025, %v2961
        %v2974 = vadd.f32 %v2026, %v2966
        %v2975 = vadd.f32 %v2027, %v2969
        %s2976 = scalar_lea.vmem %s10, 1
        %v2977 = vld [vmem:[%s2976] sm:$0x1]
        %s2978 = scalar_lea.vmem %s11, 1
        %v2979 = vld [vmem:[%s2978] sm:$0x1]
        %v2980 = vsel %vm689, %v2972, 0.0
        %2981 = vadd.xlane.f32.xlu0 %v2980
        %v2982 = vpop.xlane.xlu0 %2981
        %v2983 = vsel %vm689, %v2973, 0.0
        %2984 = vadd.xlane.f32.xlu0 %v2983
        %v2985 = vpop.xlane.xlu0 %2984
        %v2986 = vsel %vm689, %v2974, 0.0
        %2987 = vadd.xlane.f32.xlu0 %v2986
        %v2988 = vpop.xlane.xlu0 %2987
        %v2989 = vsel %vm689, %v2975, 0.0
        %2990 = vadd.xlane.f32.xlu0 %v2989
        %v2991 = vpop.xlane.xlu0 %2990
        %v2992 = vmul.f32 %v2982, %v1725
        %v2993 = vmul.f32 %v2985, %v1725
        %v2994 = vmul.f32 %v2988, %v1725
        %v2995 = vmul.f32 %v2991, %v1725
        %v2996 = vsub.f32 %v2972, %v2992
        %v2997 = vsub.f32 %v2973, %v2993
        %v2998 = vsub.f32 %v2974, %v2994
        %v2999 = vsub.f32 %v2975, %v2995
        %v3000 = vmul.f32 %v2996, %v2996
        %v3001 = vmul.f32 %v2997, %v2997
        %v3002 = vmul.f32 %v2998, %v2998
        %v3003 = vmul.f32 %v2999, %v2999
        %v3004 = vsel %vm689, %v3000, 0.0
        %3005 = vadd.xlane.f32.xlu0 %v3004
        %v3006 = vpop.xlane.xlu0 %3005
        %v3007 = vsel %vm689, %v3001, 0.0
        %3008 = vadd.xlane.f32.xlu0 %v3007
        %v3009 = vpop.xlane.xlu0 %3008
        %v3010 = vsel %vm689, %v3002, 0.0
        %3011 = vadd.xlane.f32.xlu0 %v3010
        %v3012 = vpop.xlane.xlu0 %3011
        %v3013 = vsel %vm689, %v3003, 0.0
        %3014 = vadd.xlane.f32.xlu0 %v3013
        %v3015 = vpop.xlane.xlu0 %3014
        %v3016 = vmul.f32 %v3006, %v1725
        %v3017 = vmul.f32 %v3009, %v1725
        %v3018 = vmul.f32 %v3012, %v1725
        %v3019 = vmul.f32 %v3015, %v1725
        %v3020 = vadd.f32 %v3016, 1e-05
        %v3021 = vadd.f32 %v3017, 1e-05
        %v3022 = vadd.f32 %v3018, 1e-05
        %v3023 = vadd.f32 %v3019, 1e-05
        %v3024 = vrsqrt.pop %v3020
        %v3025 = vrsqrt.pop %v3021
        %v3026 = vrsqrt.pop %v3022
        %v3027 = vrsqrt.pop %v3023
        %v3028 = vmul.f32 %v2996, %v3024
        %v3029 = vmul.f32 %v2997, %v3025
        %v3030 = vmul.f32 %v2998, %v3026
        %v3031 = vmul.f32 %v2999, %v3027
        %v3033 = vlaneseq
        %v3034 = vshrl.u32 %v3033, 7
        %v3035 = vsub.s32 0, %v3034
        %v3036 = vrot.slane %v2977, %v3035
        %v3038 = vmul.f32 %v3028, %v3036
        %v3039 = vmul.f32 %v3029, %v3036
        %v3040 = vmul.f32 %v3030, %v3036
        %v3041 = vmul.f32 %v3031, %v3036
        %v3043 = vlaneseq
        %v3044 = vshrl.u32 %v3043, 7
        %v3045 = vsub.s32 0, %v3044
        %v3046 = vrot.slane %v2979, %v3045
        %v3048 = vadd.f32 %v3038, %v3046
        %v3049 = vadd.f32 %v3039, %v3046
        %v3050 = vadd.f32 %v3040, %v3046
        %v3051 = vadd.f32 %v3041, %v3046
        %v3052 = vpack.c.bf16 %v3049, %v3048
        %v3053 = vpack.c.bf16 %v3051, %v3050
        %s3054 = scalar_lea.vmem %s12, 16
        %v3055 = vld [vmem:[%s3054] sm:$0xf]
        %v3056 = vld [vmem:[%s3054 + $0x4] sm:$0xf]
        %v3057 = vld [vmem:[%s3054 + $0x8] sm:$0xf]
        %v3058 = vld [vmem:[%s3054 + $0xc] sm:$0xf]
        %s3059 = scalar_lea.vmem %s13, 1
        %v3060 = vld [vmem:[%s3059] sm:$0x1]
        %v3062 = vlaneseq
        %v3063 = vshrl.u32 %v3062, 7
        %v3064 = vsub.s32 0, %v3063
        %v3065 = vrot.slane %v3060, %v3064
        %v3071 = vunpack.c.l.b16 %v3055
        %v3072 = vunpack.c.l.b16 %v3056
        %v3073 = vunpack.c.l.b16 %v3057
        %v3074 = vunpack.c.l.b16 %v3058
        %v3075 = vpack.c.b16 %v3072, %v3071
        %v3076 = vpack.c.b16 %v3074, %v3073
        %v3080 = vsel %vm689, %v3052, 0
        %v3083 = vsel %vm689, %v3053, 0
        %3085 = vmatprep.subr.bf16.mxu0 0
        %3086 = vmatpush1.bf16.msra.mxu0 %v3075
        %3087 = vmatprep.subr.bf16.mxu0 0
        %3088 = vmatpush1.bf16.msra.mxu0 %v3076
        %3089 = vmatprep.subr.bf16.mxu0 0
        %3090 = vmatpush1.bf16.msra.mxu0 0
        %3091 = vmatprep.subr.bf16.mxu0 0
        %3092 = vmatpush1.bf16.msra.mxu0 0
        %3093 = vmatprep.subr.bf16.mxu0 0
        %3094 = vmatpush1.bf16.msra.mxu0 0
        %3095 = vmatprep.subr.bf16.mxu0 0
        %3096 = vmatpush1.bf16.msra.mxu0 0
        %3097 = vmatprep.subr.bf16.mxu0 0
        %3098 = vmatpush1.bf16.msra.mxu0 0
        %3099 = vmatprep.subr.bf16.mxu0 0
        %3100 = vmatpush1.bf16.msra.mxu0 0
        %3101 = vmatprep.subr.bf16.mxu0 0
        %3102 = vmatpush1.bf16.msra.mxu0 0
        %3103 = vmatprep.subr.bf16.mxu0 0
        %3104 = vmatpush1.bf16.msra.mxu0 0
        %3105 = vmatprep.subr.bf16.mxu0 0
        %3106 = vmatpush1.bf16.msra.mxu0 0
        %3107 = vmatprep.subr.bf16.mxu0 0
        %3108 = vmatpush1.bf16.msra.mxu0 0
        %3109 = vmatprep.subr.bf16.mxu0 0
        %3110 = vmatpush1.bf16.msra.mxu0 0
        %3111 = vmatprep.subr.bf16.mxu0 0
        %3112 = vmatpush1.bf16.msra.mxu0 0
        %3113 = vmatprep.subr.bf16.mxu0 0
        %3114 = vmatpush1.bf16.msra.mxu0 0
        %3115 = vmatprep.subr.bf16.mxu0 0
        %3116 = vmatpush1.bf16.msra.mxu0 0
        %3117 = vmatprep.mubr.bf16.mxu0 0
        %3118 = vmatmul.mubr.bf16.gmra.mrb[0].mxu0 %v3080
        %v3119 = vpop.f32.mrb[0].mxu0
        %v3120 = vadd.f32 %v3065, %v3119
        %v3121 = vpop.f32.mrb[0].mxu0
        %v3122 = vpop.f32.mrb[0].mxu0
        %v3123 = vadd.f32 %v3065, %v3122
        %v3124 = vpop.f32.mrb[0].mxu0
        %3125 = vmatprep.mubr.bf16.mxu0 0
        %3126 = vmatmul.mubr.bf16.gmra.mrb[0].mxu0 %v3083
        %v3127 = vpop.f32.mrb[0].mxu0
        %v3128 = vadd.f32 %v3065, %v3127
        %v3129 = vpop.f32.mrb[0].mxu0
        %v3130 = vpop.f32.mrb[0].mxu0
        %v3131 = vadd.f32 %v3065, %v3130
        %v3132 = vpop.f32.mrb[0].mxu0
        %3133 = vdwg.mxu0
        %v3134 = vmax.f32 %v3120, 0.0
        %v3135 = vmax.f32 %v3123, 0.0
        %v3136 = vmax.f32 %v3128, 0.0
        %v3137 = vmax.f32 %v3131, 0.0
        %v3138 = vpack.c.bf16 %v3135, %v3134
        %v3139 = vpack.c.bf16 %v3137, %v3136
        %s3140 = scalar_lea.vmem %s14, 16
        %v3141 = vld [vmem:[%s3140] sm:$0xf]
        %v3142 = vld [vmem:[%s3140 + $0x4] sm:$0xf]
        %v3143 = vld [vmem:[%s3140 + $0x8] sm:$0xf]
        %v3144 = vld [vmem:[%s3140 + $0xc] sm:$0xf]
        %s3145 = scalar_lea.vmem %s15, 1
        %v3146 = vld [vmem:[%s3145] sm:$0x1]
        %v3148 = vlaneseq
        %v3149 = vshrl.u32 %v3148, 7
        %v3150 = vsub.s32 0, %v3149
        %v3151 = vrot.slane %v3146, %v3150
        %v3157 = vunpack.c.l.b16 %v3141
        %v3158 = vunpack.c.l.b16 %v3142
        %v3159 = vunpack.c.l.b16 %v3143
        %v3160 = vunpack.c.l.b16 %v3144
        %v3161 = vpack.c.b16 %v3158, %v3157
        %v3162 = vpack.c.b16 %v3160, %v3159
        %v3166 = vsel %vm689, %v3138, 0
        %v3169 = vsel %vm689, %v3139, 0
        %3171 = vmatprep.subr.bf16.mxu0 0
        %3172 = vmatpush1.bf16.msra.mxu0 %v3161
        %3173 = vmatprep.subr.bf16.mxu0 0
        %3174 = vmatpush1.bf16.msra.mxu0 %v3162
        %3175 = vmatprep.subr.bf16.mxu0 0
        %3176 = vmatpush1.bf16.msra.mxu0 0
        %3177 = vmatprep.subr.bf16.mxu0 0
        %3178 = vmatpush1.bf16.msra.mxu0 0
        %3179 = vmatprep.subr.bf16.mxu0 0
        %3180 = vmatpush1.bf16.msra.mxu0 0
        %3181 = vmatprep.subr.bf16.mxu0 0
        %3182 = vmatpush1.bf16.msra.mxu0 0
        %3183 = vmatprep.subr.bf16.mxu0 0
        %3184 = vmatpush1.bf16.msra.mxu0 0
        %3185 = vmatprep.subr.bf16.mxu0 0
        %3186 = vmatpush1.bf16.msra.mxu0 0
        %3187 = vmatprep.subr.bf16.mxu0 0
        %3188 = vmatpush1.bf16.msra.mxu0 0
        %3189 = vmatprep.subr.bf16.mxu0 0
        %3190 = vmatpush1.bf16.msra.mxu0 0
        %3191 = vmatprep.subr.bf16.mxu0 0
        %3192 = vmatpush1.bf16.msra.mxu0 0
        %3193 = vmatprep.subr.bf16.mxu0 0
        %3194 = vmatpush1.bf16.msra.mxu0 0
        %3195 = vmatprep.subr.bf16.mxu0 0
        %3196 = vmatpush1.bf16.msra.mxu0 0
        %3197 = vmatprep.subr.bf16.mxu0 0
        %3198 = vmatpush1.bf16.msra.mxu0 0
        %3199 = vmatprep.subr.bf16.mxu0 0
        %3200 = vmatpush1.bf16.msra.mxu0 0
        %3201 = vmatprep.subr.bf16.mxu0 0
        %3202 = vmatpush1.bf16.msra.mxu0 0
        %3203 = vmatprep.mubr.bf16.mxu0 0
        %3204 = vmatmul.mubr.bf16.gmra.mrb[0].mxu0 %v3166
        %v3205 = vpop.f32.mrb[0].mxu0
        %v3206 = vadd.f32 %v3151, %v3205
        %v3207 = vpop.f32.mrb[0].mxu0
        %v3208 = vpop.f32.mrb[0].mxu0
        %v3209 = vadd.f32 %v3151, %v3208
        %v3210 = vpop.f32.mrb[0].mxu0
        %3211 = vmatprep.mubr.bf16.mxu0 0
        %3212 = vmatmul.mubr.bf16.gmra.mrb[0].mxu0 %v3169
        %v3213 = vpop.f32.mrb[0].mxu0
        %v3214 = vadd.f32 %v3151, %v3213
        %v3215 = vpop.f32.mrb[0].mxu0
        %v3216 = vpop.f32.mrb[0].mxu0
        %v3217 = vadd.f32 %v3151, %v3216
        %v3218 = vpop.f32.mrb[0].mxu0
        %3219 = vdwg.mxu0
        %v3220 = vadd.f32 %v3048, %v3206
        %v3221 = vadd.f32 %v3049, %v3209
        %v3222 = vadd.f32 %v3050, %v3214
        %v3223 = vadd.f32 %v3051, %v3217
        %s3224 = scalar_lea.vmem %s16, 1
        %v3225 = vld [vmem:[%s3224] sm:$0x1]
        %s3226 = scalar_lea.vmem %s17, 1
        %v3227 = vld [vmem:[%s3226] sm:$0x1]
        %v3228 = vsel %vm689, %v3220, 0.0
        %3229 = vadd.xlane.f32.xlu0 %v3228
        %v3230 = vpop.xlane.xlu0 %3229
        %v3231 = vsel %vm689, %v3221, 0.0
        %3232 = vadd.xlane.f32.xlu0 %v3231
        %v3233 = vpop.xlane.xlu0 %3232
        %v3234 = vsel %vm689, %v3222, 0.0
        %3235 = vadd.xlane.f32.xlu0 %v3234
        %v3236 = vpop.xlane.xlu0 %3235
        %v3237 = vsel %vm689, %v3223, 0.0
        %3238 = vadd.xlane.f32.xlu0 %v3237
        %v3239 = vpop.xlane.xlu0 %3238
        %v3240 = vmul.f32 %v3230, %v1725
        %v3241 = vmul.f32 %v3233, %v1725
        %v3242 = vmul.f32 %v3236, %v1725
        %v3243 = vmul.f32 %v3239, %v1725
        %v3244 = vsub.f32 %v3220, %v3240
        %v3245 = vsub.f32 %v3221, %v3241
        %v3246 = vsub.f32 %v3222, %v3242
        %v3247 = vsub.f32 %v3223, %v3243
        %v3248 = vmul.f32 %v3244, %v3244
        %v3249 = vmul.f32 %v3245, %v3245
        %v3250 = vmul.f32 %v3246, %v3246
        %v3251 = vmul.f32 %v3247, %v3247
        %v3252 = vsel %vm689, %v3248, 0.0
        %3253 = vadd.xlane.f32.xlu0 %v3252
        %v3254 = vpop.xlane.xlu0 %3253
        %v3255 = vsel %vm689, %v3249, 0.0
        %3256 = vadd.xlane.f32.xlu0 %v3255
        %v3257 = vpop.xlane.xlu0 %3256
        %v3258 = vsel %vm689, %v3250, 0.0
        %3259 = vadd.xlane.f32.xlu0 %v3258
        %v3260 = vpop.xlane.xlu0 %3259
        %v3261 = vsel %vm689, %v3251, 0.0
        %3262 = vadd.xlane.f32.xlu0 %v3261
        %v3263 = vpop.xlane.xlu0 %3262
        %v3264 = vmul.f32 %v3254, %v1725
        %v3265 = vmul.f32 %v3257, %v1725
        %v3266 = vmul.f32 %v3260, %v1725
        %v3267 = vmul.f32 %v3263, %v1725
        %v3268 = vadd.f32 %v3264, 1e-05
        %v3269 = vadd.f32 %v3265, 1e-05
        %v3270 = vadd.f32 %v3266, 1e-05
        %v3271 = vadd.f32 %v3267, 1e-05
        %v3272 = vrsqrt.pop %v3268
        %v3273 = vrsqrt.pop %v3269
        %v3274 = vrsqrt.pop %v3270
        %v3275 = vrsqrt.pop %v3271
        %v3276 = vmul.f32 %v3244, %v3272
        %v3277 = vmul.f32 %v3245, %v3273
        %v3278 = vmul.f32 %v3246, %v3274
        %v3279 = vmul.f32 %v3247, %v3275
        %v3281 = vlaneseq
        %v3282 = vshrl.u32 %v3281, 7
        %v3283 = vsub.s32 0, %v3282
        %v3284 = vrot.slane %v3225, %v3283
        %v3286 = vmul.f32 %v3276, %v3284
        %v3287 = vmul.f32 %v3277, %v3284
        %v3288 = vmul.f32 %v3278, %v3284
        %v3289 = vmul.f32 %v3279, %v3284
        %v3291 = vlaneseq
        %v3292 = vshrl.u32 %v3291, 7
        %v3293 = vsub.s32 0, %v3292
        %v3294 = vrot.slane %v3227, %v3293
        %v3296 = vadd.f32 %v3286, %v3294
        %v3297 = vadd.f32 %v3287, %v3294
        %v3298 = vadd.f32 %v3288, %v3294
        %v3299 = vadd.f32 %v3289, %v3294
        %3300 = vst.msk [vmem:[%s568] sm:$0xff] %vm689, %v3296
        %3301 = vst.msk [vmem:[%s568 + $0x8] sm:$0xff] %vm689, %v3297
        %3302 = vst.msk [vmem:[%s568 + $0x10] sm:$0xff] %vm689, %v3298
        %3303 = vst.msk [vmem:[%s568 + $0x18] sm:$0xff] %vm689, %v3299
        %s3304 = sand.u32 %s423, 1
        %s3305 = scalar_lea.sflag [#allocation3], %s3304
        %s3306 = sand.u32 %s423, 1
        %s3307 = smul.addr %s3306, 32
        %s3308 = scalar_lea.vmem [#allocation2], %s3307
        // Predicated region
        $region93: #{trading_bert_forward.1} parent=91 // pred_check
          %p3309 = pneg %p433
        $region94: #{trading_bert_forward.1} parent=91 // pred_check_branch
          %3311 = sbr.rel (%p3309) target = $region96
        $region95: #{trading_bert_forward.1} parent=91 // pred_region
          %s3313 = ssub.s32 512, 512
          %3314 = vsyncadd %s3305, %s3313
          %s3315 = smul.addr %s32, 4
          %s3316 = smul.addr %s3315, 128
          %s3317 = scalar_lea.hbm %s18, %s3316
          %s3318 = sshll.u32 %s3308, 4
          %s3319 = int_to_ptr.vmem [resolvable:$true] %s3318
          %3324 = dma.vmem_to_hbm [thread:$0]  %s3319, 512, %s3317, %s3305, 128, 128, 8
        $region96: #{trading_bert_forward.1} parent=91 // pred_fallthru
          _
      $region92: #{trading_bert_forward.1} parent=5 // pred_fallthru
        _
      %p3325 = scmp.le.s32.totalorder 2, %s27
      // Predicated region
      $region97: #{trading_bert_forward.1} parent=5 // pred_check
        %p3326 = pneg %p3325
      $region98: #{trading_bert_forward.1} parent=5 // pred_check_branch
        %3328 = sbr.rel (%p3326) target = $region100
      $region99: #{trading_bert_forward.1} parent=5 // pred_region
        %s3329 = ssub.s32 %s27, 2
        // Predicated region
        $region101: #{trading_bert_forward.1} parent=99 // pred_check
          %p3330 = pneg %p439
        $region102: #{trading_bert_forward.1} parent=99 // pred_check_branch
          %3332 = sbr.rel (%p3330) target = $region104
        $region103: #{trading_bert_forward.1} parent=99 // pred_region
          %s3333 = sand.u32 %s424, 1
          %s3334 = scalar_lea.sflag [#allocation3], %s3333
          %s3335 = sand.u32 %s424, 1
          %s3336 = smul.addr %s3335, 32
          %s3337 = scalar_lea.vmem [#allocation2], %s3336
          %3338 = dma.done %s3334, 512
        $region104: #{trading_bert_forward.1} parent=99 // pred_fallthru
          _
      $region100: #{trading_bert_forward.1} parent=5 // pred_fallthru
        _
    $region6: #{trading_bert_forward.1} parent=1 // loop_footer
      %s31 = sadd.s32 1, %s27
    $region7: #{trading_bert_forward.1} parent=1 // loop_footer_branch
      %26 = sbr.rel target = $region3
    $region8: #{trading_bert_forward.1} parent=1 // loop_exit
      _
    %3339 = vsyncpa [#allocation3], 1
    %s3340 = scalar_lea.sflag [#allocation3], 1
    %3341 = vsyncpa %s3340, 1

</llo_original>
